<compile_context>
chip_gen: v7x
topology: tpu7x:2x2x1
jax: 0.10.0
libtpu: 0.0.40
codegen_flags: <defaults>
</compile_context>

<pallas_src>
import functools
import math

import numpy as np
import jax
import jax.numpy as jnp
from jax.experimental import pallas as pl
from jax.experimental.pallas import tpu as pltpu

FEATURE_SIZE = 64                 # C (input feature size)
FEATURE_NUM = 16                  # T (input time steps) == d_model
HIDDEN_DIM = 16                   # FFN hidden dim
NUM_LAYERS = 3
NHEAD = 1
HALF_FEATURE = FEATURE_SIZE // 2  # 32 == encoder sequence length
D_MODEL = FEATURE_NUM             # 16
SEQ = HALF_FEATURE                # 32
LN_EPS = 1e-5
SUB_BATCH = 8                     # examples per in-kernel loop step (sweep 4/8/16)


def _layer_norm(x, w, b):
    # LayerNorm over last dim, biased variance (PyTorch semantics), eps=1e-5.
    mean = jnp.mean(x, axis=-1, keepdims=True)
    var = jnp.mean((x - mean) ** 2, axis=-1, keepdims=True)
    return (x - mean) * jax.lax.rsqrt(var + LN_EPS) * w + b


# ----------------------------- fused kernel ----------------------------------
def _fused_kernel(sb, x_ref, aepack_ref, wpack_ref, bpack_ref, pelm_ref, out_ref):
    D, S, T, C = D_MODEL, SEQ, FEATURE_NUM, FEATURE_SIZE
    bb = x_ref.shape[0]
    n_sub = bb // sb

    @pl.loop(0, n_sub)
    def _(i):
        r0 = i * sb
        if sb % 8 == 0:
            r0 = pl.multiple_of(r0, sb)

        # ---- autoencoder Linear(64 -> 32), split into two 16-wide halves ----
        # The halves are exactly the two column groups the row-major
        # (sb,16,32)->(sb,32,16) reshape interleaves, so no cross-lane slice of
        # the activations is ever needed.
        x2d = x_ref[pl.ds(r0, sb)].reshape(sb * T, C)               # (sb*16, 64)
        ae_lo = jnp.dot(x2d, aepack_ref[0:C, :],
                        preferred_element_type=jnp.float32) + bpack_ref[30:31, :]
        ae_hi = jnp.dot(x2d, aepack_ref[C:2 * C, :],
                        preferred_element_type=jnp.float32) + bpack_ref[31:32, :]
        # kernel sequence order = even original positions (rows 0..15) then odd
        # (rows 16..31); pe / lm_head rows were permuted identically at pack time.
        h3 = jnp.concatenate([ae_lo.reshape(sb, T, D),
                              ae_hi.reshape(sb, T, D)], axis=1)     # (sb, 32, 16)
        h3 = h3 + pelm_ref[0:S, :][None]                            # + positional enc
        h = h3.reshape(sb * S, D)                                   # (sb*32, 16)

        for l in range(NUM_LAYERS):                                 # statically unrolled
            wb = 6 * D * l
            vb = 10 * l
            w_q = wpack_ref[wb + 0 * D: wb + 1 * D, :]   # (16,16), scale pre-folded
            w_k = wpack_ref[wb + 1 * D: wb + 2 * D, :]
            w_v = wpack_ref[wb + 2 * D: wb + 3 * D, :]
            w_o = wpack_ref[wb + 3 * D: wb + 4 * D, :]
            w_1 = wpack_ref[wb + 4 * D: wb + 5 * D, :]
            w_2 = wpack_ref[wb + 5 * D: wb + 6 * D, :]

            # ---- single-head self attention (post-norm encoder layer) ----
            q = (jnp.dot(h, w_q, preferred_element_type=jnp.float32)
                 + bpack_ref[vb + 0: vb + 1, :]).reshape(sb, S, D)
            k = (jnp.dot(h, w_k, preferred_element_type=jnp.float32)
                 + bpack_ref[vb + 1: vb + 2, :]).reshape(sb, S, D)
            v = (jnp.dot(h, w_v, preferred_element_type=jnp.float32)
                 + bpack_ref[vb + 2: vb + 3, :]).reshape(sb, S, D)
            s = jnp.einsum("bqd,bkd->bqk", q, k,
                           preferred_element_type=jnp.float32)      # (sb, S, S)
            s = s - jnp.max(s, axis=-1, keepdims=True)
            p = jnp.exp(s)
            attn = p / jnp.sum(p, axis=-1, keepdims=True)           # exact softmax
            o = jnp.einsum("bqk,bkd->bqd", attn, v,
                           preferred_element_type=jnp.float32)      # (sb, S, D)
            o2d = (jnp.dot(o.reshape(sb * S, D), w_o,
                           preferred_element_type=jnp.float32)
                   + bpack_ref[vb + 3: vb + 4, :])
            h = _layer_norm(h + o2d,
                            bpack_ref[vb + 6: vb + 7, :],
                            bpack_ref[vb + 7: vb + 8, :])

            # ---- feed forward: linear1 -> relu -> linear2 ----
            f = (jnp.dot(h, w_1, preferred_element_type=jnp.float32)
                 + bpack_ref[vb + 4: vb + 5, :])
            f = jnp.maximum(f, 0.0)
            f = (jnp.dot(f, w_2, preferred_element_type=jnp.float32)
                 + bpack_ref[vb + 5: vb + 6, :])
            h = _layer_norm(h + f,
                            bpack_ref[vb + 8: vb + 9, :],
                            bpack_ref[vb + 9: vb + 10, :])

        # ---- lm_head: Linear(S*D -> 1), weight rows permuted to match h ----
        prod = h.reshape(sb, S, D) * pelm_ref[S:2 * S, :][None]     # (sb, S, D)
        vals = jnp.sum(jnp.sum(prod, axis=2), axis=1)               # (sb,)
        row = vals.reshape(1, sb) + bpack_ref[32:33, 0:1]           # + lm_b
        out_ref[pl.ds(i, 1), :, :] = row.reshape(1, 1, sb)          # lane-dense row


def _pick_bb(B):
    """Batch block size: large enough to amortize per-grid-step overhead, but
    keep >=2 grid steps when possible (v7x megacore) and <=128 rows/block."""
    if B <= 16:
        return B
    bb = 128
    while bb * 2 > B and bb > SUB_BATCH:
        bb //= 2
    return bb


def transformer_forward(x, packed):
    B = x.shape[0]
    bb = _pick_bb(B)
    nblk = -(-B // bb)
    Bp = nblk * bb
    if Bp != B:                                  # pad instead of losing the grid
        x = jnp.pad(x, ((0, Bp - B), (0, 0), (0, 0)))
    sb = SUB_BATCH if bb % SUB_BATCH == 0 else bb
    n_sub = bb // sb

    kern = functools.partial(_fused_kernel, sb)
    out = pl.pallas_call(
        kern,
        out_shape=jax.ShapeDtypeStruct((Bp // sb, 1, sb), jnp.float32),
        grid=(nblk,),
        in_specs=[
            pl.BlockSpec((bb, FEATURE_NUM, FEATURE_SIZE), lambda i: (i, 0, 0)),
            pl.BlockSpec(packed["aepack"].shape, lambda i: (0, 0)),
            pl.BlockSpec(packed["wpack"].shape, lambda i: (0, 0)),
            pl.BlockSpec(packed["bpack"].shape, lambda i: (0, 0)),
            pl.BlockSpec(packed["pelm"].shape, lambda i: (0, 0)),
        ],
        out_specs=pl.BlockSpec((n_sub, 1, sb), lambda i: (i, 0, 0)),
        compiler_params=pltpu.CompilerParams(
            dimension_semantics=("parallel",),
            vmem_limit_bytes=32 * 1024 * 1024),
    )(x, packed["aepack"], packed["wpack"], packed["bpack"], packed["pelm"])
    return out.reshape(Bp, 1)[:B]


# ----------------------------- parameter setup --------------------------------
def init_params(key):
    """PyTorch-layout parameters (weights are [out, in])."""
    keys = jax.random.split(key, 12)

    def nrm(k, shape, scale=0.1):
        return jax.random.normal(k, shape, dtype=jnp.float32) * scale

    p = {}
    p["ae_w"] = nrm(keys[0], (HALF_FEATURE, FEATURE_SIZE))          # (32, 64)
    p["ae_b"] = nrm(keys[1], (HALF_FEATURE,), 0.01)

    # positional encoding buffer: pe[feature_len=32, feature_size=16]
    pe = np.zeros((SEQ, D_MODEL), dtype=np.float32)
    position = np.arange(SEQ, dtype=np.float32)[:, None]
    div_term = np.exp(np.arange(0, D_MODEL, 2, dtype=np.float32)
                      * (-math.log(10000.0) / D_MODEL))
    pe[:, 0::2] = np.sin(position * div_term)
    pe[:, 1::2] = np.cos(position * div_term)
    p["pe"] = jnp.asarray(pe)

    p["w_in"] = nrm(keys[2], (NUM_LAYERS, 3 * D_MODEL, D_MODEL))    # [q;k;v]
    p["b_in"] = nrm(keys[3], (NUM_LAYERS, 3 * D_MODEL), 0.01)
    p["w_out"] = nrm(keys[4], (NUM_LAYERS, D_MODEL, D_MODEL))
    p["b_out"] = nrm(keys[5], (NUM_LAYERS, D_MODEL), 0.01)
    p["w1"] = nrm(keys[6], (NUM_LAYERS, HIDDEN_DIM, D_MODEL))
    p["b1"] = nrm(keys[7], (NUM_LAYERS, HIDDEN_DIM), 0.01)
    p["w2"] = nrm(keys[8], (NUM_LAYERS, D_MODEL, HIDDEN_DIM))
    p["b2"] = nrm(keys[9], (NUM_LAYERS, D_MODEL), 0.01)
    p["ln1_w"] = jnp.ones((NUM_LAYERS, D_MODEL), jnp.float32)
    p["ln1_b"] = jnp.zeros((NUM_LAYERS, D_MODEL), jnp.float32)
    p["ln2_w"] = jnp.ones((NUM_LAYERS, D_MODEL), jnp.float32)
    p["ln2_b"] = jnp.zeros((NUM_LAYERS, D_MODEL), jnp.float32)

    p["lm_w"] = nrm(keys[10], (1, D_MODEL * SEQ))                   # (1, 512)
    p["lm_b"] = nrm(keys[11], (1,), 0.01)
    return p


def pack_params(p):
    """Wrapper-side layout plumbing (free): transpose weights to (in, out),
    fold the attention scale into q, apply the even/odd sequence permutation
    to pe / lm_head rows, split the autoencoder weight into its two 16-wide
    halves, and pack everything into vertically-stacked (.,16) slabs."""
    assert HIDDEN_DIM == D_MODEL
    D, S = D_MODEL, SEQ
    scale = 1.0 / math.sqrt(D // NHEAD)
    # permutation pi(r): even original sequence positions first, then odd
    perm = np.concatenate([np.arange(0, S, 2), np.arange(1, S, 2)])

    ae_w_t = np.asarray(p["ae_w"], np.float32).T                    # (64, 32) (in,out)
    aepack = np.concatenate([ae_w_t[:, 0:D], ae_w_t[:, D:2 * D]], axis=0)  # (128,16)

    w_rows, b_rows = [], []
    for l in range(NUM_LAYERS):
        w_in_t = np.asarray(p["w_in"][l], np.float32).T             # (16, 48) (in,out)
        w_rows += [w_in_t[:, 0:D] * scale,                          # w_q (scaled)
                   w_in_t[:, D:2 * D],                              # w_k
                   w_in_t[:, 2 * D:3 * D],                          # w_v
                   np.asarray(p["w_out"][l], np.float32).T,         # w_o
                   np.asarray(p["w1"][l], np.float32).T,            # w_1
                   np.asarray(p["w2"][l], np.float32).T]            # w_2

        b_in = np.asarray(p["b_in"][l], np.float32)
        b_rows += [b_in[0:D] * scale, b_in[D:2 * D], b_in[2 * D:3 * D],
                   np.asarray(p["b_out"][l], np.float32),
                   np.asarray(p["b1"][l], np.float32),
                   np.asarray(p["b2"][l], np.float32),
                   np.asarray(p["ln1_w"][l], np.float32),
                   np.asarray(p["ln1_b"][l], np.float32),
                   np.asarray(p["ln2_w"][l], np.float32),
                   np.asarray(p["ln2_b"][l], np.float32)]

    ae_b = np.asarray(p["ae_b"], np.float32)
    b_rows += [ae_b[0:D], ae_b[D:2 * D]]
    lm_row = np.zeros(D, np.float32)
    lm_row[0] = float(np.asarray(p["lm_b"]).reshape(-1)[0])
    b_rows.append(lm_row)

    wpack = np.concatenate(w_rows, axis=0).astype(np.float32)       # (288, 16)
    bpack = np.stack(b_rows, axis=0).astype(np.float32)             # (33, 16)

    pe = np.asarray(p["pe"], np.float32)                            # (32, 16)
    lm_w2d = np.asarray(p["lm_w"], np.float32).reshape(S, D)        # row-major (32,16)
    pelm = np.concatenate([pe[perm], lm_w2d[perm]], axis=0)         # (64, 16)

    return {"aepack": jnp.asarray(aepack), "wpack": jnp.asarray(wpack),
            "bpack": jnp.asarray(bpack), "pelm": jnp.asarray(pelm)}


# ----------------------------- pure-JAX reference -----------------------------
def reference_forward(x, p):
    """Direct transcription of the PyTorch module (reshape-based)."""
    B = x.shape[0]
    scale = 1.0 / math.sqrt(D_MODEL // NHEAD)
    y = x @ p["ae_w"].T + p["ae_b"]                                 # (B,16,32)
    h = y.reshape(B, SEQ, D_MODEL)                                  # (B,32,16) row-major
    h = h + p["pe"][None]
    for l in range(NUM_LAYERS):
        qkv = h @ p["w_in"][l].T + p["b_in"][l]
        q = qkv[..., :D_MODEL] * scale
        k = qkv[..., D_MODEL:2 * D_MODEL]
        v = qkv[..., 2 * D_MODEL:]
        s = jnp.einsum("bqd,bkd->bqk", q, k)
        a = jax.nn.softmax(s, axis=-1)
        o = jnp.einsum("bqk,bkd->bqd", a, v)
        o = o @ p["w_out"][l].T + p["b_out"][l]
        h = _layer_norm(h + o, p["ln1_w"][l], p["ln1_b"][l])
        f = jnp.maximum(h @ p["w1"][l].T + p["b1"][l], 0.0)
        f = f @ p["w2"][l].T + p["b2"][l]
        h = _layer_norm(h + f, p["ln2_w"][l], p["ln2_b"][l])
    return h.reshape(B, -1) @ p["lm_w"].T + p["lm_b"]


if __name__ == "__main__":
    key = jax.random.PRNGKey(0)
    pkey, xkey = jax.random.split(key)
    params = init_params(pkey)
    packed = pack_params(params)

    B = 2
    # Input consistent with the module: (B, T=feature_num=16, C=feature_size=64)
    x = jax.random.normal(xkey, (B, FEATURE_NUM, FEATURE_SIZE), dtype=jnp.float32)

    fwd = jax.jit(transformer_forward)
    out = jax.block_until_ready(fwd(x, packed))
    assert out.shape == (B, 1), out.shape
    assert bool(jnp.all(jnp.isfinite(out)))

    # Numerical sanity check against the straight-line JAX reference.  Loose
    # tolerance covers MXU f32 matmul precision differences, not logic errors.
    with jax.default_matmul_precision("float32"):
        ref = jax.block_until_ready(reference_forward(x, params))
    np.testing.assert_allclose(np.asarray(out), np.asarray(ref), rtol=5e-2, atol=5e-2)

    print("KERNEL_OK")
</pallas_src>

<mosaic_0001>
module attributes {stable_mosaic.version = 11 : i64} {
  func.func @_fused_kernel(%arg0: i32, %arg1: memref<2x16x64xf32, #tpu.memory_space<vmem>>, %arg2: memref<128x16xf32, #tpu.memory_space<vmem>>, %arg3: memref<288x16xf32, #tpu.memory_space<vmem>>, %arg4: memref<33x16xf32, #tpu.memory_space<vmem>>, %arg5: memref<64x16xf32, #tpu.memory_space<vmem>>, %arg6: memref<1x1x2xf32, #tpu.memory_space<vmem>>) attributes {dimension_semantics = [#tpu.dimension_semantics<parallel>], iteration_bounds = array<i64: 1>, scalar_prefetch = 0 : i64, scratch_operands = 0 : i64, tpu.core_type = #tpu.core_type<tc>, window_params = [{transform_indices = @transform_0, window_bounds = array<i64: 2, 16, 64>}, {pipeline_mode = #tpu.pipeline_mode<synchronous>, transform_indices = @transform_1, window_bounds = array<i64: 128, 16>}, {pipeline_mode = #tpu.pipeline_mode<synchronous>, transform_indices = @transform_2, window_bounds = array<i64: 288, 16>}, {pipeline_mode = #tpu.pipeline_mode<synchronous>, transform_indices = @transform_3, window_bounds = array<i64: 33, 16>}, {pipeline_mode = #tpu.pipeline_mode<synchronous>, transform_indices = @transform_4, window_bounds = array<i64: 64, 16>}, {transform_indices = @transform_5, window_bounds = array<i64: 1, 1, 2>}]} {
    %c0_i32 = arith.constant 0 : i32
    %c1_i32 = arith.constant 1 : i32
    %0 = arith.muli %c0_i32, %c1_i32 : i32
    %c0_i32_0 = arith.constant 0 : i32
    %1 = arith.addi %c0_i32_0, %0 : i32
    %c2_i32 = arith.constant 2 : i32
    %2 = arith.muli %1, %c2_i32 : i32
    %3 = arith.index_cast %2 : i32 to index
    %c0 = arith.constant 0 : index
    %c0_1 = arith.constant 0 : index
    %4 = vector.load %arg1[%3, %c0, %c0_1] : memref<2x16x64xf32, #tpu.memory_space<vmem>>, vector<2x16x64xf32>
    %5 = vector.shape_cast %4 : vector<2x16x64xf32> to vector<32x64xf32>
    %c0_2 = arith.constant 0 : index
    %c0_3 = arith.constant 0 : index
    %6 = vector.load %arg2[%c0_2, %c0_3] : memref<128x16xf32, #tpu.memory_space<vmem>>, vector<64x16xf32>
    %cst = arith.constant dense<0.000000e+00> : vector<32x16xf32>
    %7 = tpu.matmul %5, %6, %cst {dimension_numbers = #tpu.dot_dimension_numbers<[1], [0], [0], [1], [0, 0, 1, 1], [], []>} : vector<32x64xf32>, vector<64x16xf32>, vector<32x16xf32> -> vector<32x16xf32>
    %c30 = arith.constant 30 : index
    %c0_4 = arith.constant 0 : index
    %8 = vector.load %arg4[%c30, %c0_4] : memref<33x16xf32, #tpu.memory_space<vmem>>, vector<1x16xf32>
    %9 = vector.broadcast %8 : vector<1x16xf32> to vector<32x16xf32>
    %10 = arith.addf %7, %9 : vector<32x16xf32>
    %c64 = arith.constant 64 : index
    %c0_5 = arith.constant 0 : index
    %11 = vector.load %arg2[%c64, %c0_5] : memref<128x16xf32, #tpu.memory_space<vmem>>, vector<64x16xf32>
    %cst_6 = arith.constant dense<0.000000e+00> : vector<32x16xf32>
    %12 = tpu.matmul %5, %11, %cst_6 {dimension_numbers = #tpu.dot_dimension_numbers<[1], [0], [0], [1], [0, 0, 1, 1], [], []>} : vector<32x64xf32>, vector<64x16xf32>, vector<32x16xf32> -> vector<32x16xf32>
    %c31 = arith.constant 31 : index
    %c0_7 = arith.constant 0 : index
    %13 = vector.load %arg4[%c31, %c0_7] : memref<33x16xf32, #tpu.memory_space<vmem>>, vector<1x16xf32>
    %14 = vector.broadcast %13 : vector<1x16xf32> to vector<32x16xf32>
    %15 = arith.addf %12, %14 : vector<32x16xf32>
    %16 = vector.shape_cast %10 : vector<32x16xf32> to vector<2x16x16xf32>
    %17 = vector.shape_cast %15 : vector<32x16xf32> to vector<2x16x16xf32>
    %18 = tpu.concatenate %16, %17 in 1 : vector<2x16x16xf32>, vector<2x16x16xf32> -> vector<2x32x16xf32>
    %c0_8 = arith.constant 0 : index
    %c0_9 = arith.constant 0 : index
    %19 = vector.load %arg5[%c0_8, %c0_9] : memref<64x16xf32, #tpu.memory_space<vmem>>, vector<32x16xf32>
    %20 = vector.shape_cast %19 : vector<32x16xf32> to vector<1x32x16xf32>
    %21 = vector.broadcast %20 : vector<1x32x16xf32> to vector<2x32x16xf32>
    %22 = arith.addf %18, %21 : vector<2x32x16xf32>
    %23 = vector.shape_cast %22 : vector<2x32x16xf32> to vector<64x16xf32>
    %c0_10 = arith.constant 0 : index
    %c0_11 = arith.constant 0 : index
    %24 = vector.load %arg3[%c0_10, %c0_11] : memref<288x16xf32, #tpu.memory_space<vmem>>, vector<16x16xf32>
    %c16 = arith.constant 16 : index
    %c0_12 = arith.constant 0 : index
    %25 = vector.load %arg3[%c16, %c0_12] : memref<288x16xf32, #tpu.memory_space<vmem>>, vector<16x16xf32>
    %c32 = arith.constant 32 : index
    %c0_13 = arith.constant 0 : index
    %26 = vector.load %arg3[%c32, %c0_13] : memref<288x16xf32, #tpu.memory_space<vmem>>, vector<16x16xf32>
    %c48 = arith.constant 48 : index
    %c0_14 = arith.constant 0 : index
    %27 = vector.load %arg3[%c48, %c0_14] : memref<288x16xf32, #tpu.memory_space<vmem>>, vector<16x16xf32>
    %c64_15 = arith.constant 64 : index
    %c0_16 = arith.constant 0 : index
    %28 = vector.load %arg3[%c64_15, %c0_16] : memref<288x16xf32, #tpu.memory_space<vmem>>, vector<16x16xf32>
    %c80 = arith.constant 80 : index
    %c0_17 = arith.constant 0 : index
    %29 = vector.load %arg3[%c80, %c0_17] : memref<288x16xf32, #tpu.memory_space<vmem>>, vector<16x16xf32>
    %cst_18 = arith.constant dense<0.000000e+00> : vector<64x16xf32>
    %30 = tpu.matmul %23, %24, %cst_18 {dimension_numbers = #tpu.dot_dimension_numbers<[1], [0], [0], [1], [0, 0, 1, 1], [], []>} : vector<64x16xf32>, vector<16x16xf32>, vector<64x16xf32> -> vector<64x16xf32>
    %c0_19 = arith.constant 0 : index
    %c0_20 = arith.constant 0 : index
    %31 = vector.load %arg4[%c0_19, %c0_20] : memref<33x16xf32, #tpu.memory_space<vmem>>, vector<1x16xf32>
    %32 = vector.broadcast %31 : vector<1x16xf32> to vector<64x16xf32>
    %33 = arith.addf %30, %32 : vector<64x16xf32>
    %34 = vector.shape_cast %33 : vector<64x16xf32> to vector<2x32x16xf32>
    %cst_21 = arith.constant dense<0.000000e+00> : vector<64x16xf32>
    %35 = tpu.matmul %23, %25, %cst_21 {dimension_numbers = #tpu.dot_dimension_numbers<[1], [0], [0], [1], [0, 0, 1, 1], [], []>} : vector<64x16xf32>, vector<16x16xf32>, vector<64x16xf32> -> vector<64x16xf32>
    %c1 = arith.constant 1 : index
    %c0_22 = arith.constant 0 : index
    %36 = vector.load %arg4[%c1, %c0_22] : memref<33x16xf32, #tpu.memory_space<vmem>>, vector<1x16xf32>
    %37 = vector.broadcast %36 : vector<1x16xf32> to vector<64x16xf32>
    %38 = arith.addf %35, %37 : vector<64x16xf32>
    %39 = vector.shape_cast %38 : vector<64x16xf32> to vector<2x32x16xf32>
    %cst_23 = arith.constant dense<0.000000e+00> : vector<64x16xf32>
    %40 = tpu.matmul %23, %26, %cst_23 {dimension_numbers = #tpu.dot_dimension_numbers<[1], [0], [0], [1], [0, 0, 1, 1], [], []>} : vector<64x16xf32>, vector<16x16xf32>, vector<64x16xf32> -> vector<64x16xf32>
    %c2 = arith.constant 2 : index
    %c0_24 = arith.constant 0 : index
    %41 = vector.load %arg4[%c2, %c0_24] : memref<33x16xf32, #tpu.memory_space<vmem>>, vector<1x16xf32>
    %42 = vector.broadcast %41 : vector<1x16xf32> to vector<64x16xf32>
    %43 = arith.addf %40, %42 : vector<64x16xf32>
    %44 = vector.shape_cast %43 : vector<64x16xf32> to vector<2x32x16xf32>
    "tpu.trace_start"() <{level = 10 : i32, message = "bqd,bkd->bqk"}> : () -> ()
    %cst_25 = arith.constant dense<0.000000e+00> : vector<2x32x32xf32>
    %45 = tpu.matmul %34, %39, %cst_25 {dimension_numbers = #tpu.dot_dimension_numbers<[2], [2], [1], [1], [0, 0, 0, 1, 1, 1], [0], [0]>} : vector<2x32x16xf32>, vector<2x32x16xf32>, vector<2x32x32xf32> -> vector<2x32x32xf32>
    "tpu.trace_stop"() : () -> ()
    %cst_26 = arith.constant dense<0xFF800000> : vector<2x32xf32>
    %46 = vector.multi_reduction <maximumf>, %45, %cst_26 [2] : vector<2x32x32xf32> to vector<2x32xf32>
    %47 = vector.shape_cast %46 : vector<2x32xf32> to vector<2x32x1xf32>
    %48 = vector.broadcast %47 : vector<2x32x1xf32> to vector<2x32x32xf32>
    %49 = arith.subf %45, %48 : vector<2x32x32xf32>
    %50 = math.exp %49 : vector<2x32x32xf32>
    %cst_27 = arith.constant dense<0.000000e+00> : vector<2x32xf32>
    %51 = vector.multi_reduction <add>, %50, %cst_27 [2] : vector<2x32x32xf32> to vector<2x32xf32>
    %52 = vector.shape_cast %51 : vector<2x32xf32> to vector<2x32x1xf32>
    %53 = vector.broadcast %52 : vector<2x32x1xf32> to vector<2x32x32xf32>
    %54 = arith.divf %50, %53 : vector<2x32x32xf32>
    "tpu.trace_start"() <{level = 10 : i32, message = "bqk,bkd->bqd"}> : () -> ()
    %cst_28 = arith.constant dense<0.000000e+00> : vector<2x32x16xf32>
    %55 = tpu.matmul %54, %44, %cst_28 {dimension_numbers = #tpu.dot_dimension_numbers<[2], [1], [1], [2], [0, 0, 0, 1, 1, 2], [0], [0]>} : vector<2x32x32xf32>, vector<2x32x16xf32>, vector<2x32x16xf32> -> vector<2x32x16xf32>
    "tpu.trace_stop"() : () -> ()
    %56 = vector.shape_cast %55 : vector<2x32x16xf32> to vector<64x16xf32>
    %cst_29 = arith.constant dense<0.000000e+00> : vector<64x16xf32>
    %57 = tpu.matmul %56, %27, %cst_29 {dimension_numbers = #tpu.dot_dimension_numbers<[1], [0], [0], [1], [0, 0, 1, 1], [], []>} : vector<64x16xf32>, vector<16x16xf32>, vector<64x16xf32> -> vector<64x16xf32>
    %c3 = arith.constant 3 : index
    %c0_30 = arith.constant 0 : index
    %58 = vector.load %arg4[%c3, %c0_30] : memref<33x16xf32, #tpu.memory_space<vmem>>, vector<1x16xf32>
    %59 = vector.broadcast %58 : vector<1x16xf32> to vector<64x16xf32>
    %60 = arith.addf %57, %59 : vector<64x16xf32>
    %61 = arith.addf %23, %60 : vector<64x16xf32>
    %c6 = arith.constant 6 : index
    %c0_31 = arith.constant 0 : index
    %62 = vector.load %arg4[%c6, %c0_31] : memref<33x16xf32, #tpu.memory_space<vmem>>, vector<1x16xf32>
    %c7 = arith.constant 7 : index
    %c0_32 = arith.constant 0 : index
    %63 = vector.load %arg4[%c7, %c0_32] : memref<33x16xf32, #tpu.memory_space<vmem>>, vector<1x16xf32>
    %cst_33 = arith.constant dense<0.000000e+00> : vector<64xf32>
    %64 = vector.multi_reduction <add>, %61, %cst_33 [1] : vector<64x16xf32> to vector<64xf32>
    %65 = vector.shape_cast %64 : vector<64xf32> to vector<64x1xf32>
    %cst_34 = arith.constant 1.600000e+01 : f32
    %66 = vector.broadcast %cst_34 : f32 to vector<64x1xf32>
    %67 = arith.divf %65, %66 : vector<64x1xf32>
    %68 = vector.broadcast %67 : vector<64x1xf32> to vector<64x16xf32>
    %69 = arith.subf %61, %68 : vector<64x16xf32>
    %70 = arith.mulf %69, %69 : vector<64x16xf32>
    %cst_35 = arith.constant dense<0.000000e+00> : vector<64xf32>
    %71 = vector.multi_reduction <add>, %70, %cst_35 [1] : vector<64x16xf32> to vector<64xf32>
    %72 = vector.shape_cast %71 : vector<64xf32> to vector<64x1xf32>
    %cst_36 = arith.constant 1.600000e+01 : f32
    %73 = vector.broadcast %cst_36 : f32 to vector<64x1xf32>
    %74 = arith.divf %72, %73 : vector<64x1xf32>
    %75 = vector.broadcast %67 : vector<64x1xf32> to vector<64x16xf32>
    %76 = arith.subf %61, %75 : vector<64x16xf32>
    %cst_37 = arith.constant 9.99999974E-6 : f32
    %77 = vector.broadcast %cst_37 : f32 to vector<64x1xf32>
    %78 = arith.addf %74, %77 : vector<64x1xf32>
    %79 = math.rsqrt %78 : vector<64x1xf32>
    %80 = vector.broadcast %79 : vector<64x1xf32> to vector<64x16xf32>
    %81 = arith.mulf %76, %80 : vector<64x16xf32>
    %82 = vector.broadcast %62 : vector<1x16xf32> to vector<64x16xf32>
    %83 = arith.mulf %81, %82 : vector<64x16xf32>
    %84 = vector.broadcast %63 : vector<1x16xf32> to vector<64x16xf32>
    %85 = arith.addf %83, %84 : vector<64x16xf32>
    %cst_38 = arith.constant dense<0.000000e+00> : vector<64x16xf32>
    %86 = tpu.matmul %85, %28, %cst_38 {dimension_numbers = #tpu.dot_dimension_numbers<[1], [0], [0], [1], [0, 0, 1, 1], [], []>} : vector<64x16xf32>, vector<16x16xf32>, vector<64x16xf32> -> vector<64x16xf32>
    %c4 = arith.constant 4 : index
    %c0_39 = arith.constant 0 : index
    %87 = vector.load %arg4[%c4, %c0_39] : memref<33x16xf32, #tpu.memory_space<vmem>>, vector<1x16xf32>
    %88 = vector.broadcast %87 : vector<1x16xf32> to vector<64x16xf32>
    %89 = arith.addf %86, %88 : vector<64x16xf32>
    %cst_40 = arith.constant 0.000000e+00 : f32
    %90 = vector.broadcast %cst_40 : f32 to vector<64x16xf32>
    %91 = arith.maximumf %89, %90 : vector<64x16xf32>
    %cst_41 = arith.constant dense<0.000000e+00> : vector<64x16xf32>
    %92 = tpu.matmul %91, %29, %cst_41 {dimension_numbers = #tpu.dot_dimension_numbers<[1], [0], [0], [1], [0, 0, 1, 1], [], []>} : vector<64x16xf32>, vector<16x16xf32>, vector<64x16xf32> -> vector<64x16xf32>
    %c5 = arith.constant 5 : index
    %c0_42 = arith.constant 0 : index
    %93 = vector.load %arg4[%c5, %c0_42] : memref<33x16xf32, #tpu.memory_space<vmem>>, vector<1x16xf32>
    %94 = vector.broadcast %93 : vector<1x16xf32> to vector<64x16xf32>
    %95 = arith.addf %92, %94 : vector<64x16xf32>
    %96 = arith.addf %85, %95 : vector<64x16xf32>
    %c8 = arith.constant 8 : index
    %c0_43 = arith.constant 0 : index
    %97 = vector.load %arg4[%c8, %c0_43] : memref<33x16xf32, #tpu.memory_space<vmem>>, vector<1x16xf32>
    %c9 = arith.constant 9 : index
    %c0_44 = arith.constant 0 : index
    %98 = vector.load %arg4[%c9, %c0_44] : memref<33x16xf32, #tpu.memory_space<vmem>>, vector<1x16xf32>
    %cst_45 = arith.constant dense<0.000000e+00> : vector<64xf32>
    %99 = vector.multi_reduction <add>, %96, %cst_45 [1] : vector<64x16xf32> to vector<64xf32>
    %100 = vector.shape_cast %99 : vector<64xf32> to vector<64x1xf32>
    %cst_46 = arith.constant 1.600000e+01 : f32
    %101 = vector.broadcast %cst_46 : f32 to vector<64x1xf32>
    %102 = arith.divf %100, %101 : vector<64x1xf32>
    %103 = vector.broadcast %102 : vector<64x1xf32> to vector<64x16xf32>
    %104 = arith.subf %96, %103 : vector<64x16xf32>
    %105 = arith.mulf %104, %104 : vector<64x16xf32>
    %cst_47 = arith.constant dense<0.000000e+00> : vector<64xf32>
    %106 = vector.multi_reduction <add>, %105, %cst_47 [1] : vector<64x16xf32> to vector<64xf32>
    %107 = vector.shape_cast %106 : vector<64xf32> to vector<64x1xf32>
    %cst_48 = arith.constant 1.600000e+01 : f32
    %108 = vector.broadcast %cst_48 : f32 to vector<64x1xf32>
    %109 = arith.divf %107, %108 : vector<64x1xf32>
    %110 = vector.broadcast %102 : vector<64x1xf32> to vector<64x16xf32>
    %111 = arith.subf %96, %110 : vector<64x16xf32>
    %cst_49 = arith.constant 9.99999974E-6 : f32
    %112 = vector.broadcast %cst_49 : f32 to vector<64x1xf32>
    %113 = arith.addf %109, %112 : vector<64x1xf32>
    %114 = math.rsqrt %113 : vector<64x1xf32>
    %115 = vector.broadcast %114 : vector<64x1xf32> to vector<64x16xf32>
    %116 = arith.mulf %111, %115 : vector<64x16xf32>
    %117 = vector.broadcast %97 : vector<1x16xf32> to vector<64x16xf32>
    %118 = arith.mulf %116, %117 : vector<64x16xf32>
    %119 = vector.broadcast %98 : vector<1x16xf32> to vector<64x16xf32>
    %120 = arith.addf %118, %119 : vector<64x16xf32>
    %c96 = arith.constant 96 : index
    %c0_50 = arith.constant 0 : index
    %121 = vector.load %arg3[%c96, %c0_50] : memref<288x16xf32, #tpu.memory_space<vmem>>, vector<16x16xf32>
    %c112 = arith.constant 112 : index
    %c0_51 = arith.constant 0 : index
    %122 = vector.load %arg3[%c112, %c0_51] : memref<288x16xf32, #tpu.memory_space<vmem>>, vector<16x16xf32>
    %c128 = arith.constant 128 : index
    %c0_52 = arith.constant 0 : index
    %123 = vector.load %arg3[%c128, %c0_52] : memref<288x16xf32, #tpu.memory_space<vmem>>, vector<16x16xf32>
    %c144 = arith.constant 144 : index
    %c0_53 = arith.constant 0 : index
    %124 = vector.load %arg3[%c144, %c0_53] : memref<288x16xf32, #tpu.memory_space<vmem>>, vector<16x16xf32>
    %c160 = arith.constant 160 : index
    %c0_54 = arith.constant 0 : index
    %125 = vector.load %arg3[%c160, %c0_54] : memref<288x16xf32, #tpu.memory_space<vmem>>, vector<16x16xf32>
    %c176 = arith.constant 176 : index
    %c0_55 = arith.constant 0 : index
    %126 = vector.load %arg3[%c176, %c0_55] : memref<288x16xf32, #tpu.memory_space<vmem>>, vector<16x16xf32>
    %cst_56 = arith.constant dense<0.000000e+00> : vector<64x16xf32>
    %127 = tpu.matmul %120, %121, %cst_56 {dimension_numbers = #tpu.dot_dimension_numbers<[1], [0], [0], [1], [0, 0, 1, 1], [], []>} : vector<64x16xf32>, vector<16x16xf32>, vector<64x16xf32> -> vector<64x16xf32>
    %c10 = arith.constant 10 : index
    %c0_57 = arith.constant 0 : index
    %128 = vector.load %arg4[%c10, %c0_57] : memref<33x16xf32, #tpu.memory_space<vmem>>, vector<1x16xf32>
    %129 = vector.broadcast %128 : vector<1x16xf32> to vector<64x16xf32>
    %130 = arith.addf %127, %129 : vector<64x16xf32>
    %131 = vector.shape_cast %130 : vector<64x16xf32> to vector<2x32x16xf32>
    %cst_58 = arith.constant dense<0.000000e+00> : vector<64x16xf32>
    %132 = tpu.matmul %120, %122, %cst_58 {dimension_numbers = #tpu.dot_dimension_numbers<[1], [0], [0], [1], [0, 0, 1, 1], [], []>} : vector<64x16xf32>, vector<16x16xf32>, vector<64x16xf32> -> vector<64x16xf32>
    %c11 = arith.constant 11 : index
    %c0_59 = arith.constant 0 : index
    %133 = vector.load %arg4[%c11, %c0_59] : memref<33x16xf32, #tpu.memory_space<vmem>>, vector<1x16xf32>
    %134 = vector.broadcast %133 : vector<1x16xf32> to vector<64x16xf32>
    %135 = arith.addf %132, %134 : vector<64x16xf32>
    %136 = vector.shape_cast %135 : vector<64x16xf32> to vector<2x32x16xf32>
    %cst_60 = arith.constant dense<0.000000e+00> : vector<64x16xf32>
    %137 = tpu.matmul %120, %123, %cst_60 {dimension_numbers = #tpu.dot_dimension_numbers<[1], [0], [0], [1], [0, 0, 1, 1], [], []>} : vector<64x16xf32>, vector<16x16xf32>, vector<64x16xf32> -> vector<64x16xf32>
    %c12 = arith.constant 12 : index
    %c0_61 = arith.constant 0 : index
    %138 = vector.load %arg4[%c12, %c0_61] : memref<33x16xf32, #tpu.memory_space<vmem>>, vector<1x16xf32>
    %139 = vector.broadcast %138 : vector<1x16xf32> to vector<64x16xf32>
    %140 = arith.addf %137, %139 : vector<64x16xf32>
    %141 = vector.shape_cast %140 : vector<64x16xf32> to vector<2x32x16xf32>
    "tpu.trace_start"() <{level = 10 : i32, message = "bqd,bkd->bqk"}> : () -> ()
    %cst_62 = arith.constant dense<0.000000e+00> : vector<2x32x32xf32>
    %142 = tpu.matmul %131, %136, %cst_62 {dimension_numbers = #tpu.dot_dimension_numbers<[2], [2], [1], [1], [0, 0, 0, 1, 1, 1], [0], [0]>} : vector<2x32x16xf32>, vector<2x32x16xf32>, vector<2x32x32xf32> -> vector<2x32x32xf32>
    "tpu.trace_stop"() : () -> ()
    %cst_63 = arith.constant dense<0xFF800000> : vector<2x32xf32>
    %143 = vector.multi_reduction <maximumf>, %142, %cst_63 [2] : vector<2x32x32xf32> to vector<2x32xf32>
    %144 = vector.shape_cast %143 : vector<2x32xf32> to vector<2x32x1xf32>
    %145 = vector.broadcast %144 : vector<2x32x1xf32> to vector<2x32x32xf32>
    %146 = arith.subf %142, %145 : vector<2x32x32xf32>
    %147 = math.exp %146 : vector<2x32x32xf32>
    %cst_64 = arith.constant dense<0.000000e+00> : vector<2x32xf32>
    %148 = vector.multi_reduction <add>, %147, %cst_64 [2] : vector<2x32x32xf32> to vector<2x32xf32>
    %149 = vector.shape_cast %148 : vector<2x32xf32> to vector<2x32x1xf32>
    %150 = vector.broadcast %149 : vector<2x32x1xf32> to vector<2x32x32xf32>
    %151 = arith.divf %147, %150 : vector<2x32x32xf32>
    "tpu.trace_start"() <{level = 10 : i32, message = "bqk,bkd->bqd"}> : () -> ()
    %cst_65 = arith.constant dense<0.000000e+00> : vector<2x32x16xf32>
    %152 = tpu.matmul %151, %141, %cst_65 {dimension_numbers = #tpu.dot_dimension_numbers<[2], [1], [1], [2], [0, 0, 0, 1, 1, 2], [0], [0]>} : vector<2x32x32xf32>, vector<2x32x16xf32>, vector<2x32x16xf32> -> vector<2x32x16xf32>
    "tpu.trace_stop"() : () -> ()
    %153 = vector.shape_cast %152 : vector<2x32x16xf32> to vector<64x16xf32>
    %cst_66 = arith.constant dense<0.000000e+00> : vector<64x16xf32>
    %154 = tpu.matmul %153, %124, %cst_66 {dimension_numbers = #tpu.dot_dimension_numbers<[1], [0], [0], [1], [0, 0, 1, 1], [], []>} : vector<64x16xf32>, vector<16x16xf32>, vector<64x16xf32> -> vector<64x16xf32>
    %c13 = arith.constant 13 : index
    %c0_67 = arith.constant 0 : index
    %155 = vector.load %arg4[%c13, %c0_67] : memref<33x16xf32, #tpu.memory_space<vmem>>, vector<1x16xf32>
    %156 = vector.broadcast %155 : vector<1x16xf32> to vector<64x16xf32>
    %157 = arith.addf %154, %156 : vector<64x16xf32>
    %158 = arith.addf %120, %157 : vector<64x16xf32>
    %c16_68 = arith.constant 16 : index
    %c0_69 = arith.constant 0 : index
    %159 = vector.load %arg4[%c16_68, %c0_69] : memref<33x16xf32, #tpu.memory_space<vmem>>, vector<1x16xf32>
    %c17 = arith.constant 17 : index
    %c0_70 = arith.constant 0 : index
    %160 = vector.load %arg4[%c17, %c0_70] : memref<33x16xf32, #tpu.memory_space<vmem>>, vector<1x16xf32>
    %cst_71 = arith.constant dense<0.000000e+00> : vector<64xf32>
    %161 = vector.multi_reduction <add>, %158, %cst_71 [1] : vector<64x16xf32> to vector<64xf32>
    %162 = vector.shape_cast %161 : vector<64xf32> to vector<64x1xf32>
    %cst_72 = arith.constant 1.600000e+01 : f32
    %163 = vector.broadcast %cst_72 : f32 to vector<64x1xf32>
    %164 = arith.divf %162, %163 : vector<64x1xf32>
    %165 = vector.broadcast %164 : vector<64x1xf32> to vector<64x16xf32>
    %166 = arith.subf %158, %165 : vector<64x16xf32>
    %167 = arith.mulf %166, %166 : vector<64x16xf32>
    %cst_73 = arith.constant dense<0.000000e+00> : vector<64xf32>
    %168 = vector.multi_reduction <add>, %167, %cst_73 [1] : vector<64x16xf32> to vector<64xf32>
    %169 = vector.shape_cast %168 : vector<64xf32> to vector<64x1xf32>
    %cst_74 = arith.constant 1.600000e+01 : f32
    %170 = vector.broadcast %cst_74 : f32 to vector<64x1xf32>
    %171 = arith.divf %169, %170 : vector<64x1xf32>
    %172 = vector.broadcast %164 : vector<64x1xf32> to vector<64x16xf32>
    %173 = arith.subf %158, %172 : vector<64x16xf32>
    %cst_75 = arith.constant 9.99999974E-6 : f32
    %174 = vector.broadcast %cst_75 : f32 to vector<64x1xf32>
    %175 = arith.addf %171, %174 : vector<64x1xf32>
    %176 = math.rsqrt %175 : vector<64x1xf32>
    %177 = vector.broadcast %176 : vector<64x1xf32> to vector<64x16xf32>
    %178 = arith.mulf %173, %177 : vector<64x16xf32>
    %179 = vector.broadcast %159 : vector<1x16xf32> to vector<64x16xf32>
    %180 = arith.mulf %178, %179 : vector<64x16xf32>
    %181 = vector.broadcast %160 : vector<1x16xf32> to vector<64x16xf32>
    %182 = arith.addf %180, %181 : vector<64x16xf32>
    %cst_76 = arith.constant dense<0.000000e+00> : vector<64x16xf32>
    %183 = tpu.matmul %182, %125, %cst_76 {dimension_numbers = #tpu.dot_dimension_numbers<[1], [0], [0], [1], [0, 0, 1, 1], [], []>} : vector<64x16xf32>, vector<16x16xf32>, vector<64x16xf32> -> vector<64x16xf32>
    %c14 = arith.constant 14 : index
    %c0_77 = arith.constant 0 : index
    %184 = vector.load %arg4[%c14, %c0_77] : memref<33x16xf32, #tpu.memory_space<vmem>>, vector<1x16xf32>
    %185 = vector.broadcast %184 : vector<1x16xf32> to vector<64x16xf32>
    %186 = arith.addf %183, %185 : vector<64x16xf32>
    %cst_78 = arith.constant 0.000000e+00 : f32
    %187 = vector.broadcast %cst_78 : f32 to vector<64x16xf32>
    %188 = arith.maximumf %186, %187 : vector<64x16xf32>
    %cst_79 = arith.constant dense<0.000000e+00> : vector<64x16xf32>
    %189 = tpu.matmul %188, %126, %cst_79 {dimension_numbers = #tpu.dot_dimension_numbers<[1], [0], [0], [1], [0, 0, 1, 1], [], []>} : vector<64x16xf32>, vector<16x16xf32>, vector<64x16xf32> -> vector<64x16xf32>
    %c15 = arith.constant 15 : index
    %c0_80 = arith.constant 0 : index
    %190 = vector.load %arg4[%c15, %c0_80] : memref<33x16xf32, #tpu.memory_space<vmem>>, vector<1x16xf32>
    %191 = vector.broadcast %190 : vector<1x16xf32> to vector<64x16xf32>
    %192 = arith.addf %189, %191 : vector<64x16xf32>
    %193 = arith.addf %182, %192 : vector<64x16xf32>
    %c18 = arith.constant 18 : index
    %c0_81 = arith.constant 0 : index
    %194 = vector.load %arg4[%c18, %c0_81] : memref<33x16xf32, #tpu.memory_space<vmem>>, vector<1x16xf32>
    %c19 = arith.constant 19 : index
    %c0_82 = arith.constant 0 : index
    %195 = vector.load %arg4[%c19, %c0_82] : memref<33x16xf32, #tpu.memory_space<vmem>>, vector<1x16xf32>
    %cst_83 = arith.constant dense<0.000000e+00> : vector<64xf32>
    %196 = vector.multi_reduction <add>, %193, %cst_83 [1] : vector<64x16xf32> to vector<64xf32>
    %197 = vector.shape_cast %196 : vector<64xf32> to vector<64x1xf32>
    %cst_84 = arith.constant 1.600000e+01 : f32
    %198 = vector.broadcast %cst_84 : f32 to vector<64x1xf32>
    %199 = arith.divf %197, %198 : vector<64x1xf32>
    %200 = vector.broadcast %199 : vector<64x1xf32> to vector<64x16xf32>
    %201 = arith.subf %193, %200 : vector<64x16xf32>
    %202 = arith.mulf %201, %201 : vector<64x16xf32>
    %cst_85 = arith.constant dense<0.000000e+00> : vector<64xf32>
    %203 = vector.multi_reduction <add>, %202, %cst_85 [1] : vector<64x16xf32> to vector<64xf32>
    %204 = vector.shape_cast %203 : vector<64xf32> to vector<64x1xf32>
    %cst_86 = arith.constant 1.600000e+01 : f32
    %205 = vector.broadcast %cst_86 : f32 to vector<64x1xf32>
    %206 = arith.divf %204, %205 : vector<64x1xf32>
    %207 = vector.broadcast %199 : vector<64x1xf32> to vector<64x16xf32>
    %208 = arith.subf %193, %207 : vector<64x16xf32>
    %cst_87 = arith.constant 9.99999974E-6 : f32
    %209 = vector.broadcast %cst_87 : f32 to vector<64x1xf32>
    %210 = arith.addf %206, %209 : vector<64x1xf32>
    %211 = math.rsqrt %210 : vector<64x1xf32>
    %212 = vector.broadcast %211 : vector<64x1xf32> to vector<64x16xf32>
    %213 = arith.mulf %208, %212 : vector<64x16xf32>
    %214 = vector.broadcast %194 : vector<1x16xf32> to vector<64x16xf32>
    %215 = arith.mulf %213, %214 : vector<64x16xf32>
    %216 = vector.broadcast %195 : vector<1x16xf32> to vector<64x16xf32>
    %217 = arith.addf %215, %216 : vector<64x16xf32>
    %c192 = arith.constant 192 : index
    %c0_88 = arith.constant 0 : index
    %218 = vector.load %arg3[%c192, %c0_88] : memref<288x16xf32, #tpu.memory_space<vmem>>, vector<16x16xf32>
    %c208 = arith.constant 208 : index
    %c0_89 = arith.constant 0 : index
    %219 = vector.load %arg3[%c208, %c0_89] : memref<288x16xf32, #tpu.memory_space<vmem>>, vector<16x16xf32>
    %c224 = arith.constant 224 : index
    %c0_90 = arith.constant 0 : index
    %220 = vector.load %arg3[%c224, %c0_90] : memref<288x16xf32, #tpu.memory_space<vmem>>, vector<16x16xf32>
    %c240 = arith.constant 240 : index
    %c0_91 = arith.constant 0 : index
    %221 = vector.load %arg3[%c240, %c0_91] : memref<288x16xf32, #tpu.memory_space<vmem>>, vector<16x16xf32>
    %c256 = arith.constant 256 : index
    %c0_92 = arith.constant 0 : index
    %222 = vector.load %arg3[%c256, %c0_92] : memref<288x16xf32, #tpu.memory_space<vmem>>, vector<16x16xf32>
    %c272 = arith.constant 272 : index
    %c0_93 = arith.constant 0 : index
    %223 = vector.load %arg3[%c272, %c0_93] : memref<288x16xf32, #tpu.memory_space<vmem>>, vector<16x16xf32>
    %cst_94 = arith.constant dense<0.000000e+00> : vector<64x16xf32>
    %224 = tpu.matmul %217, %218, %cst_94 {dimension_numbers = #tpu.dot_dimension_numbers<[1], [0], [0], [1], [0, 0, 1, 1], [], []>} : vector<64x16xf32>, vector<16x16xf32>, vector<64x16xf32> -> vector<64x16xf32>
    %c20 = arith.constant 20 : index
    %c0_95 = arith.constant 0 : index
    %225 = vector.load %arg4[%c20, %c0_95] : memref<33x16xf32, #tpu.memory_space<vmem>>, vector<1x16xf32>
    %226 = vector.broadcast %225 : vector<1x16xf32> to vector<64x16xf32>
    %227 = arith.addf %224, %226 : vector<64x16xf32>
    %228 = vector.shape_cast %227 : vector<64x16xf32> to vector<2x32x16xf32>
    %cst_96 = arith.constant dense<0.000000e+00> : vector<64x16xf32>
    %229 = tpu.matmul %217, %219, %cst_96 {dimension_numbers = #tpu.dot_dimension_numbers<[1], [0], [0], [1], [0, 0, 1, 1], [], []>} : vector<64x16xf32>, vector<16x16xf32>, vector<64x16xf32> -> vector<64x16xf32>
    %c21 = arith.constant 21 : index
    %c0_97 = arith.constant 0 : index
    %230 = vector.load %arg4[%c21, %c0_97] : memref<33x16xf32, #tpu.memory_space<vmem>>, vector<1x16xf32>
    %231 = vector.broadcast %230 : vector<1x16xf32> to vector<64x16xf32>
    %232 = arith.addf %229, %231 : vector<64x16xf32>
    %233 = vector.shape_cast %232 : vector<64x16xf32> to vector<2x32x16xf32>
    %cst_98 = arith.constant dense<0.000000e+00> : vector<64x16xf32>
    %234 = tpu.matmul %217, %220, %cst_98 {dimension_numbers = #tpu.dot_dimension_numbers<[1], [0], [0], [1], [0, 0, 1, 1], [], []>} : vector<64x16xf32>, vector<16x16xf32>, vector<64x16xf32> -> vector<64x16xf32>
    %c22 = arith.constant 22 : index
    %c0_99 = arith.constant 0 : index
    %235 = vector.load %arg4[%c22, %c0_99] : memref<33x16xf32, #tpu.memory_space<vmem>>, vector<1x16xf32>
    %236 = vector.broadcast %235 : vector<1x16xf32> to vector<64x16xf32>
    %237 = arith.addf %234, %236 : vector<64x16xf32>
    %238 = vector.shape_cast %237 : vector<64x16xf32> to vector<2x32x16xf32>
    "tpu.trace_start"() <{level = 10 : i32, message = "bqd,bkd->bqk"}> : () -> ()
    %cst_100 = arith.constant dense<0.000000e+00> : vector<2x32x32xf32>
    %239 = tpu.matmul %228, %233, %cst_100 {dimension_numbers = #tpu.dot_dimension_numbers<[2], [2], [1], [1], [0, 0, 0, 1, 1, 1], [0], [0]>} : vector<2x32x16xf32>, vector<2x32x16xf32>, vector<2x32x32xf32> -> vector<2x32x32xf32>
    "tpu.trace_stop"() : () -> ()
    %cst_101 = arith.constant dense<0xFF800000> : vector<2x32xf32>
    %240 = vector.multi_reduction <maximumf>, %239, %cst_101 [2] : vector<2x32x32xf32> to vector<2x32xf32>
    %241 = vector.shape_cast %240 : vector<2x32xf32> to vector<2x32x1xf32>
    %242 = vector.broadcast %241 : vector<2x32x1xf32> to vector<2x32x32xf32>
    %243 = arith.subf %239, %242 : vector<2x32x32xf32>
    %244 = math.exp %243 : vector<2x32x32xf32>
    %cst_102 = arith.constant dense<0.000000e+00> : vector<2x32xf32>
    %245 = vector.multi_reduction <add>, %244, %cst_102 [2] : vector<2x32x32xf32> to vector<2x32xf32>
    %246 = vector.shape_cast %245 : vector<2x32xf32> to vector<2x32x1xf32>
    %247 = vector.broadcast %246 : vector<2x32x1xf32> to vector<2x32x32xf32>
    %248 = arith.divf %244, %247 : vector<2x32x32xf32>
    "tpu.trace_start"() <{level = 10 : i32, message = "bqk,bkd->bqd"}> : () -> ()
    %cst_103 = arith.constant dense<0.000000e+00> : vector<2x32x16xf32>
    %249 = tpu.matmul %248, %238, %cst_103 {dimension_numbers = #tpu.dot_dimension_numbers<[2], [1], [1], [2], [0, 0, 0, 1, 1, 2], [0], [0]>} : vector<2x32x32xf32>, vector<2x32x16xf32>, vector<2x32x16xf32> -> vector<2x32x16xf32>
    "tpu.trace_stop"() : () -> ()
    %250 = vector.shape_cast %249 : vector<2x32x16xf32> to vector<64x16xf32>
    %cst_104 = arith.constant dense<0.000000e+00> : vector<64x16xf32>
    %251 = tpu.matmul %250, %221, %cst_104 {dimension_numbers = #tpu.dot_dimension_numbers<[1], [0], [0], [1], [0, 0, 1, 1], [], []>} : vector<64x16xf32>, vector<16x16xf32>, vector<64x16xf32> -> vector<64x16xf32>
    %c23 = arith.constant 23 : index
    %c0_105 = arith.constant 0 : index
    %252 = vector.load %arg4[%c23, %c0_105] : memref<33x16xf32, #tpu.memory_space<vmem>>, vector<1x16xf32>
    %253 = vector.broadcast %252 : vector<1x16xf32> to vector<64x16xf32>
    %254 = arith.addf %251, %253 : vector<64x16xf32>
    %255 = arith.addf %217, %254 : vector<64x16xf32>
    %c26 = arith.constant 26 : index
    %c0_106 = arith.constant 0 : index
    %256 = vector.load %arg4[%c26, %c0_106] : memref<33x16xf32, #tpu.memory_space<vmem>>, vector<1x16xf32>
    %c27 = arith.constant 27 : index
    %c0_107 = arith.constant 0 : index
    %257 = vector.load %arg4[%c27, %c0_107] : memref<33x16xf32, #tpu.memory_space<vmem>>, vector<1x16xf32>
    %cst_108 = arith.constant dense<0.000000e+00> : vector<64xf32>
    %258 = vector.multi_reduction <add>, %255, %cst_108 [1] : vector<64x16xf32> to vector<64xf32>
    %259 = vector.shape_cast %258 : vector<64xf32> to vector<64x1xf32>
    %cst_109 = arith.constant 1.600000e+01 : f32
    %260 = vector.broadcast %cst_109 : f32 to vector<64x1xf32>
    %261 = arith.divf %259, %260 : vector<64x1xf32>
    %262 = vector.broadcast %261 : vector<64x1xf32> to vector<64x16xf32>
    %263 = arith.subf %255, %262 : vector<64x16xf32>
    %264 = arith.mulf %263, %263 : vector<64x16xf32>
    %cst_110 = arith.constant dense<0.000000e+00> : vector<64xf32>
    %265 = vector.multi_reduction <add>, %264, %cst_110 [1] : vector<64x16xf32> to vector<64xf32>
    %266 = vector.shape_cast %265 : vector<64xf32> to vector<64x1xf32>
    %cst_111 = arith.constant 1.600000e+01 : f32
    %267 = vector.broadcast %cst_111 : f32 to vector<64x1xf32>
    %268 = arith.divf %266, %267 : vector<64x1xf32>
    %269 = vector.broadcast %261 : vector<64x1xf32> to vector<64x16xf32>
    %270 = arith.subf %255, %269 : vector<64x16xf32>
    %cst_112 = arith.constant 9.99999974E-6 : f32
    %271 = vector.broadcast %cst_112 : f32 to vector<64x1xf32>
    %272 = arith.addf %268, %271 : vector<64x1xf32>
    %273 = math.rsqrt %272 : vector<64x1xf32>
    %274 = vector.broadcast %273 : vector<64x1xf32> to vector<64x16xf32>
    %275 = arith.mulf %270, %274 : vector<64x16xf32>
    %276 = vector.broadcast %256 : vector<1x16xf32> to vector<64x16xf32>
    %277 = arith.mulf %275, %276 : vector<64x16xf32>
    %278 = vector.broadcast %257 : vector<1x16xf32> to vector<64x16xf32>
    %279 = arith.addf %277, %278 : vector<64x16xf32>
    %cst_113 = arith.constant dense<0.000000e+00> : vector<64x16xf32>
    %280 = tpu.matmul %279, %222, %cst_113 {dimension_numbers = #tpu.dot_dimension_numbers<[1], [0], [0], [1], [0, 0, 1, 1], [], []>} : vector<64x16xf32>, vector<16x16xf32>, vector<64x16xf32> -> vector<64x16xf32>
    %c24 = arith.constant 24 : index
    %c0_114 = arith.constant 0 : index
    %281 = vector.load %arg4[%c24, %c0_114] : memref<33x16xf32, #tpu.memory_space<vmem>>, vector<1x16xf32>
    %282 = vector.broadcast %281 : vector<1x16xf32> to vector<64x16xf32>
    %283 = arith.addf %280, %282 : vector<64x16xf32>
    %cst_115 = arith.constant 0.000000e+00 : f32
    %284 = vector.broadcast %cst_115 : f32 to vector<64x16xf32>
    %285 = arith.maximumf %283, %284 : vector<64x16xf32>
    %cst_116 = arith.constant dense<0.000000e+00> : vector<64x16xf32>
    %286 = tpu.matmul %285, %223, %cst_116 {dimension_numbers = #tpu.dot_dimension_numbers<[1], [0], [0], [1], [0, 0, 1, 1], [], []>} : vector<64x16xf32>, vector<16x16xf32>, vector<64x16xf32> -> vector<64x16xf32>
    %c25 = arith.constant 25 : index
    %c0_117 = arith.constant 0 : index
    %287 = vector.load %arg4[%c25, %c0_117] : memref<33x16xf32, #tpu.memory_space<vmem>>, vector<1x16xf32>
    %288 = vector.broadcast %287 : vector<1x16xf32> to vector<64x16xf32>
    %289 = arith.addf %286, %288 : vector<64x16xf32>
    %290 = arith.addf %279, %289 : vector<64x16xf32>
    %c28 = arith.constant 28 : index
    %c0_118 = arith.constant 0 : index
    %291 = vector.load %arg4[%c28, %c0_118] : memref<33x16xf32, #tpu.memory_space<vmem>>, vector<1x16xf32>
    %c29 = arith.constant 29 : index
    %c0_119 = arith.constant 0 : index
    %292 = vector.load %arg4[%c29, %c0_119] : memref<33x16xf32, #tpu.memory_space<vmem>>, vector<1x16xf32>
    %cst_120 = arith.constant dense<0.000000e+00> : vector<64xf32>
    %293 = vector.multi_reduction <add>, %290, %cst_120 [1] : vector<64x16xf32> to vector<64xf32>
    %294 = vector.shape_cast %293 : vector<64xf32> to vector<64x1xf32>
    %cst_121 = arith.constant 1.600000e+01 : f32
    %295 = vector.broadcast %cst_121 : f32 to vector<64x1xf32>
    %296 = arith.divf %294, %295 : vector<64x1xf32>
    %297 = vector.broadcast %296 : vector<64x1xf32> to vector<64x16xf32>
    %298 = arith.subf %290, %297 : vector<64x16xf32>
    %299 = arith.mulf %298, %298 : vector<64x16xf32>
    %cst_122 = arith.constant dense<0.000000e+00> : vector<64xf32>
    %300 = vector.multi_reduction <add>, %299, %cst_122 [1] : vector<64x16xf32> to vector<64xf32>
    %301 = vector.shape_cast %300 : vector<64xf32> to vector<64x1xf32>
    %cst_123 = arith.constant 1.600000e+01 : f32
    %302 = vector.broadcast %cst_123 : f32 to vector<64x1xf32>
    %303 = arith.divf %301, %302 : vector<64x1xf32>
    %304 = vector.broadcast %296 : vector<64x1xf32> to vector<64x16xf32>
    %305 = arith.subf %290, %304 : vector<64x16xf32>
    %cst_124 = arith.constant 9.99999974E-6 : f32
    %306 = vector.broadcast %cst_124 : f32 to vector<64x1xf32>
    %307 = arith.addf %303, %306 : vector<64x1xf32>
    %308 = math.rsqrt %307 : vector<64x1xf32>
    %309 = vector.broadcast %308 : vector<64x1xf32> to vector<64x16xf32>
    %310 = arith.mulf %305, %309 : vector<64x16xf32>
    %311 = vector.broadcast %291 : vector<1x16xf32> to vector<64x16xf32>
    %312 = arith.mulf %310, %311 : vector<64x16xf32>
    %313 = vector.broadcast %292 : vector<1x16xf32> to vector<64x16xf32>
    %314 = arith.addf %312, %313 : vector<64x16xf32>
    %315 = vector.shape_cast %314 : vector<64x16xf32> to vector<2x32x16xf32>
    %c32_125 = arith.constant 32 : index
    %c0_126 = arith.constant 0 : index
    %316 = vector.load %arg5[%c32_125, %c0_126] : memref<64x16xf32, #tpu.memory_space<vmem>>, vector<32x16xf32>
    %317 = vector.shape_cast %316 : vector<32x16xf32> to vector<1x32x16xf32>
    %318 = vector.broadcast %317 : vector<1x32x16xf32> to vector<2x32x16xf32>
    %319 = arith.mulf %315, %318 : vector<2x32x16xf32>
    %cst_127 = arith.constant dense<0.000000e+00> : vector<2x32xf32>
    %320 = vector.multi_reduction <add>, %319, %cst_127 [2] : vector<2x32x16xf32> to vector<2x32xf32>
    %cst_128 = arith.constant dense<0.000000e+00> : vector<2xf32>
    %321 = vector.multi_reduction <add>, %320, %cst_128 [1] : vector<2x32xf32> to vector<2xf32>
    %322 = vector.shape_cast %321 : vector<2xf32> to vector<1x2xf32>
    %c32_129 = arith.constant 32 : index
    %c0_130 = arith.constant 0 : index
    %323 = vector.load %arg4[%c32_129, %c0_130] : memref<33x16xf32, #tpu.memory_space<vmem>>, vector<1x1xf32>
    %324 = vector.broadcast %323 : vector<1x1xf32> to vector<1x2xf32>
    %325 = arith.addf %322, %324 : vector<1x2xf32>
    %326 = vector.shape_cast %325 : vector<1x2xf32> to vector<1x1x2xf32>
    %327 = arith.index_cast %1 : i32 to index
    %c0_131 = arith.constant 0 : index
    %c0_132 = arith.constant 0 : index
    %328 = vector.load %arg6[%327, %c0_131, %c0_132] : memref<1x1x2xf32, #tpu.memory_space<vmem>>, vector<1x1x2xf32>
    tpu.vector_store %arg6[%327, %c0_131, %c0_132], %326 {strides = array<i32>} : memref<1x1x2xf32, #tpu.memory_space<vmem>>, vector<1x1x2xf32>,
    %c1_i32_133 = arith.constant 1 : i32
    return
  }
  func.func @transform_0(%arg0: i32) -> (i32, i32, i32) {
    %c0_i32 = arith.constant 0 : i32
    %c0_i32_0 = arith.constant 0 : i32
    %c0_i32_1 = arith.constant 0 : i32
    return %arg0, %c0_i32, %c0_i32_0 : i32, i32, i32
  }
  func.func @transform_1(%arg0: i32) -> (i32, i32) {
    %c0_i32 = arith.constant 0 : i32
    %c0_i32_0 = arith.constant 0 : i32
    %c0_i32_1 = arith.constant 0 : i32
    return %c0_i32, %c0_i32_0 : i32, i32
  }
  func.func @transform_2(%arg0: i32) -> (i32, i32) {
    %c0_i32 = arith.constant 0 : i32
    %c0_i32_0 = arith.constant 0 : i32
    %c0_i32_1 = arith.constant 0 : i32
    return %c0_i32, %c0_i32_0 : i32, i32
  }
  func.func @transform_3(%arg0: i32) -> (i32, i32) {
    %c0_i32 = arith.constant 0 : i32
    %c0_i32_0 = arith.constant 0 : i32
    %c0_i32_1 = arith.constant 0 : i32
    return %c0_i32, %c0_i32_0 : i32, i32
  }
  func.func @transform_4(%arg0: i32) -> (i32, i32) {
    %c0_i32 = arith.constant 0 : i32
    %c0_i32_0 = arith.constant 0 : i32
    %c0_i32_1 = arith.constant 0 : i32
    return %c0_i32, %c0_i32_0 : i32, i32
  }
  func.func @transform_5(%arg0: i32) -> (i32, i32, i32) {
    %c0_i32 = arith.constant 0 : i32
    %c0_i32_0 = arith.constant 0 : i32
    %c0_i32_1 = arith.constant 0 : i32
    return %arg0, %c0_i32, %c0_i32_0 : i32, i32, i32
  }
}

</mosaic_0001>

<llo_original>
// kernel: transformer_forward.1
$region0: #{transformer_forward.1}
  #allocation0 [shape = 'u32[]', space=smem, size = 0x4, offset = 0x4, fixed_abs, tag = 'smem constant byte address 0x4 - core index']
  #allocation1 [shape = 'u32[144,128]{1,0:T(1,128)}', space=vmem, size = 0x12000, scoped, tag = 'internal scratch']
  %s0 = inlined_call_operand.vmem [shape: f32[2,16,64], index: 0, kind: input, shape index: {}]
  %s1 = inlined_call_operand.vmem [shape: f32[128,16], index: 1, kind: input, shape index: {}]
  %s2 = inlined_call_operand.vmem [shape: f32[288,16], index: 2, kind: input, shape index: {}]
  %s3 = inlined_call_operand.vmem [shape: f32[33,16], index: 3, kind: input, shape index: {}]
  %s4 = inlined_call_operand.vmem [shape: f32[64,16], index: 4, kind: input, shape index: {}]
  %s5 = inlined_call_operand.hbm [shape: f32[1,1,2], index: 5, kind: output, shape index: {}]
  %s6 = sld [smem:[#allocation0]]
  $region30: #{transformer_forward.1} parent=0
    _
  %s8 = ssub.s32 1, %s6
  %s9 = scalar_select 0, %s8, %s6
  $region1: #{transformer_forward.1} parent=0
    #allocation2 [shape = 'u8[512]{0}', space=vmem, size = 0x400, scoped, tag = 'output window, operand 0, single buffered']
    #allocation3 [shape = 's32[1]{0}', space=sflag, size = 0x4, scoped, tag = 'scoped memory for transformer_forward.1']
    %10 = vsyncpa [#allocation3], 0
    // Predicated region
    $region2: #{transformer_forward.1} parent=1 // pred_check
      _
    $region3: #{transformer_forward.1} parent=1 // pred_check_branch
      %12 = sbr.rel (0) target = $region5
    $region4: #{transformer_forward.1} parent=1 // pred_region
      _
    $region5: #{transformer_forward.1} parent=1 // pred_fallthru
      _
    // Predicated region
    $region6: #{transformer_forward.1} parent=1 // pred_check
      _
    $region7: #{transformer_forward.1} parent=1 // pred_check_branch
      %14 = sbr.rel (0) target = $region9
    $region8: #{transformer_forward.1} parent=1 // pred_region
      _
    $region9: #{transformer_forward.1} parent=1 // pred_fallthru
      _
    // Predicated region
    $region10: #{transformer_forward.1} parent=1 // pred_check
      _
    $region11: #{transformer_forward.1} parent=1 // pred_check_branch
      %16 = sbr.rel (0) target = $region13
    $region12: #{transformer_forward.1} parent=1 // pred_region
      _
    $region13: #{transformer_forward.1} parent=1 // pred_fallthru
      _
    // Predicated region
    $region14: #{transformer_forward.1} parent=1 // pred_check
      _
    $region15: #{transformer_forward.1} parent=1 // pred_check_branch
      %18 = sbr.rel (0) target = $region17
    $region16: #{transformer_forward.1} parent=1 // pred_region
      _
    $region17: #{transformer_forward.1} parent=1 // pred_fallthru
      _
    // Predicated region
    $region18: #{transformer_forward.1} parent=1 // pred_check
      _
    $region19: #{transformer_forward.1} parent=1 // pred_check_branch
      %20 = sbr.rel (0) target = $region21
    $region20: #{transformer_forward.1} parent=1 // pred_region
      _
    $region21: #{transformer_forward.1} parent=1 // pred_fallthru
      _
    %v21 = vld [vmem:[%s0] sm:$0xff]
    %v22 = vld [vmem:[%s0 + $0x8] sm:$0xff]
    %v23 = vld [vmem:[%s0 + $0x10] sm:$0xff]
    %v24 = vld [vmem:[%s0 + $0x18] sm:$0xff]
    %v25 = vld [vmem:[%s1] sm:$0xff]
    %v26 = vld [vmem:[%s1 + $0x8] sm:$0xff]
    %v27 = vld [vmem:[%s1 + $0x10] sm:$0xff]
    %v28 = vld [vmem:[%s1 + $0x18] sm:$0xff]
    %v29 = vld [vmem:[%s1 + $0x20] sm:$0xff]
    %v30 = vld [vmem:[%s1 + $0x28] sm:$0xff]
    %v31 = vld [vmem:[%s1 + $0x30] sm:$0xff]
    %v32 = vld [vmem:[%s1 + $0x38] sm:$0xff]
    %v33 = vld [vmem:[%s3 + $0x1e] sm:$0x1]
    %v34 = vlaneseq
    %v35 = vshrl.u32 %v34, 7
    %v36 = vsub.s32 0, %v35
    %v37 = vrot.slane %v33, %v36
    %vm38 = vcmask 523264
    %v40 = vsel %vm38, %v21, 0
    %v43 = vsel %vm38, %v22, 0
    %v46 = vsel %vm38, %v23, 0
    %v49 = vsel %vm38, %v24, 0
    %51 = vmatprep.subr.mxu0 0.0
    %52 = vmatpush1.msra.mxu0 %v25
    %53 = vmatprep.subr.mxu0 0.0
    %54 = vmatpush1.msra.mxu0 %v26
    %55 = vmatprep.subr.mxu0 0.0
    %56 = vmatpush1.msra.mxu0 %v27
    %57 = vmatprep.subr.mxu0 0.0
    %58 = vmatpush1.msra.mxu0 %v28
    %59 = vmatprep.subr.mxu0 0.0
    %60 = vmatpush1.msra.mxu0 %v29
    %61 = vmatprep.subr.mxu0 0.0
    %62 = vmatpush1.msra.mxu0 %v30
    %63 = vmatprep.subr.mxu0 0.0
    %64 = vmatpush1.msra.mxu0 %v31
    %65 = vmatprep.subr.mxu0 0.0
    %66 = vmatpush1.msra.mxu0 %v32
    %67 = vmatprep.subr.mxu0 0.0
    %68 = vmatpush1.msra.mxu0 0.0
    %69 = vmatprep.subr.mxu0 0.0
    %70 = vmatpush1.msra.mxu0 0.0
    %71 = vmatprep.subr.mxu0 0.0
    %72 = vmatpush1.msra.mxu0 0.0
    %73 = vmatprep.subr.mxu0 0.0
    %74 = vmatpush1.msra.mxu0 0.0
    %75 = vmatprep.subr.mxu0 0.0
    %76 = vmatpush1.msra.mxu0 0.0
    %77 = vmatprep.subr.mxu0 0.0
    %78 = vmatpush1.msra.mxu0 0.0
    %79 = vmatprep.subr.mxu0 0.0
    %80 = vmatpush1.msra.mxu0 0.0
    %81 = vmatprep.subr.mxu0 0.0
    %82 = vmatpush1.msra.mxu0 0.0
    %83 = vmatprep.subr.mxu0 0.0
    %84 = vmatpush1.msra.mxu0 0.0
    %85 = vmatprep.subr.mxu0 0.0
    %86 = vmatpush1.msra.mxu0 0.0
    %87 = vmatprep.subr.mxu0 0.0
    %88 = vmatpush1.msra.mxu0 0.0
    %89 = vmatprep.subr.mxu0 0.0
    %90 = vmatpush1.msra.mxu0 0.0
    %91 = vmatprep.subr.mxu0 0.0
    %92 = vmatpush1.msra.mxu0 0.0
    %93 = vmatprep.subr.mxu0 0.0
    %94 = vmatpush1.msra.mxu0 0.0
    %95 = vmatprep.subr.mxu0 0.0
    %96 = vmatpush1.msra.mxu0 0.0
    %97 = vmatprep.subr.mxu0 0.0
    %98 = vmatpush1.msra.mxu0 0.0
    %99 = vmatprep.subr.mxu0 0.0
    %100 = vmatpush1.msra.mxu0 0.0
    %101 = vmatprep.subr.mxu0 0.0
    %102 = vmatpush1.msra.mxu0 0.0
    %103 = vmatprep.subr.mxu0 0.0
    %104 = vmatpush1.msra.mxu0 0.0
    %105 = vmatprep.subr.mxu0 0.0
    %106 = vmatpush1.msra.mxu0 0.0
    %107 = vmatprep.subr.mxu0 0.0
    %108 = vmatpush1.msra.mxu0 0.0
    %109 = vmatprep.subr.mxu0 0.0
    %110 = vmatpush1.msra.mxu0 0.0
    %111 = vmatprep.subr.mxu0 0.0
    %112 = vmatpush1.msra.mxu0 0.0
    %113 = vmatprep.subr.mxu0 0.0
    %114 = vmatpush1.msra.mxu0 0.0
    %115 = vmatprep.mubr.f32.mxu0 0.0
    %116 = vmatmul.mubr.f32.gmra.mrb[0].mxu0 %v40
    %v117 = vpop.f32.mrb[0].mxu0
    %v118 = vadd.f32 %v37, %v117
    %v119 = vpop.f32.mrb[0].mxu0
    %120 = vmatprep.mubr.f32.mxu0 0.0
    %121 = vmatmul.mubr.f32.gmra.mrb[0].mxu0 %v43
    %v122 = vpop.f32.mrb[0].mxu0
    %v123 = vadd.f32 %v37, %v122
    %v124 = vpop.f32.mrb[0].mxu0
    %125 = vmatprep.mubr.f32.mxu0 0.0
    %126 = vmatmul.mubr.f32.gmra.mrb[0].mxu0 %v46
    %v127 = vpop.f32.mrb[0].mxu0
    %v128 = vadd.f32 %v37, %v127
    %v129 = vpop.f32.mrb[0].mxu0
    %130 = vmatprep.mubr.f32.mxu0 0.0
    %131 = vmatmul.mubr.f32.gmra.mrb[0].mxu0 %v49
    %v132 = vpop.f32.mrb[0].mxu0
    %v133 = vadd.f32 %v37, %v132
    %v134 = vpop.f32.mrb[0].mxu0
    %135 = vdwg.mxu0
    %v136 = vld [vmem:[%s1 + $0x40] sm:$0xff]
    %v137 = vld [vmem:[%s1 + $0x48] sm:$0xff]
    %v138 = vld [vmem:[%s1 + $0x50] sm:$0xff]
    %v139 = vld [vmem:[%s1 + $0x58] sm:$0xff]
    %v140 = vld [vmem:[%s1 + $0x60] sm:$0xff]
    %v141 = vld [vmem:[%s1 + $0x68] sm:$0xff]
    %v142 = vld [vmem:[%s1 + $0x70] sm:$0xff]
    %v143 = vld [vmem:[%s1 + $0x78] sm:$0xff]
    %v144 = vld [vmem:[%s3 + $0x1f] sm:$0x1]
    %v145 = vlaneseq
    %v146 = vshrl.u32 %v145, 7
    %v147 = vsub.s32 0, %v146
    %v148 = vrot.slane %v144, %v147
    %149 = vmatprep.subr.mxu0 0.0
    %150 = vmatpush1.msra.mxu0 %v136
    %151 = vmatprep.subr.mxu0 0.0
    %152 = vmatpush1.msra.mxu0 %v137
    %153 = vmatprep.subr.mxu0 0.0
    %154 = vmatpush1.msra.mxu0 %v138
    %155 = vmatprep.subr.mxu0 0.0
    %156 = vmatpush1.msra.mxu0 %v139
    %157 = vmatprep.subr.mxu0 0.0
    %158 = vmatpush1.msra.mxu0 %v140
    %159 = vmatprep.subr.mxu0 0.0
    %160 = vmatpush1.msra.mxu0 %v141
    %161 = vmatprep.subr.mxu0 0.0
    %162 = vmatpush1.msra.mxu0 %v142
    %163 = vmatprep.subr.mxu0 0.0
    %164 = vmatpush1.msra.mxu0 %v143
    %165 = vmatprep.subr.mxu0 0.0
    %166 = vmatpush1.msra.mxu0 0.0
    %167 = vmatprep.subr.mxu0 0.0
    %168 = vmatpush1.msra.mxu0 0.0
    %169 = vmatprep.subr.mxu0 0.0
    %170 = vmatpush1.msra.mxu0 0.0
    %171 = vmatprep.subr.mxu0 0.0
    %172 = vmatpush1.msra.mxu0 0.0
    %173 = vmatprep.subr.mxu0 0.0
    %174 = vmatpush1.msra.mxu0 0.0
    %175 = vmatprep.subr.mxu0 0.0
    %176 = vmatpush1.msra.mxu0 0.0
    %177 = vmatprep.subr.mxu0 0.0
    %178 = vmatpush1.msra.mxu0 0.0
    %179 = vmatprep.subr.mxu0 0.0
    %180 = vmatpush1.msra.mxu0 0.0
    %181 = vmatprep.subr.mxu0 0.0
    %182 = vmatpush1.msra.mxu0 0.0
    %183 = vmatprep.subr.mxu0 0.0
    %184 = vmatpush1.msra.mxu0 0.0
    %185 = vmatprep.subr.mxu0 0.0
    %186 = vmatpush1.msra.mxu0 0.0
    %187 = vmatprep.subr.mxu0 0.0
    %188 = vmatpush1.msra.mxu0 0.0
    %189 = vmatprep.subr.mxu0 0.0
    %190 = vmatpush1.msra.mxu0 0.0
    %191 = vmatprep.subr.mxu0 0.0
    %192 = vmatpush1.msra.mxu0 0.0
    %193 = vmatprep.subr.mxu0 0.0
    %194 = vmatpush1.msra.mxu0 0.0
    %195 = vmatprep.subr.mxu0 0.0
    %196 = vmatpush1.msra.mxu0 0.0
    %197 = vmatprep.subr.mxu0 0.0
    %198 = vmatpush1.msra.mxu0 0.0
    %199 = vmatprep.subr.mxu0 0.0
    %200 = vmatpush1.msra.mxu0 0.0
    %201 = vmatprep.subr.mxu0 0.0
    %202 = vmatpush1.msra.mxu0 0.0
    %203 = vmatprep.subr.mxu0 0.0
    %204 = vmatpush1.msra.mxu0 0.0
    %205 = vmatprep.subr.mxu0 0.0
    %206 = vmatpush1.msra.mxu0 0.0
    %207 = vmatprep.subr.mxu0 0.0
    %208 = vmatpush1.msra.mxu0 0.0
    %209 = vmatprep.subr.mxu0 0.0
    %210 = vmatpush1.msra.mxu0 0.0
    %211 = vmatprep.subr.mxu0 0.0
    %212 = vmatpush1.msra.mxu0 0.0
    %213 = vmatprep.mubr.f32.mxu0 0.0
    %214 = vmatmul.mubr.f32.gmra.mrb[0].mxu0 %v40
    %v215 = vpop.f32.mrb[0].mxu0
    %v216 = vadd.f32 %v148, %v215
    %v217 = vpop.f32.mrb[0].mxu0
    %218 = vmatprep.mubr.f32.mxu0 0.0
    %219 = vmatmul.mubr.f32.gmra.mrb[0].mxu0 %v43
    %v220 = vpop.f32.mrb[0].mxu0
    %v221 = vadd.f32 %v148, %v220
    %v222 = vpop.f32.mrb[0].mxu0
    %223 = vmatprep.mubr.f32.mxu0 0.0
    %224 = vmatmul.mubr.f32.gmra.mrb[0].mxu0 %v46
    %v225 = vpop.f32.mrb[0].mxu0
    %v226 = vadd.f32 %v148, %v225
    %v227 = vpop.f32.mrb[0].mxu0
    %228 = vmatprep.mubr.f32.mxu0 0.0
    %229 = vmatmul.mubr.f32.gmra.mrb[0].mxu0 %v49
    %v230 = vpop.f32.mrb[0].mxu0
    %v231 = vadd.f32 %v148, %v230
    %v232 = vpop.f32.mrb[0].mxu0
    %233 = vdwg.mxu0
    %v234 = vld [vmem:[%s4] sm:$0xff]
    %v235 = vld [vmem:[%s4 + $0x8] sm:$0xff]
    %v236 = vld [vmem:[%s4 + $0x10] sm:$0xff]
    %v237 = vld [vmem:[%s4 + $0x18] sm:$0xff]
    %v238 = vadd.f32 %v118, %v234
    %v239 = vadd.f32 %v123, %v235
    %v240 = vadd.f32 %v216, %v236
    %v241 = vadd.f32 %v221, %v237
    %v242 = vadd.f32 %v128, %v234
    %v243 = vadd.f32 %v133, %v235
    %v244 = vadd.f32 %v226, %v236
    %v245 = vadd.f32 %v231, %v237
    %v246 = vld [vmem:[%s2] sm:$0xff]
    %v247 = vld [vmem:[%s2 + $0x8] sm:$0xff]
    %v248 = vld [vmem:[%s2 + $0x10] sm:$0xff]
    %v249 = vld [vmem:[%s2 + $0x18] sm:$0xff]
    %v250 = vld [vmem:[%s2 + $0x20] sm:$0xff]
    %v251 = vld [vmem:[%s2 + $0x28] sm:$0xff]
    %v252 = vld [vmem:[%s2 + $0x30] sm:$0xff]
    %v253 = vld [vmem:[%s2 + $0x38] sm:$0xff]
    %v254 = vld [vmem:[%s2 + $0x40] sm:$0xff]
    %v255 = vld [vmem:[%s2 + $0x48] sm:$0xff]
    %v256 = vld [vmem:[%s2 + $0x50] sm:$0xff]
    %v257 = vld [vmem:[%s2 + $0x58] sm:$0xff]
    %v258 = vld [vmem:[%s3] sm:$0x1]
    %v259 = vlaneseq
    %v260 = vshrl.u32 %v259, 7
    %v261 = vsub.s32 0, %v260
    %v262 = vrot.slane %v258, %v261
    %vm263 = vcmask 130048
    %v265 = vsel %vm263, %v238, 0
    %v268 = vsel %vm263, %v239, 0
    %v271 = vsel %vm263, %v240, 0
    %v274 = vsel %vm263, %v241, 0
    %v277 = vsel %vm263, %v242, 0
    %v280 = vsel %vm263, %v243, 0
    %v283 = vsel %vm263, %v244, 0
    %v286 = vsel %vm263, %v245, 0
    %288 = vmatprep.subr.mxu0 0.0
    %289 = vmatpush1.msra.mxu0 %v246
    %290 = vmatprep.subr.mxu0 0.0
    %291 = vmatpush1.msra.mxu0 %v247
    %292 = vmatprep.subr.mxu0 0.0
    %293 = vmatpush1.msra.mxu0 0.0
    %294 = vmatprep.subr.mxu0 0.0
    %295 = vmatpush1.msra.mxu0 0.0
    %296 = vmatprep.subr.mxu0 0.0
    %297 = vmatpush1.msra.mxu0 0.0
    %298 = vmatprep.subr.mxu0 0.0
    %299 = vmatpush1.msra.mxu0 0.0
    %300 = vmatprep.subr.mxu0 0.0
    %301 = vmatpush1.msra.mxu0 0.0
    %302 = vmatprep.subr.mxu0 0.0
    %303 = vmatpush1.msra.mxu0 0.0
    %304 = vmatprep.subr.mxu0 0.0
    %305 = vmatpush1.msra.mxu0 0.0
    %306 = vmatprep.subr.mxu0 0.0
    %307 = vmatpush1.msra.mxu0 0.0
    %308 = vmatprep.subr.mxu0 0.0
    %309 = vmatpush1.msra.mxu0 0.0
    %310 = vmatprep.subr.mxu0 0.0
    %311 = vmatpush1.msra.mxu0 0.0
    %312 = vmatprep.subr.mxu0 0.0
    %313 = vmatpush1.msra.mxu0 0.0
    %314 = vmatprep.subr.mxu0 0.0
    %315 = vmatpush1.msra.mxu0 0.0
    %316 = vmatprep.subr.mxu0 0.0
    %317 = vmatpush1.msra.mxu0 0.0
    %318 = vmatprep.subr.mxu0 0.0
    %319 = vmatpush1.msra.mxu0 0.0
    %320 = vmatprep.subr.mxu0 0.0
    %321 = vmatpush1.msra.mxu0 0.0
    %322 = vmatprep.subr.mxu0 0.0
    %323 = vmatpush1.msra.mxu0 0.0
    %324 = vmatprep.subr.mxu0 0.0
    %325 = vmatpush1.msra.mxu0 0.0
    %326 = vmatprep.subr.mxu0 0.0
    %327 = vmatpush1.msra.mxu0 0.0
    %328 = vmatprep.subr.mxu0 0.0
    %329 = vmatpush1.msra.mxu0 0.0
    %330 = vmatprep.subr.mxu0 0.0
    %331 = vmatpush1.msra.mxu0 0.0
    %332 = vmatprep.subr.mxu0 0.0
    %333 = vmatpush1.msra.mxu0 0.0
    %334 = vmatprep.subr.mxu0 0.0
    %335 = vmatpush1.msra.mxu0 0.0
    %336 = vmatprep.subr.mxu0 0.0
    %337 = vmatpush1.msra.mxu0 0.0
    %338 = vmatprep.subr.mxu0 0.0
    %339 = vmatpush1.msra.mxu0 0.0
    %340 = vmatprep.subr.mxu0 0.0
    %341 = vmatpush1.msra.mxu0 0.0
    %342 = vmatprep.subr.mxu0 0.0
    %343 = vmatpush1.msra.mxu0 0.0
    %344 = vmatprep.subr.mxu0 0.0
    %345 = vmatpush1.msra.mxu0 0.0
    %346 = vmatprep.subr.mxu0 0.0
    %347 = vmatpush1.msra.mxu0 0.0
    %348 = vmatprep.subr.mxu0 0.0
    %349 = vmatpush1.msra.mxu0 0.0
    %350 = vmatprep.subr.mxu0 0.0
    %351 = vmatpush1.msra.mxu0 0.0
    %352 = vmatprep.mubr.f32.mxu0 0.0
    %353 = vmatmul.mubr.f32.gmra.mrb[0].mxu0 %v265
    %v354 = vpop.f32.mrb[0].mxu0
    %v355 = vadd.f32 %v262, %v354
    %v356 = vpop.f32.mrb[0].mxu0
    %357 = vmatprep.mubr.f32.mxu0 0.0
    %358 = vmatmul.mubr.f32.gmra.mrb[0].mxu0 %v268
    %v359 = vpop.f32.mrb[0].mxu0
    %v360 = vadd.f32 %v262, %v359
    %v361 = vpop.f32.mrb[0].mxu0
    %362 = vmatprep.mubr.f32.mxu0 0.0
    %363 = vmatmul.mubr.f32.gmra.mrb[0].mxu0 %v271
    %v364 = vpop.f32.mrb[0].mxu0
    %v365 = vadd.f32 %v262, %v364
    %v366 = vpop.f32.mrb[0].mxu0
    %367 = vmatprep.mubr.f32.mxu0 0.0
    %368 = vmatmul.mubr.f32.gmra.mrb[0].mxu0 %v274
    %v369 = vpop.f32.mrb[0].mxu0
    %v370 = vadd.f32 %v262, %v369
    %v371 = vpop.f32.mrb[0].mxu0
    %372 = vmatprep.mubr.f32.mxu0 0.0
    %373 = vmatmul.mubr.f32.gmra.mrb[0].mxu0 %v277
    %v374 = vpop.f32.mrb[0].mxu0
    %v375 = vadd.f32 %v262, %v374
    %v376 = vpop.f32.mrb[0].mxu0
    %377 = vmatprep.mubr.f32.mxu0 0.0
    %378 = vmatmul.mubr.f32.gmra.mrb[0].mxu0 %v280
    %v379 = vpop.f32.mrb[0].mxu0
    %v380 = vadd.f32 %v262, %v379
    %v381 = vpop.f32.mrb[0].mxu0
    %382 = vmatprep.mubr.f32.mxu0 0.0
    %383 = vmatmul.mubr.f32.gmra.mrb[0].mxu0 %v283
    %v384 = vpop.f32.mrb[0].mxu0
    %v385 = vadd.f32 %v262, %v384
    %v386 = vpop.f32.mrb[0].mxu0
    %387 = vmatprep.mubr.f32.mxu0 0.0
    %388 = vmatmul.mubr.f32.gmra.mrb[0].mxu0 %v286
    %v389 = vpop.f32.mrb[0].mxu0
    %v390 = vadd.f32 %v262, %v389
    %v391 = vpop.f32.mrb[0].mxu0
    %392 = vdwg.mxu0
    %v393 = vld [vmem:[%s3 + $0x1] sm:$0x1]
    %v394 = vlaneseq
    %v395 = vshrl.u32 %v394, 7
    %v396 = vsub.s32 0, %v395
    %v397 = vrot.slane %v393, %v396
    %398 = vmatprep.subr.mxu0 0.0
    %399 = vmatpush1.msra.mxu0 %v248
    %400 = vmatprep.subr.mxu0 0.0
    %401 = vmatpush1.msra.mxu0 %v249
    %402 = vmatprep.subr.mxu0 0.0
    %403 = vmatpush1.msra.mxu0 0.0
    %404 = vmatprep.subr.mxu0 0.0
    %405 = vmatpush1.msra.mxu0 0.0
    %406 = vmatprep.subr.mxu0 0.0
    %407 = vmatpush1.msra.mxu0 0.0
    %408 = vmatprep.subr.mxu0 0.0
    %409 = vmatpush1.msra.mxu0 0.0
    %410 = vmatprep.subr.mxu0 0.0
    %411 = vmatpush1.msra.mxu0 0.0
    %412 = vmatprep.subr.mxu0 0.0
    %413 = vmatpush1.msra.mxu0 0.0
    %414 = vmatprep.subr.mxu0 0.0
    %415 = vmatpush1.msra.mxu0 0.0
    %416 = vmatprep.subr.mxu0 0.0
    %417 = vmatpush1.msra.mxu0 0.0
    %418 = vmatprep.subr.mxu0 0.0
    %419 = vmatpush1.msra.mxu0 0.0
    %420 = vmatprep.subr.mxu0 0.0
    %421 = vmatpush1.msra.mxu0 0.0
    %422 = vmatprep.subr.mxu0 0.0
    %423 = vmatpush1.msra.mxu0 0.0
    %424 = vmatprep.subr.mxu0 0.0
    %425 = vmatpush1.msra.mxu0 0.0
    %426 = vmatprep.subr.mxu0 0.0
    %427 = vmatpush1.msra.mxu0 0.0
    %428 = vmatprep.subr.mxu0 0.0
    %429 = vmatpush1.msra.mxu0 0.0
    %430 = vmatprep.subr.mxu0 0.0
    %431 = vmatpush1.msra.mxu0 0.0
    %432 = vmatprep.subr.mxu0 0.0
    %433 = vmatpush1.msra.mxu0 0.0
    %434 = vmatprep.subr.mxu0 0.0
    %435 = vmatpush1.msra.mxu0 0.0
    %436 = vmatprep.subr.mxu0 0.0
    %437 = vmatpush1.msra.mxu0 0.0
    %438 = vmatprep.subr.mxu0 0.0
    %439 = vmatpush1.msra.mxu0 0.0
    %440 = vmatprep.subr.mxu0 0.0
    %441 = vmatpush1.msra.mxu0 0.0
    %442 = vmatprep.subr.mxu0 0.0
    %443 = vmatpush1.msra.mxu0 0.0
    %444 = vmatprep.subr.mxu0 0.0
    %445 = vmatpush1.msra.mxu0 0.0
    %446 = vmatprep.subr.mxu0 0.0
    %447 = vmatpush1.msra.mxu0 0.0
    %448 = vmatprep.subr.mxu0 0.0
    %449 = vmatpush1.msra.mxu0 0.0
    %450 = vmatprep.subr.mxu0 0.0
    %451 = vmatpush1.msra.mxu0 0.0
    %452 = vmatprep.subr.mxu0 0.0
    %453 = vmatpush1.msra.mxu0 0.0
    %454 = vmatprep.subr.mxu0 0.0
    %455 = vmatpush1.msra.mxu0 0.0
    %456 = vmatprep.subr.mxu0 0.0
    %457 = vmatpush1.msra.mxu0 0.0
    %458 = vmatprep.subr.mxu0 0.0
    %459 = vmatpush1.msra.mxu0 0.0
    %460 = vmatprep.subr.mxu0 0.0
    %461 = vmatpush1.msra.mxu0 0.0
    %462 = vmatprep.mubr.f32.mxu0 0.0
    %463 = vmatmul.mubr.f32.gmra.mrb[0].mxu0 %v265
    %v464 = vpop.f32.mrb[0].mxu0
    %v465 = vadd.f32 %v397, %v464
    %v466 = vpop.f32.mrb[0].mxu0
    %467 = vmatprep.mubr.f32.mxu0 0.0
    %468 = vmatmul.mubr.f32.gmra.mrb[0].mxu0 %v268
    %v469 = vpop.f32.mrb[0].mxu0
    %v470 = vadd.f32 %v397, %v469
    %v471 = vpop.f32.mrb[0].mxu0
    %472 = vmatprep.mubr.f32.mxu0 0.0
    %473 = vmatmul.mubr.f32.gmra.mrb[0].mxu0 %v271
    %v474 = vpop.f32.mrb[0].mxu0
    %v475 = vadd.f32 %v397, %v474
    %v476 = vpop.f32.mrb[0].mxu0
    %477 = vmatprep.mubr.f32.mxu0 0.0
    %478 = vmatmul.mubr.f32.gmra.mrb[0].mxu0 %v274
    %v479 = vpop.f32.mrb[0].mxu0
    %v480 = vadd.f32 %v397, %v479
    %v481 = vpop.f32.mrb[0].mxu0
    %482 = vmatprep.mubr.f32.mxu0 0.0
    %483 = vmatmul.mubr.f32.gmra.mrb[0].mxu0 %v277
    %v484 = vpop.f32.mrb[0].mxu0
    %v485 = vadd.f32 %v397, %v484
    %v486 = vpop.f32.mrb[0].mxu0
    %487 = vmatprep.mubr.f32.mxu0 0.0
    %488 = vmatmul.mubr.f32.gmra.mrb[0].mxu0 %v280
    %v489 = vpop.f32.mrb[0].mxu0
    %v490 = vadd.f32 %v397, %v489
    %v491 = vpop.f32.mrb[0].mxu0
    %492 = vmatprep.mubr.f32.mxu0 0.0
    %493 = vmatmul.mubr.f32.gmra.mrb[0].mxu0 %v283
    %v494 = vpop.f32.mrb[0].mxu0
    %v495 = vadd.f32 %v397, %v494
    %v496 = vpop.f32.mrb[0].mxu0
    %497 = vmatprep.mubr.f32.mxu0 0.0
    %498 = vmatmul.mubr.f32.gmra.mrb[0].mxu0 %v286
    %v499 = vpop.f32.mrb[0].mxu0
    %v500 = vadd.f32 %v397, %v499
    %v501 = vpop.f32.mrb[0].mxu0
    %502 = vdwg.mxu0
    %v503 = vld [vmem:[%s3 + $0x2] sm:$0x1]
    %v504 = vlaneseq
    %v505 = vshrl.u32 %v504, 7
    %v506 = vsub.s32 0, %v505
    %v507 = vrot.slane %v503, %v506
    %508 = vmatprep.subr.mxu0 0.0
    %509 = vmatpush1.msra.mxu0 %v250
    %510 = vmatprep.subr.mxu0 0.0
    %511 = vmatpush1.msra.mxu0 %v251
    %512 = vmatprep.subr.mxu0 0.0
    %513 = vmatpush1.msra.mxu0 0.0
    %514 = vmatprep.subr.mxu0 0.0
    %515 = vmatpush1.msra.mxu0 0.0
    %516 = vmatprep.subr.mxu0 0.0
    %517 = vmatpush1.msra.mxu0 0.0
    %518 = vmatprep.subr.mxu0 0.0
    %519 = vmatpush1.msra.mxu0 0.0
    %520 = vmatprep.subr.mxu0 0.0
    %521 = vmatpush1.msra.mxu0 0.0
    %522 = vmatprep.subr.mxu0 0.0
    %523 = vmatpush1.msra.mxu0 0.0
    %524 = vmatprep.subr.mxu0 0.0
    %525 = vmatpush1.msra.mxu0 0.0
    %526 = vmatprep.subr.mxu0 0.0
    %527 = vmatpush1.msra.mxu0 0.0
    %528 = vmatprep.subr.mxu0 0.0
    %529 = vmatpush1.msra.mxu0 0.0
    %530 = vmatprep.subr.mxu0 0.0
    %531 = vmatpush1.msra.mxu0 0.0
    %532 = vmatprep.subr.mxu0 0.0
    %533 = vmatpush1.msra.mxu0 0.0
    %534 = vmatprep.subr.mxu0 0.0
    %535 = vmatpush1.msra.mxu0 0.0
    %536 = vmatprep.subr.mxu0 0.0
    %537 = vmatpush1.msra.mxu0 0.0
    %538 = vmatprep.subr.mxu0 0.0
    %539 = vmatpush1.msra.mxu0 0.0
    %540 = vmatprep.subr.mxu0 0.0
    %541 = vmatpush1.msra.mxu0 0.0
    %542 = vmatprep.subr.mxu0 0.0
    %543 = vmatpush1.msra.mxu0 0.0
    %544 = vmatprep.subr.mxu0 0.0
    %545 = vmatpush1.msra.mxu0 0.0
    %546 = vmatprep.subr.mxu0 0.0
    %547 = vmatpush1.msra.mxu0 0.0
    %548 = vmatprep.subr.mxu0 0.0
    %549 = vmatpush1.msra.mxu0 0.0
    %550 = vmatprep.subr.mxu0 0.0
    %551 = vmatpush1.msra.mxu0 0.0
    %552 = vmatprep.subr.mxu0 0.0
    %553 = vmatpush1.msra.mxu0 0.0
    %554 = vmatprep.subr.mxu0 0.0
    %555 = vmatpush1.msra.mxu0 0.0
    %556 = vmatprep.subr.mxu0 0.0
    %557 = vmatpush1.msra.mxu0 0.0
    %558 = vmatprep.subr.mxu0 0.0
    %559 = vmatpush1.msra.mxu0 0.0
    %560 = vmatprep.subr.mxu0 0.0
    %561 = vmatpush1.msra.mxu0 0.0
    %562 = vmatprep.subr.mxu0 0.0
    %563 = vmatpush1.msra.mxu0 0.0
    %564 = vmatprep.subr.mxu0 0.0
    %565 = vmatpush1.msra.mxu0 0.0
    %566 = vmatprep.subr.mxu0 0.0
    %567 = vmatpush1.msra.mxu0 0.0
    %568 = vmatprep.subr.mxu0 0.0
    %569 = vmatpush1.msra.mxu0 0.0
    %570 = vmatprep.subr.mxu0 0.0
    %571 = vmatpush1.msra.mxu0 0.0
    %572 = vmatprep.mubr.f32.mxu0 0.0
    %573 = vmatmul.mubr.f32.gmra.mrb[0].mxu0 %v265
    %v574 = vpop.f32.mrb[0].mxu0
    %v575 = vadd.f32 %v507, %v574
    %v576 = vpop.f32.mrb[0].mxu0
    %577 = vmatprep.mubr.f32.mxu0 0.0
    %578 = vmatmul.mubr.f32.gmra.mrb[0].mxu0 %v268
    %v579 = vpop.f32.mrb[0].mxu0
    %v580 = vadd.f32 %v507, %v579
    %v581 = vpop.f32.mrb[0].mxu0
    %582 = vmatprep.mubr.f32.mxu0 0.0
    %583 = vmatmul.mubr.f32.gmra.mrb[0].mxu0 %v271
    %v584 = vpop.f32.mrb[0].mxu0
    %v585 = vadd.f32 %v507, %v584
    %v586 = vpop.f32.mrb[0].mxu0
    %587 = vmatprep.mubr.f32.mxu0 0.0
    %588 = vmatmul.mubr.f32.gmra.mrb[0].mxu0 %v274
    %v589 = vpop.f32.mrb[0].mxu0
    %v590 = vadd.f32 %v507, %v589
    %v591 = vpop.f32.mrb[0].mxu0
    %592 = vmatprep.mubr.f32.mxu0 0.0
    %593 = vmatmul.mubr.f32.gmra.mrb[0].mxu0 %v277
    %v594 = vpop.f32.mrb[0].mxu0
    %v595 = vadd.f32 %v507, %v594
    %v596 = vpop.f32.mrb[0].mxu0
    %597 = vmatprep.mubr.f32.mxu0 0.0
    %598 = vmatmul.mubr.f32.gmra.mrb[0].mxu0 %v280
    %v599 = vpop.f32.mrb[0].mxu0
    %v600 = vadd.f32 %v507, %v599
    %v601 = vpop.f32.mrb[0].mxu0
    %602 = vmatprep.mubr.f32.mxu0 0.0
    %603 = vmatmul.mubr.f32.gmra.mrb[0].mxu0 %v283
    %v604 = vpop.f32.mrb[0].mxu0
    %v605 = vadd.f32 %v507, %v604
    %v606 = vpop.f32.mrb[0].mxu0
    %607 = vmatprep.mubr.f32.mxu0 0.0
    %608 = vmatmul.mubr.f32.gmra.mrb[0].mxu0 %v286
    %v609 = vpop.f32.mrb[0].mxu0
    %v610 = vadd.f32 %v507, %v609
    %v611 = vpop.f32.mrb[0].mxu0
    %612 = vdwg.mxu0
    %v614 = vsel %vm263, %v355, 0
    %v617 = vsel %vm263, %v360, 0
    %v620 = vsel %vm263, %v365, 0
    %v623 = vsel %vm263, %v370, 0
    %v626 = vsel %vm263, %v465, 0
    %v629 = vsel %vm263, %v470, 0
    %v632 = vsel %vm263, %v475, 0
    %v635 = vsel %vm263, %v480, 0
    %637 = vmatprep.subr.mxu0 0.0
    %638 = vmatpush1.xpose.msra.mxu0 %v626
    %639 = vmatprep.subr.mxu0 0.0
    %640 = vmatpush1.xpose.msra.mxu0 %v629
    %641 = vmatprep.subr.mxu0 0.0
    %642 = vmatpush1.xpose.msra.mxu0 %v632
    %643 = vmatprep.subr.mxu0 0.0
    %644 = vmatpush1.xpose.msra.mxu0 %v635
    %645 = vmatprep.subr.mxu0 0.0
    %646 = vmatpush1.xpose.msra.mxu0 0.0
    %647 = vmatprep.subr.mxu0 0.0
    %648 = vmatpush1.xpose.msra.mxu0 0.0
    %649 = vmatprep.subr.mxu0 0.0
    %650 = vmatpush1.xpose.msra.mxu0 0.0
    %651 = vmatprep.subr.mxu0 0.0
    %652 = vmatpush1.xpose.msra.mxu0 0.0
    %653 = vmatprep.subr.mxu0 0.0
    %654 = vmatpush1.xpose.msra.mxu0 0.0
    %655 = vmatprep.subr.mxu0 0.0
    %656 = vmatpush1.xpose.msra.mxu0 0.0
    %657 = vmatprep.subr.mxu0 0.0
    %658 = vmatpush1.xpose.msra.mxu0 0.0
    %659 = vmatprep.subr.mxu0 0.0
    %660 = vmatpush1.xpose.msra.mxu0 0.0
    %661 = vmatprep.subr.mxu0 0.0
    %662 = vmatpush1.xpose.msra.mxu0 0.0
    %663 = vmatprep.subr.mxu0 0.0
    %664 = vmatpush1.xpose.msra.mxu0 0.0
    %665 = vmatprep.subr.mxu0 0.0
    %666 = vmatpush1.xpose.msra.mxu0 0.0
    %667 = vmatprep.subr.mxu0 0.0
    %668 = vmatpush1.xpose.msra.mxu0 0.0
    %669 = vmatprep.subr.mxu0 0.0
    %670 = vmatpush1.xpose.msra.mxu0 0.0
    %671 = vmatprep.subr.mxu0 0.0
    %672 = vmatpush1.xpose.msra.mxu0 0.0
    %673 = vmatprep.subr.mxu0 0.0
    %674 = vmatpush1.xpose.msra.mxu0 0.0
    %675 = vmatprep.subr.mxu0 0.0
    %676 = vmatpush1.xpose.msra.mxu0 0.0
    %677 = vmatprep.subr.mxu0 0.0
    %678 = vmatpush1.xpose.msra.mxu0 0.0
    %679 = vmatprep.subr.mxu0 0.0
    %680 = vmatpush1.xpose.msra.mxu0 0.0
    %681 = vmatprep.subr.mxu0 0.0
    %682 = vmatpush1.xpose.msra.mxu0 0.0
    %683 = vmatprep.subr.mxu0 0.0
    %684 = vmatpush1.xpose.msra.mxu0 0.0
    %685 = vmatprep.subr.mxu0 0.0
    %686 = vmatpush1.xpose.msra.mxu0 0.0
    %687 = vmatprep.subr.mxu0 0.0
    %688 = vmatpush1.xpose.msra.mxu0 0.0
    %689 = vmatprep.subr.mxu0 0.0
    %690 = vmatpush1.xpose.msra.mxu0 0.0
    %691 = vmatprep.subr.mxu0 0.0
    %692 = vmatpush1.xpose.msra.mxu0 0.0
    %693 = vmatprep.subr.mxu0 0.0
    %694 = vmatpush1.xpose.msra.mxu0 0.0
    %695 = vmatprep.subr.mxu0 0.0
    %696 = vmatpush1.xpose.msra.mxu0 0.0
    %697 = vmatprep.subr.mxu0 0.0
    %698 = vmatpush1.xpose.msra.mxu0 0.0
    %699 = vmatprep.subr.mxu0 0.0
    %700 = vmatpush1.xpose.msra.mxu0 0.0
    %701 = vmatprep.mubr.f32.mxu0 0.0
    %702 = vmatmul.mubr.f32.gmra.mrb[0].mxu0 %v614
    %v703 = vpop.f32.mrb[0].mxu0
    %v704 = vadd.f32 0.0, %v703
    %v705 = vpop.f32.mrb[0].mxu0
    %706 = vmatprep.mubr.f32.mxu0 0.0
    %707 = vmatmul.mubr.f32.gmra.mrb[0].mxu0 %v617
    %v708 = vpop.f32.mrb[0].mxu0
    %v709 = vadd.f32 0.0, %v708
    %v710 = vpop.f32.mrb[0].mxu0
    %711 = vmatprep.mubr.f32.mxu0 0.0
    %712 = vmatmul.mubr.f32.gmra.mrb[0].mxu0 %v620
    %v713 = vpop.f32.mrb[0].mxu0
    %v714 = vadd.f32 0.0, %v713
    %v715 = vpop.f32.mrb[0].mxu0
    %716 = vmatprep.mubr.f32.mxu0 0.0
    %717 = vmatmul.mubr.f32.gmra.mrb[0].mxu0 %v623
    %v718 = vpop.f32.mrb[0].mxu0
    %v719 = vadd.f32 0.0, %v718
    %v720 = vpop.f32.mrb[0].mxu0
    %721 = vdwg.mxu0
    %v723 = vsel %vm263, %v375, 0
    %v726 = vsel %vm263, %v380, 0
    %v729 = vsel %vm263, %v385, 0
    %v732 = vsel %vm263, %v390, 0
    %v735 = vsel %vm263, %v485, 0
    %v738 = vsel %vm263, %v490, 0
    %v741 = vsel %vm263, %v495, 0
    %v744 = vsel %vm263, %v500, 0
    %746 = vmatprep.subr.mxu0 0.0
    %747 = vmatpush1.xpose.msra.mxu0 %v735
    %748 = vmatprep.subr.mxu0 0.0
    %749 = vmatpush1.xpose.msra.mxu0 %v738
    %750 = vmatprep.subr.mxu0 0.0
    %751 = vmatpush1.xpose.msra.mxu0 %v741
    %752 = vmatprep.subr.mxu0 0.0
    %753 = vmatpush1.xpose.msra.mxu0 %v744
    %754 = vmatprep.subr.mxu0 0.0
    %755 = vmatpush1.xpose.msra.mxu0 0.0
    %756 = vmatprep.subr.mxu0 0.0
    %757 = vmatpush1.xpose.msra.mxu0 0.0
    %758 = vmatprep.subr.mxu0 0.0
    %759 = vmatpush1.xpose.msra.mxu0 0.0
    %760 = vmatprep.subr.mxu0 0.0
    %761 = vmatpush1.xpose.msra.mxu0 0.0
    %762 = vmatprep.subr.mxu0 0.0
    %763 = vmatpush1.xpose.msra.mxu0 0.0
    %764 = vmatprep.subr.mxu0 0.0
    %765 = vmatpush1.xpose.msra.mxu0 0.0
    %766 = vmatprep.subr.mxu0 0.0
    %767 = vmatpush1.xpose.msra.mxu0 0.0
    %768 = vmatprep.subr.mxu0 0.0
    %769 = vmatpush1.xpose.msra.mxu0 0.0
    %770 = vmatprep.subr.mxu0 0.0
    %771 = vmatpush1.xpose.msra.mxu0 0.0
    %772 = vmatprep.subr.mxu0 0.0
    %773 = vmatpush1.xpose.msra.mxu0 0.0
    %774 = vmatprep.subr.mxu0 0.0
    %775 = vmatpush1.xpose.msra.mxu0 0.0
    %776 = vmatprep.subr.mxu0 0.0
    %777 = vmatpush1.xpose.msra.mxu0 0.0
    %778 = vmatprep.subr.mxu0 0.0
    %779 = vmatpush1.xpose.msra.mxu0 0.0
    %780 = vmatprep.subr.mxu0 0.0
    %781 = vmatpush1.xpose.msra.mxu0 0.0
    %782 = vmatprep.subr.mxu0 0.0
    %783 = vmatpush1.xpose.msra.mxu0 0.0
    %784 = vmatprep.subr.mxu0 0.0
    %785 = vmatpush1.xpose.msra.mxu0 0.0
    %786 = vmatprep.subr.mxu0 0.0
    %787 = vmatpush1.xpose.msra.mxu0 0.0
    %788 = vmatprep.subr.mxu0 0.0
    %789 = vmatpush1.xpose.msra.mxu0 0.0
    %790 = vmatprep.subr.mxu0 0.0
    %791 = vmatpush1.xpose.msra.mxu0 0.0
    %792 = vmatprep.subr.mxu0 0.0
    %793 = vmatpush1.xpose.msra.mxu0 0.0
    %794 = vmatprep.subr.mxu0 0.0
    %795 = vmatpush1.xpose.msra.mxu0 0.0
    %796 = vmatprep.subr.mxu0 0.0
    %797 = vmatpush1.xpose.msra.mxu0 0.0
    %798 = vmatprep.subr.mxu0 0.0
    %799 = vmatpush1.xpose.msra.mxu0 0.0
    %800 = vmatprep.subr.mxu0 0.0
    %801 = vmatpush1.xpose.msra.mxu0 0.0
    %802 = vmatprep.subr.mxu0 0.0
    %803 = vmatpush1.xpose.msra.mxu0 0.0
    %804 = vmatprep.subr.mxu0 0.0
    %805 = vmatpush1.xpose.msra.mxu0 0.0
    %806 = vmatprep.subr.mxu0 0.0
    %807 = vmatpush1.xpose.msra.mxu0 0.0
    %808 = vmatprep.subr.mxu0 0.0
    %809 = vmatpush1.xpose.msra.mxu0 0.0
    %810 = vmatprep.mubr.f32.mxu0 0.0
    %811 = vmatmul.mubr.f32.gmra.mrb[0].mxu0 %v723
    %v812 = vpop.f32.mrb[0].mxu0
    %v813 = vadd.f32 0.0, %v812
    %v814 = vpop.f32.mrb[0].mxu0
    %815 = vmatprep.mubr.f32.mxu0 0.0
    %816 = vmatmul.mubr.f32.gmra.mrb[0].mxu0 %v726
    %v817 = vpop.f32.mrb[0].mxu0
    %v818 = vadd.f32 0.0, %v817
    %v819 = vpop.f32.mrb[0].mxu0
    %820 = vmatprep.mubr.f32.mxu0 0.0
    %821 = vmatmul.mubr.f32.gmra.mrb[0].mxu0 %v729
    %v822 = vpop.f32.mrb[0].mxu0
    %v823 = vadd.f32 0.0, %v822
    %v824 = vpop.f32.mrb[0].mxu0
    %825 = vmatprep.mubr.f32.mxu0 0.0
    %826 = vmatmul.mubr.f32.gmra.mrb[0].mxu0 %v732
    %v827 = vpop.f32.mrb[0].mxu0
    %v828 = vadd.f32 0.0, %v827
    %v829 = vpop.f32.mrb[0].mxu0
    %830 = vdwg.mxu0
    %vm831 = vcmask 261120
    %v832 = vsel %vm831, %v704, -inf
    %833 = vmax.xlane.f32.xlu0 %v832
    %v834 = vpop.xlane.xlu0 %833
    %v835 = vsel %vm831, %v709, -inf
    %836 = vmax.xlane.f32.xlu0 %v835
    %v837 = vpop.xlane.xlu0 %836
    %v838 = vsel %vm831, %v714, -inf
    %839 = vmax.xlane.f32.xlu0 %v838
    %v840 = vpop.xlane.xlu0 %839
    %v841 = vsel %vm831, %v719, -inf
    %842 = vmax.xlane.f32.xlu0 %v841
    %v843 = vpop.xlane.xlu0 %842
    %v844 = vsel %vm831, %v813, -inf
    %845 = vmax.xlane.f32.xlu0 %v844
    %v846 = vpop.xlane.xlu0 %845
    %v847 = vsel %vm831, %v818, -inf
    %848 = vmax.xlane.f32.xlu0 %v847
    %v849 = vpop.xlane.xlu0 %848
    %v850 = vsel %vm831, %v823, -inf
    %851 = vmax.xlane.f32.xlu0 %v850
    %v852 = vpop.xlane.xlu0 %851
    %v853 = vsel %vm831, %v828, -inf
    %854 = vmax.xlane.f32.xlu0 %v853
    %v855 = vpop.xlane.xlu0 %854
    %v856 = vsub.f32 %v704, %v834
    %v857 = vsub.f32 %v709, %v837
    %v858 = vsub.f32 %v714, %v840
    %v859 = vsub.f32 %v719, %v843
    %v860 = vsub.f32 %v813, %v846
    %v861 = vsub.f32 %v818, %v849
    %v862 = vsub.f32 %v823, %v852
    %v863 = vsub.f32 %v828, %v855
    %v864 = vmul.f32 %v856, 1.442695
    %v865 = vpow.pop %v864
    %v866 = vmul.f32 %v857, 1.442695
    %v867 = vpow.pop %v866
    %v868 = vmul.f32 %v858, 1.442695
    %v869 = vpow.pop %v868
    %v870 = vmul.f32 %v859, 1.442695
    %v871 = vpow.pop %v870
    %v872 = vmul.f32 %v860, 1.442695
    %v873 = vpow.pop %v872
    %v874 = vmul.f32 %v861, 1.442695
    %v875 = vpow.pop %v874
    %v876 = vmul.f32 %v862, 1.442695
    %v877 = vpow.pop %v876
    %v878 = vmul.f32 %v863, 1.442695
    %v879 = vpow.pop %v878
    %v880 = vsel %vm831, %v865, 0.0
    %881 = vadd.xlane.f32.xlu0 %v880
    %v882 = vpop.xlane.xlu0 %881
    %v883 = vsel %vm831, %v867, 0.0
    %884 = vadd.xlane.f32.xlu0 %v883
    %v885 = vpop.xlane.xlu0 %884
    %v886 = vsel %vm831, %v869, 0.0
    %887 = vadd.xlane.f32.xlu0 %v886
    %v888 = vpop.xlane.xlu0 %887
    %v889 = vsel %vm831, %v871, 0.0
    %890 = vadd.xlane.f32.xlu0 %v889
    %v891 = vpop.xlane.xlu0 %890
    %v892 = vsel %vm831, %v873, 0.0
    %893 = vadd.xlane.f32.xlu0 %v892
    %v894 = vpop.xlane.xlu0 %893
    %v895 = vsel %vm831, %v875, 0.0
    %896 = vadd.xlane.f32.xlu0 %v895
    %v897 = vpop.xlane.xlu0 %896
    %v898 = vsel %vm831, %v877, 0.0
    %899 = vadd.xlane.f32.xlu0 %v898
    %v900 = vpop.xlane.xlu0 %899
    %v901 = vsel %vm831, %v879, 0.0
    %902 = vadd.xlane.f32.xlu0 %v901
    %v903 = vpop.xlane.xlu0 %902
    %v904 = vrcp.pop %v882
    %v905 = vmul.f32 %v865, %v904
    %v906 = vrcp.pop %v885
    %v907 = vmul.f32 %v867, %v906
    %v908 = vrcp.pop %v888
    %v909 = vmul.f32 %v869, %v908
    %v910 = vrcp.pop %v891
    %v911 = vmul.f32 %v871, %v910
    %v912 = vrcp.pop %v894
    %v913 = vmul.f32 %v873, %v912
    %v914 = vrcp.pop %v897
    %v915 = vmul.f32 %v875, %v914
    %v916 = vrcp.pop %v900
    %v917 = vmul.f32 %v877, %v916
    %v918 = vrcp.pop %v903
    %v919 = vmul.f32 %v879, %v918
    %v921 = vsel %vm831, %v905, 0
    %v924 = vsel %vm831, %v907, 0
    %v927 = vsel %vm831, %v909, 0
    %v930 = vsel %vm831, %v911, 0
    %932 = vmatprep.subr.mxu0 0.0
    %933 = vmatpush1.msra.mxu0 %v575
    %934 = vmatprep.subr.mxu0 0.0
    %935 = vmatpush1.msra.mxu0 %v580
    %936 = vmatprep.subr.mxu0 0.0
    %937 = vmatpush1.msra.mxu0 %v585
    %938 = vmatprep.subr.mxu0 0.0
    %939 = vmatpush1.msra.mxu0 %v590
    %940 = vmatprep.subr.mxu0 0.0
    %941 = vmatpush1.msra.mxu0 0.0
    %942 = vmatprep.subr.mxu0 0.0
    %943 = vmatpush1.msra.mxu0 0.0
    %944 = vmatprep.subr.mxu0 0.0
    %945 = vmatpush1.msra.mxu0 0.0
    %946 = vmatprep.subr.mxu0 0.0
    %947 = vmatpush1.msra.mxu0 0.0
    %948 = vmatprep.subr.mxu0 0.0
    %949 = vmatpush1.msra.mxu0 0.0
    %950 = vmatprep.subr.mxu0 0.0
    %951 = vmatpush1.msra.mxu0 0.0
    %952 = vmatprep.subr.mxu0 0.0
    %953 = vmatpush1.msra.mxu0 0.0
    %954 = vmatprep.subr.mxu0 0.0
    %955 = vmatpush1.msra.mxu0 0.0
    %956 = vmatprep.subr.mxu0 0.0
    %957 = vmatpush1.msra.mxu0 0.0
    %958 = vmatprep.subr.mxu0 0.0
    %959 = vmatpush1.msra.mxu0 0.0
    %960 = vmatprep.subr.mxu0 0.0
    %961 = vmatpush1.msra.mxu0 0.0
    %962 = vmatprep.subr.mxu0 0.0
    %963 = vmatpush1.msra.mxu0 0.0
    %964 = vmatprep.subr.mxu0 0.0
    %965 = vmatpush1.msra.mxu0 0.0
    %966 = vmatprep.subr.mxu0 0.0
    %967 = vmatpush1.msra.mxu0 0.0
    %968 = vmatprep.subr.mxu0 0.0
    %969 = vmatpush1.msra.mxu0 0.0
    %970 = vmatprep.subr.mxu0 0.0
    %971 = vmatpush1.msra.mxu0 0.0
    %972 = vmatprep.subr.mxu0 0.0
    %973 = vmatpush1.msra.mxu0 0.0
    %974 = vmatprep.subr.mxu0 0.0
    %975 = vmatpush1.msra.mxu0 0.0
    %976 = vmatprep.subr.mxu0 0.0
    %977 = vmatpush1.msra.mxu0 0.0
    %978 = vmatprep.subr.mxu0 0.0
    %979 = vmatpush1.msra.mxu0 0.0
    %980 = vmatprep.subr.mxu0 0.0
    %981 = vmatpush1.msra.mxu0 0.0
    %982 = vmatprep.subr.mxu0 0.0
    %983 = vmatpush1.msra.mxu0 0.0
    %984 = vmatprep.subr.mxu0 0.0
    %985 = vmatpush1.msra.mxu0 0.0
    %986 = vmatprep.subr.mxu0 0.0
    %987 = vmatpush1.msra.mxu0 0.0
    %988 = vmatprep.subr.mxu0 0.0
    %989 = vmatpush1.msra.mxu0 0.0
    %990 = vmatprep.subr.mxu0 0.0
    %991 = vmatpush1.msra.mxu0 0.0
    %992 = vmatprep.subr.mxu0 0.0
    %993 = vmatpush1.msra.mxu0 0.0
    %994 = vmatprep.subr.mxu0 0.0
    %995 = vmatpush1.msra.mxu0 0.0
    %996 = vmatprep.mubr.f32.mxu0 0.0
    %997 = vmatmul.mubr.f32.gmra.mrb[0].mxu0 %v921
    %v998 = vpop.f32.mrb[0].mxu0
    %v999 = vadd.f32 0.0, %v998
    %v1000 = vpop.f32.mrb[0].mxu0
    %1001 = vmatprep.mubr.f32.mxu0 0.0
    %1002 = vmatmul.mubr.f32.gmra.mrb[0].mxu0 %v924
    %v1003 = vpop.f32.mrb[0].mxu0
    %v1004 = vadd.f32 0.0, %v1003
    %v1005 = vpop.f32.mrb[0].mxu0
    %1006 = vmatprep.mubr.f32.mxu0 0.0
    %1007 = vmatmul.mubr.f32.gmra.mrb[0].mxu0 %v927
    %v1008 = vpop.f32.mrb[0].mxu0
    %v1009 = vadd.f32 0.0, %v1008
    %v1010 = vpop.f32.mrb[0].mxu0
    %1011 = vmatprep.mubr.f32.mxu0 0.0
    %1012 = vmatmul.mubr.f32.gmra.mrb[0].mxu0 %v930
    %v1013 = vpop.f32.mrb[0].mxu0
    %v1014 = vadd.f32 0.0, %v1013
    %v1015 = vpop.f32.mrb[0].mxu0
    %1016 = vdwg.mxu0
    %v1018 = vsel %vm831, %v913, 0
    %v1021 = vsel %vm831, %v915, 0
    %v1024 = vsel %vm831, %v917, 0
    %v1027 = vsel %vm831, %v919, 0
    %1029 = vmatprep.subr.mxu0 0.0
    %1030 = vmatpush1.msra.mxu0 %v595
    %1031 = vmatprep.subr.mxu0 0.0
    %1032 = vmatpush1.msra.mxu0 %v600
    %1033 = vmatprep.subr.mxu0 0.0
    %1034 = vmatpush1.msra.mxu0 %v605
    %1035 = vmatprep.subr.mxu0 0.0
    %1036 = vmatpush1.msra.mxu0 %v610
    %1037 = vmatprep.subr.mxu0 0.0
    %1038 = vmatpush1.msra.mxu0 0.0
    %1039 = vmatprep.subr.mxu0 0.0
    %1040 = vmatpush1.msra.mxu0 0.0
    %1041 = vmatprep.subr.mxu0 0.0
    %1042 = vmatpush1.msra.mxu0 0.0
    %1043 = vmatprep.subr.mxu0 0.0
    %1044 = vmatpush1.msra.mxu0 0.0
    %1045 = vmatprep.subr.mxu0 0.0
    %1046 = vmatpush1.msra.mxu0 0.0
    %1047 = vmatprep.subr.mxu0 0.0
    %1048 = vmatpush1.msra.mxu0 0.0
    %1049 = vmatprep.subr.mxu0 0.0
    %1050 = vmatpush1.msra.mxu0 0.0
    %1051 = vmatprep.subr.mxu0 0.0
    %1052 = vmatpush1.msra.mxu0 0.0
    %1053 = vmatprep.subr.mxu0 0.0
    %1054 = vmatpush1.msra.mxu0 0.0
    %1055 = vmatprep.subr.mxu0 0.0
    %1056 = vmatpush1.msra.mxu0 0.0
    %1057 = vmatprep.subr.mxu0 0.0
    %1058 = vmatpush1.msra.mxu0 0.0
    %1059 = vmatprep.subr.mxu0 0.0
    %1060 = vmatpush1.msra.mxu0 0.0
    %1061 = vmatprep.subr.mxu0 0.0
    %1062 = vmatpush1.msra.mxu0 0.0
    %1063 = vmatprep.subr.mxu0 0.0
    %1064 = vmatpush1.msra.mxu0 0.0
    %1065 = vmatprep.subr.mxu0 0.0
    %1066 = vmatpush1.msra.mxu0 0.0
    %1067 = vmatprep.subr.mxu0 0.0
    %1068 = vmatpush1.msra.mxu0 0.0
    %1069 = vmatprep.subr.mxu0 0.0
    %1070 = vmatpush1.msra.mxu0 0.0
    %1071 = vmatprep.subr.mxu0 0.0
    %1072 = vmatpush1.msra.mxu0 0.0
    %1073 = vmatprep.subr.mxu0 0.0
    %1074 = vmatpush1.msra.mxu0 0.0
    %1075 = vmatprep.subr.mxu0 0.0
    %1076 = vmatpush1.msra.mxu0 0.0
    %1077 = vmatprep.subr.mxu0 0.0
    %1078 = vmatpush1.msra.mxu0 0.0
    %1079 = vmatprep.subr.mxu0 0.0
    %1080 = vmatpush1.msra.mxu0 0.0
    %1081 = vmatprep.subr.mxu0 0.0
    %1082 = vmatpush1.msra.mxu0 0.0
    %1083 = vmatprep.subr.mxu0 0.0
    %1084 = vmatpush1.msra.mxu0 0.0
    %1085 = vmatprep.subr.mxu0 0.0
    %1086 = vmatpush1.msra.mxu0 0.0
    %1087 = vmatprep.subr.mxu0 0.0
    %1088 = vmatpush1.msra.mxu0 0.0
    %1089 = vmatprep.subr.mxu0 0.0
    %1090 = vmatpush1.msra.mxu0 0.0
    %1091 = vmatprep.subr.mxu0 0.0
    %1092 = vmatpush1.msra.mxu0 0.0
    %1093 = vmatprep.mubr.f32.mxu0 0.0
    %1094 = vmatmul.mubr.f32.gmra.mrb[0].mxu0 %v1018
    %v1095 = vpop.f32.mrb[0].mxu0
    %v1096 = vadd.f32 0.0, %v1095
    %v1097 = vpop.f32.mrb[0].mxu0
    %1098 = vmatprep.mubr.f32.mxu0 0.0
    %1099 = vmatmul.mubr.f32.gmra.mrb[0].mxu0 %v1021
    %v1100 = vpop.f32.mrb[0].mxu0
    %v1101 = vadd.f32 0.0, %v1100
    %v1102 = vpop.f32.mrb[0].mxu0
    %1103 = vmatprep.mubr.f32.mxu0 0.0
    %1104 = vmatmul.mubr.f32.gmra.mrb[0].mxu0 %v1024
    %v1105 = vpop.f32.mrb[0].mxu0
    %v1106 = vadd.f32 0.0, %v1105
    %v1107 = vpop.f32.mrb[0].mxu0
    %1108 = vmatprep.mubr.f32.mxu0 0.0
    %1109 = vmatmul.mubr.f32.gmra.mrb[0].mxu0 %v1027
    %v1110 = vpop.f32.mrb[0].mxu0
    %v1111 = vadd.f32 0.0, %v1110
    %v1112 = vpop.f32.mrb[0].mxu0
    %1113 = vdwg.mxu0
    %v1114 = vld [vmem:[%s3 + $0x3] sm:$0x1]
    %v1115 = vlaneseq
    %v1116 = vshrl.u32 %v1115, 7
    %v1117 = vsub.s32 0, %v1116
    %v1118 = vrot.slane %v1114, %v1117
    %v1120 = vsel %vm263, %v999, 0
    %v1123 = vsel %vm263, %v1004, 0
    %v1126 = vsel %vm263, %v1009, 0
    %v1129 = vsel %vm263, %v1014, 0
    %v1132 = vsel %vm263, %v1096, 0
    %v1135 = vsel %vm263, %v1101, 0
    %v1138 = vsel %vm263, %v1106, 0
    %v1141 = vsel %vm263, %v1111, 0
    %1143 = vmatprep.subr.mxu0 0.0
    %1144 = vmatpush1.msra.mxu0 %v252
    %1145 = vmatprep.subr.mxu0 0.0
    %1146 = vmatpush1.msra.mxu0 %v253
    %1147 = vmatprep.subr.mxu0 0.0
    %1148 = vmatpush1.msra.mxu0 0.0
    %1149 = vmatprep.subr.mxu0 0.0
    %1150 = vmatpush1.msra.mxu0 0.0
    %1151 = vmatprep.subr.mxu0 0.0
    %1152 = vmatpush1.msra.mxu0 0.0
    %1153 = vmatprep.subr.mxu0 0.0
    %1154 = vmatpush1.msra.mxu0 0.0
    %1155 = vmatprep.subr.mxu0 0.0
    %1156 = vmatpush1.msra.mxu0 0.0
    %1157 = vmatprep.subr.mxu0 0.0
    %1158 = vmatpush1.msra.mxu0 0.0
    %1159 = vmatprep.subr.mxu0 0.0
    %1160 = vmatpush1.msra.mxu0 0.0
    %1161 = vmatprep.subr.mxu0 0.0
    %1162 = vmatpush1.msra.mxu0 0.0
    %1163 = vmatprep.subr.mxu0 0.0
    %1164 = vmatpush1.msra.mxu0 0.0
    %1165 = vmatprep.subr.mxu0 0.0
    %1166 = vmatpush1.msra.mxu0 0.0
    %1167 = vmatprep.subr.mxu0 0.0
    %1168 = vmatpush1.msra.mxu0 0.0
    %1169 = vmatprep.subr.mxu0 0.0
    %1170 = vmatpush1.msra.mxu0 0.0
    %1171 = vmatprep.subr.mxu0 0.0
    %1172 = vmatpush1.msra.mxu0 0.0
    %1173 = vmatprep.subr.mxu0 0.0
    %1174 = vmatpush1.msra.mxu0 0.0
    %1175 = vmatprep.subr.mxu0 0.0
    %1176 = vmatpush1.msra.mxu0 0.0
    %1177 = vmatprep.subr.mxu0 0.0
    %1178 = vmatpush1.msra.mxu0 0.0
    %1179 = vmatprep.subr.mxu0 0.0
    %1180 = vmatpush1.msra.mxu0 0.0
    %1181 = vmatprep.subr.mxu0 0.0
    %1182 = vmatpush1.msra.mxu0 0.0
    %1183 = vmatprep.subr.mxu0 0.0
    %1184 = vmatpush1.msra.mxu0 0.0
    %1185 = vmatprep.subr.mxu0 0.0
    %1186 = vmatpush1.msra.mxu0 0.0
    %1187 = vmatprep.subr.mxu0 0.0
    %1188 = vmatpush1.msra.mxu0 0.0
    %1189 = vmatprep.subr.mxu0 0.0
    %1190 = vmatpush1.msra.mxu0 0.0
    %1191 = vmatprep.subr.mxu0 0.0
    %1192 = vmatpush1.msra.mxu0 0.0
    %1193 = vmatprep.subr.mxu0 0.0
    %1194 = vmatpush1.msra.mxu0 0.0
    %1195 = vmatprep.subr.mxu0 0.0
    %1196 = vmatpush1.msra.mxu0 0.0
    %1197 = vmatprep.subr.mxu0 0.0
    %1198 = vmatpush1.msra.mxu0 0.0
    %1199 = vmatprep.subr.mxu0 0.0
    %1200 = vmatpush1.msra.mxu0 0.0
    %1201 = vmatprep.subr.mxu0 0.0
    %1202 = vmatpush1.msra.mxu0 0.0
    %1203 = vmatprep.subr.mxu0 0.0
    %1204 = vmatpush1.msra.mxu0 0.0
    %1205 = vmatprep.subr.mxu0 0.0
    %1206 = vmatpush1.msra.mxu0 0.0
    %1207 = vmatprep.mubr.f32.mxu0 0.0
    %1208 = vmatmul.mubr.f32.gmra.mrb[0].mxu0 %v1120
    %v1209 = vpop.f32.mrb[0].mxu0
    %v1210 = vadd.f32 %v1118, %v1209
    %v1211 = vpop.f32.mrb[0].mxu0
    %1212 = vmatprep.mubr.f32.mxu0 0.0
    %1213 = vmatmul.mubr.f32.gmra.mrb[0].mxu0 %v1123
    %v1214 = vpop.f32.mrb[0].mxu0
    %v1215 = vadd.f32 %v1118, %v1214
    %v1216 = vpop.f32.mrb[0].mxu0
    %1217 = vmatprep.mubr.f32.mxu0 0.0
    %1218 = vmatmul.mubr.f32.gmra.mrb[0].mxu0 %v1126
    %v1219 = vpop.f32.mrb[0].mxu0
    %v1220 = vadd.f32 %v1118, %v1219
    %v1221 = vpop.f32.mrb[0].mxu0
    %1222 = vmatprep.mubr.f32.mxu0 0.0
    %1223 = vmatmul.mubr.f32.gmra.mrb[0].mxu0 %v1129
    %v1224 = vpop.f32.mrb[0].mxu0
    %v1225 = vadd.f32 %v1118, %v1224
    %v1226 = vpop.f32.mrb[0].mxu0
    %1227 = vmatprep.mubr.f32.mxu0 0.0
    %1228 = vmatmul.mubr.f32.gmra.mrb[0].mxu0 %v1132
    %v1229 = vpop.f32.mrb[0].mxu0
    %v1230 = vadd.f32 %v1118, %v1229
    %v1231 = vpop.f32.mrb[0].mxu0
    %1232 = vmatprep.mubr.f32.mxu0 0.0
    %1233 = vmatmul.mubr.f32.gmra.mrb[0].mxu0 %v1135
    %v1234 = vpop.f32.mrb[0].mxu0
    %v1235 = vadd.f32 %v1118, %v1234
    %v1236 = vpop.f32.mrb[0].mxu0
    %1237 = vmatprep.mubr.f32.mxu0 0.0
    %1238 = vmatmul.mubr.f32.gmra.mrb[0].mxu0 %v1138
    %v1239 = vpop.f32.mrb[0].mxu0
    %v1240 = vadd.f32 %v1118, %v1239
    %v1241 = vpop.f32.mrb[0].mxu0
    %1242 = vmatprep.mubr.f32.mxu0 0.0
    %1243 = vmatmul.mubr.f32.gmra.mrb[0].mxu0 %v1141
    %v1244 = vpop.f32.mrb[0].mxu0
    %v1245 = vadd.f32 %v1118, %v1244
    %v1246 = vpop.f32.mrb[0].mxu0
    %1247 = vdwg.mxu0
    %v1248 = vadd.f32 %v238, %v1210
    %v1249 = vadd.f32 %v239, %v1215
    %v1250 = vadd.f32 %v240, %v1220
    %v1251 = vadd.f32 %v241, %v1225
    %v1252 = vadd.f32 %v242, %v1230
    %v1253 = vadd.f32 %v243, %v1235
    %v1254 = vadd.f32 %v244, %v1240
    %v1255 = vadd.f32 %v245, %v1245
    %v1256 = vld [vmem:[%s3 + $0x6] sm:$0x1]
    %v1257 = vld [vmem:[%s3 + $0x7] sm:$0x1]
    %v1258 = vsel %vm263, %v1248, 0.0
    %1259 = vadd.xlane.f32.xlu0 %v1258
    %v1260 = vpop.xlane.xlu0 %1259
    %v1261 = vsel %vm263, %v1249, 0.0
    %1262 = vadd.xlane.f32.xlu0 %v1261
    %v1263 = vpop.xlane.xlu0 %1262
    %v1264 = vsel %vm263, %v1250, 0.0
    %1265 = vadd.xlane.f32.xlu0 %v1264
    %v1266 = vpop.xlane.xlu0 %1265
    %v1267 = vsel %vm263, %v1251, 0.0
    %1268 = vadd.xlane.f32.xlu0 %v1267
    %v1269 = vpop.xlane.xlu0 %1268
    %v1270 = vsel %vm263, %v1252, 0.0
    %1271 = vadd.xlane.f32.xlu0 %v1270
    %v1272 = vpop.xlane.xlu0 %1271
    %v1273 = vsel %vm263, %v1253, 0.0
    %1274 = vadd.xlane.f32.xlu0 %v1273
    %v1275 = vpop.xlane.xlu0 %1274
    %v1276 = vsel %vm263, %v1254, 0.0
    %1277 = vadd.xlane.f32.xlu0 %v1276
    %v1278 = vpop.xlane.xlu0 %1277
    %v1279 = vsel %vm263, %v1255, 0.0
    %1280 = vadd.xlane.f32.xlu0 %v1279
    %v1281 = vpop.xlane.xlu0 %1280
    %v1282 = vrcp.pop 16.0
    %v1283 = vmul.f32 %v1260, %v1282
    %v1284 = vmul.f32 %v1263, %v1282
    %v1285 = vmul.f32 %v1266, %v1282
    %v1286 = vmul.f32 %v1269, %v1282
    %v1287 = vmul.f32 %v1272, %v1282
    %v1288 = vmul.f32 %v1275, %v1282
    %v1289 = vmul.f32 %v1278, %v1282
    %v1290 = vmul.f32 %v1281, %v1282
    %v1291 = vsub.f32 %v1248, %v1283
    %v1292 = vsub.f32 %v1249, %v1284
    %v1293 = vsub.f32 %v1250, %v1285
    %v1294 = vsub.f32 %v1251, %v1286
    %v1295 = vsub.f32 %v1252, %v1287
    %v1296 = vsub.f32 %v1253, %v1288
    %v1297 = vsub.f32 %v1254, %v1289
    %v1298 = vsub.f32 %v1255, %v1290
    %v1299 = vmul.f32 %v1291, %v1291
    %v1300 = vmul.f32 %v1292, %v1292
    %v1301 = vmul.f32 %v1293, %v1293
    %v1302 = vmul.f32 %v1294, %v1294
    %v1303 = vmul.f32 %v1295, %v1295
    %v1304 = vmul.f32 %v1296, %v1296
    %v1305 = vmul.f32 %v1297, %v1297
    %v1306 = vmul.f32 %v1298, %v1298
    %v1307 = vsel %vm263, %v1299, 0.0
    %1308 = vadd.xlane.f32.xlu0 %v1307
    %v1309 = vpop.xlane.xlu0 %1308
    %v1310 = vsel %vm263, %v1300, 0.0
    %1311 = vadd.xlane.f32.xlu0 %v1310
    %v1312 = vpop.xlane.xlu0 %1311
    %v1313 = vsel %vm263, %v1301, 0.0
    %1314 = vadd.xlane.f32.xlu0 %v1313
    %v1315 = vpop.xlane.xlu0 %1314
    %v1316 = vsel %vm263, %v1302, 0.0
    %1317 = vadd.xlane.f32.xlu0 %v1316
    %v1318 = vpop.xlane.xlu0 %1317
    %v1319 = vsel %vm263, %v1303, 0.0
    %1320 = vadd.xlane.f32.xlu0 %v1319
    %v1321 = vpop.xlane.xlu0 %1320
    %v1322 = vsel %vm263, %v1304, 0.0
    %1323 = vadd.xlane.f32.xlu0 %v1322
    %v1324 = vpop.xlane.xlu0 %1323
    %v1325 = vsel %vm263, %v1305, 0.0
    %1326 = vadd.xlane.f32.xlu0 %v1325
    %v1327 = vpop.xlane.xlu0 %1326
    %v1328 = vsel %vm263, %v1306, 0.0
    %1329 = vadd.xlane.f32.xlu0 %v1328
    %v1330 = vpop.xlane.xlu0 %1329
    %v1331 = vmul.f32 %v1309, %v1282
    %v1332 = vmul.f32 %v1312, %v1282
    %v1333 = vmul.f32 %v1315, %v1282
    %v1334 = vmul.f32 %v1318, %v1282
    %v1335 = vmul.f32 %v1321, %v1282
    %v1336 = vmul.f32 %v1324, %v1282
    %v1337 = vmul.f32 %v1327, %v1282
    %v1338 = vmul.f32 %v1330, %v1282
    %v1339 = vadd.f32 %v1331, 1e-05
    %v1340 = vadd.f32 %v1332, 1e-05
    %v1341 = vadd.f32 %v1333, 1e-05
    %v1342 = vadd.f32 %v1334, 1e-05
    %v1343 = vadd.f32 %v1335, 1e-05
    %v1344 = vadd.f32 %v1336, 1e-05
    %v1345 = vadd.f32 %v1337, 1e-05
    %v1346 = vadd.f32 %v1338, 1e-05
    %v1347 = vrsqrt.pop %v1339
    %v1348 = vrsqrt.pop %v1340
    %v1349 = vrsqrt.pop %v1341
    %v1350 = vrsqrt.pop %v1342
    %v1351 = vrsqrt.pop %v1343
    %v1352 = vrsqrt.pop %v1344
    %v1353 = vrsqrt.pop %v1345
    %v1354 = vrsqrt.pop %v1346
    %v1355 = vmul.f32 %v1291, %v1347
    %v1356 = vmul.f32 %v1292, %v1348
    %v1357 = vmul.f32 %v1293, %v1349
    %v1358 = vmul.f32 %v1294, %v1350
    %v1359 = vmul.f32 %v1295, %v1351
    %v1360 = vmul.f32 %v1296, %v1352
    %v1361 = vmul.f32 %v1297, %v1353
    %v1362 = vmul.f32 %v1298, %v1354
    %v1363 = vlaneseq
    %v1364 = vshrl.u32 %v1363, 7
    %v1365 = vsub.s32 0, %v1364
    %v1366 = vrot.slane %v1256, %v1365
    %v1367 = vmul.f32 %v1355, %v1366
    %v1368 = vmul.f32 %v1356, %v1366
    %v1369 = vmul.f32 %v1357, %v1366
    %v1370 = vmul.f32 %v1358, %v1366
    %v1371 = vmul.f32 %v1359, %v1366
    %v1372 = vmul.f32 %v1360, %v1366
    %v1373 = vmul.f32 %v1361, %v1366
    %v1374 = vmul.f32 %v1362, %v1366
    %v1375 = vlaneseq
    %v1376 = vshrl.u32 %v1375, 7
    %v1377 = vsub.s32 0, %v1376
    %v1378 = vrot.slane %v1257, %v1377
    %v1379 = vadd.f32 %v1367, %v1378
    %v1380 = vadd.f32 %v1368, %v1378
    %v1381 = vadd.f32 %v1369, %v1378
    %v1382 = vadd.f32 %v1370, %v1378
    %v1383 = vadd.f32 %v1371, %v1378
    %v1384 = vadd.f32 %v1372, %v1378
    %v1385 = vadd.f32 %v1373, %v1378
    %v1386 = vadd.f32 %v1374, %v1378
    %v1387 = vld [vmem:[%s3 + $0x4] sm:$0x1]
    %v1388 = vlaneseq
    %v1389 = vshrl.u32 %v1388, 7
    %v1390 = vsub.s32 0, %v1389
    %v1391 = vrot.slane %v1387, %v1390
    %v1393 = vsel %vm263, %v1379, 0
    %v1396 = vsel %vm263, %v1380, 0
    %v1399 = vsel %vm263, %v1381, 0
    %v1402 = vsel %vm263, %v1382, 0
    %v1405 = vsel %vm263, %v1383, 0
    %v1408 = vsel %vm263, %v1384, 0
    %v1411 = vsel %vm263, %v1385, 0
    %v1414 = vsel %vm263, %v1386, 0
    %1416 = vmatprep.subr.mxu0 0.0
    %1417 = vmatpush1.msra.mxu0 %v254
    %1418 = vmatprep.subr.mxu0 0.0
    %1419 = vmatpush1.msra.mxu0 %v255
    %1420 = vmatprep.subr.mxu0 0.0
    %1421 = vmatpush1.msra.mxu0 0.0
    %1422 = vmatprep.subr.mxu0 0.0
    %1423 = vmatpush1.msra.mxu0 0.0
    %1424 = vmatprep.subr.mxu0 0.0
    %1425 = vmatpush1.msra.mxu0 0.0
    %1426 = vmatprep.subr.mxu0 0.0
    %1427 = vmatpush1.msra.mxu0 0.0
    %1428 = vmatprep.subr.mxu0 0.0
    %1429 = vmatpush1.msra.mxu0 0.0
    %1430 = vmatprep.subr.mxu0 0.0
    %1431 = vmatpush1.msra.mxu0 0.0
    %1432 = vmatprep.subr.mxu0 0.0
    %1433 = vmatpush1.msra.mxu0 0.0
    %1434 = vmatprep.subr.mxu0 0.0
    %1435 = vmatpush1.msra.mxu0 0.0
    %1436 = vmatprep.subr.mxu0 0.0
    %1437 = vmatpush1.msra.mxu0 0.0
    %1438 = vmatprep.subr.mxu0 0.0
    %1439 = vmatpush1.msra.mxu0 0.0
    %1440 = vmatprep.subr.mxu0 0.0
    %1441 = vmatpush1.msra.mxu0 0.0
    %1442 = vmatprep.subr.mxu0 0.0
    %1443 = vmatpush1.msra.mxu0 0.0
    %1444 = vmatprep.subr.mxu0 0.0
    %1445 = vmatpush1.msra.mxu0 0.0
    %1446 = vmatprep.subr.mxu0 0.0
    %1447 = vmatpush1.msra.mxu0 0.0
    %1448 = vmatprep.subr.mxu0 0.0
    %1449 = vmatpush1.msra.mxu0 0.0
    %1450 = vmatprep.subr.mxu0 0.0
    %1451 = vmatpush1.msra.mxu0 0.0
    %1452 = vmatprep.subr.mxu0 0.0
    %1453 = vmatpush1.msra.mxu0 0.0
    %1454 = vmatprep.subr.mxu0 0.0
    %1455 = vmatpush1.msra.mxu0 0.0
    %1456 = vmatprep.subr.mxu0 0.0
    %1457 = vmatpush1.msra.mxu0 0.0
    %1458 = vmatprep.subr.mxu0 0.0
    %1459 = vmatpush1.msra.mxu0 0.0
    %1460 = vmatprep.subr.mxu0 0.0
    %1461 = vmatpush1.msra.mxu0 0.0
    %1462 = vmatprep.subr.mxu0 0.0
    %1463 = vmatpush1.msra.mxu0 0.0
    %1464 = vmatprep.subr.mxu0 0.0
    %1465 = vmatpush1.msra.mxu0 0.0
    %1466 = vmatprep.subr.mxu0 0.0
    %1467 = vmatpush1.msra.mxu0 0.0
    %1468 = vmatprep.subr.mxu0 0.0
    %1469 = vmatpush1.msra.mxu0 0.0
    %1470 = vmatprep.subr.mxu0 0.0
    %1471 = vmatpush1.msra.mxu0 0.0
    %1472 = vmatprep.subr.mxu0 0.0
    %1473 = vmatpush1.msra.mxu0 0.0
    %1474 = vmatprep.subr.mxu0 0.0
    %1475 = vmatpush1.msra.mxu0 0.0
    %1476 = vmatprep.subr.mxu0 0.0
    %1477 = vmatpush1.msra.mxu0 0.0
    %1478 = vmatprep.subr.mxu0 0.0
    %1479 = vmatpush1.msra.mxu0 0.0
    %1480 = vmatprep.mubr.f32.mxu0 0.0
    %1481 = vmatmul.mubr.f32.gmra.mrb[0].mxu0 %v1393
    %v1482 = vpop.f32.mrb[0].mxu0
    %v1483 = vadd.f32 %v1391, %v1482
    %v1484 = vpop.f32.mrb[0].mxu0
    %1485 = vmatprep.mubr.f32.mxu0 0.0
    %1486 = vmatmul.mubr.f32.gmra.mrb[0].mxu0 %v1396
    %v1487 = vpop.f32.mrb[0].mxu0
    %v1488 = vadd.f32 %v1391, %v1487
    %v1489 = vpop.f32.mrb[0].mxu0
    %1490 = vmatprep.mubr.f32.mxu0 0.0
    %1491 = vmatmul.mubr.f32.gmra.mrb[0].mxu0 %v1399
    %v1492 = vpop.f32.mrb[0].mxu0
    %v1493 = vadd.f32 %v1391, %v1492
    %v1494 = vpop.f32.mrb[0].mxu0
    %1495 = vmatprep.mubr.f32.mxu0 0.0
    %1496 = vmatmul.mubr.f32.gmra.mrb[0].mxu0 %v1402
    %v1497 = vpop.f32.mrb[0].mxu0
    %v1498 = vadd.f32 %v1391, %v1497
    %v1499 = vpop.f32.mrb[0].mxu0
    %1500 = vmatprep.mubr.f32.mxu0 0.0
    %1501 = vmatmul.mubr.f32.gmra.mrb[0].mxu0 %v1405
    %v1502 = vpop.f32.mrb[0].mxu0
    %v1503 = vadd.f32 %v1391, %v1502
    %v1504 = vpop.f32.mrb[0].mxu0
    %1505 = vmatprep.mubr.f32.mxu0 0.0
    %1506 = vmatmul.mubr.f32.gmra.mrb[0].mxu0 %v1408
    %v1507 = vpop.f32.mrb[0].mxu0
    %v1508 = vadd.f32 %v1391, %v1507
    %v1509 = vpop.f32.mrb[0].mxu0
    %1510 = vmatprep.mubr.f32.mxu0 0.0
    %1511 = vmatmul.mubr.f32.gmra.mrb[0].mxu0 %v1411
    %v1512 = vpop.f32.mrb[0].mxu0
    %v1513 = vadd.f32 %v1391, %v1512
    %v1514 = vpop.f32.mrb[0].mxu0
    %1515 = vmatprep.mubr.f32.mxu0 0.0
    %1516 = vmatmul.mubr.f32.gmra.mrb[0].mxu0 %v1414
    %v1517 = vpop.f32.mrb[0].mxu0
    %v1518 = vadd.f32 %v1391, %v1517
    %v1519 = vpop.f32.mrb[0].mxu0
    %1520 = vdwg.mxu0
    %v1521 = vmax.f32 %v1483, 0.0
    %v1522 = vmax.f32 %v1488, 0.0
    %v1523 = vmax.f32 %v1493, 0.0
    %v1524 = vmax.f32 %v1498, 0.0
    %v1525 = vmax.f32 %v1503, 0.0
    %v1526 = vmax.f32 %v1508, 0.0
    %v1527 = vmax.f32 %v1513, 0.0
    %v1528 = vmax.f32 %v1518, 0.0
    %v1529 = vld [vmem:[%s3 + $0x5] sm:$0x1]
    %v1530 = vlaneseq
    %v1531 = vshrl.u32 %v1530, 7
    %v1532 = vsub.s32 0, %v1531
    %v1533 = vrot.slane %v1529, %v1532
    %v1535 = vsel %vm263, %v1521, 0
    %v1538 = vsel %vm263, %v1522, 0
    %v1541 = vsel %vm263, %v1523, 0
    %v1544 = vsel %vm263, %v1524, 0
    %v1547 = vsel %vm263, %v1525, 0
    %v1550 = vsel %vm263, %v1526, 0
    %v1553 = vsel %vm263, %v1527, 0
    %v1556 = vsel %vm263, %v1528, 0
    %1558 = vmatprep.subr.mxu0 0.0
    %1559 = vmatpush1.msra.mxu0 %v256
    %1560 = vmatprep.subr.mxu0 0.0
    %1561 = vmatpush1.msra.mxu0 %v257
    %1562 = vmatprep.subr.mxu0 0.0
    %1563 = vmatpush1.msra.mxu0 0.0
    %1564 = vmatprep.subr.mxu0 0.0
    %1565 = vmatpush1.msra.mxu0 0.0
    %1566 = vmatprep.subr.mxu0 0.0
    %1567 = vmatpush1.msra.mxu0 0.0
    %1568 = vmatprep.subr.mxu0 0.0
    %1569 = vmatpush1.msra.mxu0 0.0
    %1570 = vmatprep.subr.mxu0 0.0
    %1571 = vmatpush1.msra.mxu0 0.0
    %1572 = vmatprep.subr.mxu0 0.0
    %1573 = vmatpush1.msra.mxu0 0.0
    %1574 = vmatprep.subr.mxu0 0.0
    %1575 = vmatpush1.msra.mxu0 0.0
    %1576 = vmatprep.subr.mxu0 0.0
    %1577 = vmatpush1.msra.mxu0 0.0
    %1578 = vmatprep.subr.mxu0 0.0
    %1579 = vmatpush1.msra.mxu0 0.0
    %1580 = vmatprep.subr.mxu0 0.0
    %1581 = vmatpush1.msra.mxu0 0.0
    %1582 = vmatprep.subr.mxu0 0.0
    %1583 = vmatpush1.msra.mxu0 0.0
    %1584 = vmatprep.subr.mxu0 0.0
    %1585 = vmatpush1.msra.mxu0 0.0
    %1586 = vmatprep.subr.mxu0 0.0
    %1587 = vmatpush1.msra.mxu0 0.0
    %1588 = vmatprep.subr.mxu0 0.0
    %1589 = vmatpush1.msra.mxu0 0.0
    %1590 = vmatprep.subr.mxu0 0.0
    %1591 = vmatpush1.msra.mxu0 0.0
    %1592 = vmatprep.subr.mxu0 0.0
    %1593 = vmatpush1.msra.mxu0 0.0
    %1594 = vmatprep.subr.mxu0 0.0
    %1595 = vmatpush1.msra.mxu0 0.0
    %1596 = vmatprep.subr.mxu0 0.0
    %1597 = vmatpush1.msra.mxu0 0.0
    %1598 = vmatprep.subr.mxu0 0.0
    %1599 = vmatpush1.msra.mxu0 0.0
    %1600 = vmatprep.subr.mxu0 0.0
    %1601 = vmatpush1.msra.mxu0 0.0
    %1602 = vmatprep.subr.mxu0 0.0
    %1603 = vmatpush1.msra.mxu0 0.0
    %1604 = vmatprep.subr.mxu0 0.0
    %1605 = vmatpush1.msra.mxu0 0.0
    %1606 = vmatprep.subr.mxu0 0.0
    %1607 = vmatpush1.msra.mxu0 0.0
    %1608 = vmatprep.subr.mxu0 0.0
    %1609 = vmatpush1.msra.mxu0 0.0
    %1610 = vmatprep.subr.mxu0 0.0
    %1611 = vmatpush1.msra.mxu0 0.0
    %1612 = vmatprep.subr.mxu0 0.0
    %1613 = vmatpush1.msra.mxu0 0.0
    %1614 = vmatprep.subr.mxu0 0.0
    %1615 = vmatpush1.msra.mxu0 0.0
    %1616 = vmatprep.subr.mxu0 0.0
    %1617 = vmatpush1.msra.mxu0 0.0
    %1618 = vmatprep.subr.mxu0 0.0
    %1619 = vmatpush1.msra.mxu0 0.0
    %1620 = vmatprep.subr.mxu0 0.0
    %1621 = vmatpush1.msra.mxu0 0.0
    %1622 = vmatprep.mubr.f32.mxu0 0.0
    %1623 = vmatmul.mubr.f32.gmra.mrb[0].mxu0 %v1535
    %v1624 = vpop.f32.mrb[0].mxu0
    %v1625 = vadd.f32 %v1533, %v1624
    %v1626 = vpop.f32.mrb[0].mxu0
    %1627 = vmatprep.mubr.f32.mxu0 0.0
    %1628 = vmatmul.mubr.f32.gmra.mrb[0].mxu0 %v1538
    %v1629 = vpop.f32.mrb[0].mxu0
    %v1630 = vadd.f32 %v1533, %v1629
    %v1631 = vpop.f32.mrb[0].mxu0
    %1632 = vmatprep.mubr.f32.mxu0 0.0
    %1633 = vmatmul.mubr.f32.gmra.mrb[0].mxu0 %v1541
    %v1634 = vpop.f32.mrb[0].mxu0
    %v1635 = vadd.f32 %v1533, %v1634
    %v1636 = vpop.f32.mrb[0].mxu0
    %1637 = vmatprep.mubr.f32.mxu0 0.0
    %1638 = vmatmul.mubr.f32.gmra.mrb[0].mxu0 %v1544
    %v1639 = vpop.f32.mrb[0].mxu0
    %v1640 = vadd.f32 %v1533, %v1639
    %v1641 = vpop.f32.mrb[0].mxu0
    %1642 = vmatprep.mubr.f32.mxu0 0.0
    %1643 = vmatmul.mubr.f32.gmra.mrb[0].mxu0 %v1547
    %v1644 = vpop.f32.mrb[0].mxu0
    %v1645 = vadd.f32 %v1533, %v1644
    %v1646 = vpop.f32.mrb[0].mxu0
    %1647 = vmatprep.mubr.f32.mxu0 0.0
    %1648 = vmatmul.mubr.f32.gmra.mrb[0].mxu0 %v1550
    %v1649 = vpop.f32.mrb[0].mxu0
    %v1650 = vadd.f32 %v1533, %v1649
    %v1651 = vpop.f32.mrb[0].mxu0
    %1652 = vmatprep.mubr.f32.mxu0 0.0
    %1653 = vmatmul.mubr.f32.gmra.mrb[0].mxu0 %v1553
    %v1654 = vpop.f32.mrb[0].mxu0
    %v1655 = vadd.f32 %v1533, %v1654
    %v1656 = vpop.f32.mrb[0].mxu0
    %1657 = vmatprep.mubr.f32.mxu0 0.0
    %1658 = vmatmul.mubr.f32.gmra.mrb[0].mxu0 %v1556
    %v1659 = vpop.f32.mrb[0].mxu0
    %v1660 = vadd.f32 %v1533, %v1659
    %v1661 = vpop.f32.mrb[0].mxu0
    %1662 = vdwg.mxu0
    %v1663 = vadd.f32 %v1379, %v1625
    %v1664 = vadd.f32 %v1380, %v1630
    %v1665 = vadd.f32 %v1381, %v1635
    %v1666 = vadd.f32 %v1382, %v1640
    %v1667 = vadd.f32 %v1383, %v1645
    %v1668 = vadd.f32 %v1384, %v1650
    %v1669 = vadd.f32 %v1385, %v1655
    %v1670 = vadd.f32 %v1386, %v1660
    %v1671 = vld [vmem:[%s3 + $0x8] sm:$0x1]
    %v1672 = vld [vmem:[%s3 + $0x9] sm:$0x1]
    %v1673 = vsel %vm263, %v1663, 0.0
    %1674 = vadd.xlane.f32.xlu0 %v1673
    %v1675 = vpop.xlane.xlu0 %1674
    %v1676 = vsel %vm263, %v1664, 0.0
    %1677 = vadd.xlane.f32.xlu0 %v1676
    %v1678 = vpop.xlane.xlu0 %1677
    %v1679 = vsel %vm263, %v1665, 0.0
    %1680 = vadd.xlane.f32.xlu0 %v1679
    %v1681 = vpop.xlane.xlu0 %1680
    %v1682 = vsel %vm263, %v1666, 0.0
    %1683 = vadd.xlane.f32.xlu0 %v1682
    %v1684 = vpop.xlane.xlu0 %1683
    %v1685 = vsel %vm263, %v1667, 0.0
    %1686 = vadd.xlane.f32.xlu0 %v1685
    %v1687 = vpop.xlane.xlu0 %1686
    %v1688 = vsel %vm263, %v1668, 0.0
    %1689 = vadd.xlane.f32.xlu0 %v1688
    %v1690 = vpop.xlane.xlu0 %1689
    %v1691 = vsel %vm263, %v1669, 0.0
    %1692 = vadd.xlane.f32.xlu0 %v1691
    %v1693 = vpop.xlane.xlu0 %1692
    %v1694 = vsel %vm263, %v1670, 0.0
    %1695 = vadd.xlane.f32.xlu0 %v1694
    %v1696 = vpop.xlane.xlu0 %1695
    %v1697 = vmul.f32 %v1675, %v1282
    %v1698 = vmul.f32 %v1678, %v1282
    %v1699 = vmul.f32 %v1681, %v1282
    %v1700 = vmul.f32 %v1684, %v1282
    %v1701 = vmul.f32 %v1687, %v1282
    %v1702 = vmul.f32 %v1690, %v1282
    %v1703 = vmul.f32 %v1693, %v1282
    %v1704 = vmul.f32 %v1696, %v1282
    %v1705 = vsub.f32 %v1663, %v1697
    %v1706 = vsub.f32 %v1664, %v1698
    %v1707 = vsub.f32 %v1665, %v1699
    %v1708 = vsub.f32 %v1666, %v1700
    %v1709 = vsub.f32 %v1667, %v1701
    %v1710 = vsub.f32 %v1668, %v1702
    %v1711 = vsub.f32 %v1669, %v1703
    %v1712 = vsub.f32 %v1670, %v1704
    %v1713 = vmul.f32 %v1705, %v1705
    %v1714 = vmul.f32 %v1706, %v1706
    %v1715 = vmul.f32 %v1707, %v1707
    %v1716 = vmul.f32 %v1708, %v1708
    %v1717 = vmul.f32 %v1709, %v1709
    %v1718 = vmul.f32 %v1710, %v1710
    %v1719 = vmul.f32 %v1711, %v1711
    %v1720 = vmul.f32 %v1712, %v1712
    %v1721 = vsel %vm263, %v1713, 0.0
    %1722 = vadd.xlane.f32.xlu0 %v1721
    %v1723 = vpop.xlane.xlu0 %1722
    %v1724 = vsel %vm263, %v1714, 0.0
    %1725 = vadd.xlane.f32.xlu0 %v1724
    %v1726 = vpop.xlane.xlu0 %1725
    %v1727 = vsel %vm263, %v1715, 0.0
    %1728 = vadd.xlane.f32.xlu0 %v1727
    %v1729 = vpop.xlane.xlu0 %1728
    %v1730 = vsel %vm263, %v1716, 0.0
    %1731 = vadd.xlane.f32.xlu0 %v1730
    %v1732 = vpop.xlane.xlu0 %1731
    %v1733 = vsel %vm263, %v1717, 0.0
    %1734 = vadd.xlane.f32.xlu0 %v1733
    %v1735 = vpop.xlane.xlu0 %1734
    %v1736 = vsel %vm263, %v1718, 0.0
    %1737 = vadd.xlane.f32.xlu0 %v1736
    %v1738 = vpop.xlane.xlu0 %1737
    %v1739 = vsel %vm263, %v1719, 0.0
    %1740 = vadd.xlane.f32.xlu0 %v1739
    %v1741 = vpop.xlane.xlu0 %1740
    %v1742 = vsel %vm263, %v1720, 0.0
    %1743 = vadd.xlane.f32.xlu0 %v1742
    %v1744 = vpop.xlane.xlu0 %1743
    %v1745 = vmul.f32 %v1723, %v1282
    %v1746 = vmul.f32 %v1726, %v1282
    %v1747 = vmul.f32 %v1729, %v1282
    %v1748 = vmul.f32 %v1732, %v1282
    %v1749 = vmul.f32 %v1735, %v1282
    %v1750 = vmul.f32 %v1738, %v1282
    %v1751 = vmul.f32 %v1741, %v1282
    %v1752 = vmul.f32 %v1744, %v1282
    %v1753 = vadd.f32 %v1745, 1e-05
    %v1754 = vadd.f32 %v1746, 1e-05
    %v1755 = vadd.f32 %v1747, 1e-05
    %v1756 = vadd.f32 %v1748, 1e-05
    %v1757 = vadd.f32 %v1749, 1e-05
    %v1758 = vadd.f32 %v1750, 1e-05
    %v1759 = vadd.f32 %v1751, 1e-05
    %v1760 = vadd.f32 %v1752, 1e-05
    %v1761 = vrsqrt.pop %v1753
    %v1762 = vrsqrt.pop %v1754
    %v1763 = vrsqrt.pop %v1755
    %v1764 = vrsqrt.pop %v1756
    %v1765 = vrsqrt.pop %v1757
    %v1766 = vrsqrt.pop %v1758
    %v1767 = vrsqrt.pop %v1759
    %v1768 = vrsqrt.pop %v1760
    %v1769 = vmul.f32 %v1705, %v1761
    %v1770 = vmul.f32 %v1706, %v1762
    %v1771 = vmul.f32 %v1707, %v1763
    %v1772 = vmul.f32 %v1708, %v1764
    %v1773 = vmul.f32 %v1709, %v1765
    %v1774 = vmul.f32 %v1710, %v1766
    %v1775 = vmul.f32 %v1711, %v1767
    %v1776 = vmul.f32 %v1712, %v1768
    %v1777 = vlaneseq
    %v1778 = vshrl.u32 %v1777, 7
    %v1779 = vsub.s32 0, %v1778
    %v1780 = vrot.slane %v1671, %v1779
    %v1781 = vmul.f32 %v1769, %v1780
    %v1782 = vmul.f32 %v1770, %v1780
    %v1783 = vmul.f32 %v1771, %v1780
    %v1784 = vmul.f32 %v1772, %v1780
    %v1785 = vmul.f32 %v1773, %v1780
    %v1786 = vmul.f32 %v1774, %v1780
    %v1787 = vmul.f32 %v1775, %v1780
    %v1788 = vmul.f32 %v1776, %v1780
    %v1789 = vlaneseq
    %v1790 = vshrl.u32 %v1789, 7
    %v1791 = vsub.s32 0, %v1790
    %v1792 = vrot.slane %v1672, %v1791
    %v1793 = vadd.f32 %v1781, %v1792
    %v1794 = vadd.f32 %v1782, %v1792
    %v1795 = vadd.f32 %v1783, %v1792
    %v1796 = vadd.f32 %v1784, %v1792
    %v1797 = vadd.f32 %v1785, %v1792
    %v1798 = vadd.f32 %v1786, %v1792
    %v1799 = vadd.f32 %v1787, %v1792
    %v1800 = vadd.f32 %v1788, %v1792
    %v1801 = vld [vmem:[%s2 + $0x60] sm:$0xff]
    %v1802 = vld [vmem:[%s2 + $0x68] sm:$0xff]
    %v1803 = vld [vmem:[%s2 + $0x70] sm:$0xff]
    %v1804 = vld [vmem:[%s2 + $0x78] sm:$0xff]
    %v1805 = vld [vmem:[%s2 + $0x80] sm:$0xff]
    %v1806 = vld [vmem:[%s2 + $0x88] sm:$0xff]
    %v1807 = vld [vmem:[%s2 + $0x90] sm:$0xff]
    %v1808 = vld [vmem:[%s2 + $0x98] sm:$0xff]
    %v1809 = vld [vmem:[%s2 + $0xa0] sm:$0xff]
    %v1810 = vld [vmem:[%s2 + $0xa8] sm:$0xff]
    %v1811 = vld [vmem:[%s2 + $0xb0] sm:$0xff]
    %v1812 = vld [vmem:[%s2 + $0xb8] sm:$0xff]
    %v1813 = vld [vmem:[%s3 + $0xa] sm:$0x1]
    %v1814 = vlaneseq
    %v1815 = vshrl.u32 %v1814, 7
    %v1816 = vsub.s32 0, %v1815
    %v1817 = vrot.slane %v1813, %v1816
    %v1819 = vsel %vm263, %v1793, 0
    %v1822 = vsel %vm263, %v1794, 0
    %v1825 = vsel %vm263, %v1795, 0
    %v1828 = vsel %vm263, %v1796, 0
    %v1831 = vsel %vm263, %v1797, 0
    %v1834 = vsel %vm263, %v1798, 0
    %v1837 = vsel %vm263, %v1799, 0
    %v1840 = vsel %vm263, %v1800, 0
    %1842 = vmatprep.subr.mxu0 0.0
    %1843 = vmatpush1.msra.mxu0 %v1801
    %1844 = vmatprep.subr.mxu0 0.0
    %1845 = vmatpush1.msra.mxu0 %v1802
    %1846 = vmatprep.subr.mxu0 0.0
    %1847 = vmatpush1.msra.mxu0 0.0
    %1848 = vmatprep.subr.mxu0 0.0
    %1849 = vmatpush1.msra.mxu0 0.0
    %1850 = vmatprep.subr.mxu0 0.0
    %1851 = vmatpush1.msra.mxu0 0.0
    %1852 = vmatprep.subr.mxu0 0.0
    %1853 = vmatpush1.msra.mxu0 0.0
    %1854 = vmatprep.subr.mxu0 0.0
    %1855 = vmatpush1.msra.mxu0 0.0
    %1856 = vmatprep.subr.mxu0 0.0
    %1857 = vmatpush1.msra.mxu0 0.0
    %1858 = vmatprep.subr.mxu0 0.0
    %1859 = vmatpush1.msra.mxu0 0.0
    %1860 = vmatprep.subr.mxu0 0.0
    %1861 = vmatpush1.msra.mxu0 0.0
    %1862 = vmatprep.subr.mxu0 0.0
    %1863 = vmatpush1.msra.mxu0 0.0
    %1864 = vmatprep.subr.mxu0 0.0
    %1865 = vmatpush1.msra.mxu0 0.0
    %1866 = vmatprep.subr.mxu0 0.0
    %1867 = vmatpush1.msra.mxu0 0.0
    %1868 = vmatprep.subr.mxu0 0.0
    %1869 = vmatpush1.msra.mxu0 0.0
    %1870 = vmatprep.subr.mxu0 0.0
    %1871 = vmatpush1.msra.mxu0 0.0
    %1872 = vmatprep.subr.mxu0 0.0
    %1873 = vmatpush1.msra.mxu0 0.0
    %1874 = vmatprep.subr.mxu0 0.0
    %1875 = vmatpush1.msra.mxu0 0.0
    %1876 = vmatprep.subr.mxu0 0.0
    %1877 = vmatpush1.msra.mxu0 0.0
    %1878 = vmatprep.subr.mxu0 0.0
    %1879 = vmatpush1.msra.mxu0 0.0
    %1880 = vmatprep.subr.mxu0 0.0
    %1881 = vmatpush1.msra.mxu0 0.0
    %1882 = vmatprep.subr.mxu0 0.0
    %1883 = vmatpush1.msra.mxu0 0.0
    %1884 = vmatprep.subr.mxu0 0.0
    %1885 = vmatpush1.msra.mxu0 0.0
    %1886 = vmatprep.subr.mxu0 0.0
    %1887 = vmatpush1.msra.mxu0 0.0
    %1888 = vmatprep.subr.mxu0 0.0
    %1889 = vmatpush1.msra.mxu0 0.0
    %1890 = vmatprep.subr.mxu0 0.0
    %1891 = vmatpush1.msra.mxu0 0.0
    %1892 = vmatprep.subr.mxu0 0.0
    %1893 = vmatpush1.msra.mxu0 0.0
    %1894 = vmatprep.subr.mxu0 0.0
    %1895 = vmatpush1.msra.mxu0 0.0
    %1896 = vmatprep.subr.mxu0 0.0
    %1897 = vmatpush1.msra.mxu0 0.0
    %1898 = vmatprep.subr.mxu0 0.0
    %1899 = vmatpush1.msra.mxu0 0.0
    %1900 = vmatprep.subr.mxu0 0.0
    %1901 = vmatpush1.msra.mxu0 0.0
    %1902 = vmatprep.subr.mxu0 0.0
    %1903 = vmatpush1.msra.mxu0 0.0
    %1904 = vmatprep.subr.mxu0 0.0
    %1905 = vmatpush1.msra.mxu0 0.0
    %1906 = vmatprep.mubr.f32.mxu0 0.0
    %1907 = vmatmul.mubr.f32.gmra.mrb[0].mxu0 %v1819
    %v1908 = vpop.f32.mrb[0].mxu0
    %v1909 = vadd.f32 %v1817, %v1908
    %v1910 = vpop.f32.mrb[0].mxu0
    %1911 = vmatprep.mubr.f32.mxu0 0.0
    %1912 = vmatmul.mubr.f32.gmra.mrb[0].mxu0 %v1822
    %v1913 = vpop.f32.mrb[0].mxu0
    %v1914 = vadd.f32 %v1817, %v1913
    %v1915 = vpop.f32.mrb[0].mxu0
    %1916 = vmatprep.mubr.f32.mxu0 0.0
    %1917 = vmatmul.mubr.f32.gmra.mrb[0].mxu0 %v1825
    %v1918 = vpop.f32.mrb[0].mxu0
    %v1919 = vadd.f32 %v1817, %v1918
    %v1920 = vpop.f32.mrb[0].mxu0
    %1921 = vmatprep.mubr.f32.mxu0 0.0
    %1922 = vmatmul.mubr.f32.gmra.mrb[0].mxu0 %v1828
    %v1923 = vpop.f32.mrb[0].mxu0
    %v1924 = vadd.f32 %v1817, %v1923
    %v1925 = vpop.f32.mrb[0].mxu0
    %1926 = vmatprep.mubr.f32.mxu0 0.0
    %1927 = vmatmul.mubr.f32.gmra.mrb[0].mxu0 %v1831
    %v1928 = vpop.f32.mrb[0].mxu0
    %v1929 = vadd.f32 %v1817, %v1928
    %v1930 = vpop.f32.mrb[0].mxu0
    %1931 = vmatprep.mubr.f32.mxu0 0.0
    %1932 = vmatmul.mubr.f32.gmra.mrb[0].mxu0 %v1834
    %v1933 = vpop.f32.mrb[0].mxu0
    %v1934 = vadd.f32 %v1817, %v1933
    %v1935 = vpop.f32.mrb[0].mxu0
    %1936 = vmatprep.mubr.f32.mxu0 0.0
    %1937 = vmatmul.mubr.f32.gmra.mrb[0].mxu0 %v1837
    %v1938 = vpop.f32.mrb[0].mxu0
    %v1939 = vadd.f32 %v1817, %v1938
    %v1940 = vpop.f32.mrb[0].mxu0
    %1941 = vmatprep.mubr.f32.mxu0 0.0
    %1942 = vmatmul.mubr.f32.gmra.mrb[0].mxu0 %v1840
    %v1943 = vpop.f32.mrb[0].mxu0
    %v1944 = vadd.f32 %v1817, %v1943
    %v1945 = vpop.f32.mrb[0].mxu0
    %1946 = vdwg.mxu0
    %v1947 = vld [vmem:[%s3 + $0xb] sm:$0x1]
    %v1948 = vlaneseq
    %v1949 = vshrl.u32 %v1948, 7
    %v1950 = vsub.s32 0, %v1949
    %v1951 = vrot.slane %v1947, %v1950
    %1952 = vmatprep.subr.mxu0 0.0
    %1953 = vmatpush1.msra.mxu0 %v1803
    %1954 = vmatprep.subr.mxu0 0.0
    %1955 = vmatpush1.msra.mxu0 %v1804
    %1956 = vmatprep.subr.mxu0 0.0
    %1957 = vmatpush1.msra.mxu0 0.0
    %1958 = vmatprep.subr.mxu0 0.0
    %1959 = vmatpush1.msra.mxu0 0.0
    %1960 = vmatprep.subr.mxu0 0.0
    %1961 = vmatpush1.msra.mxu0 0.0
    %1962 = vmatprep.subr.mxu0 0.0
    %1963 = vmatpush1.msra.mxu0 0.0
    %1964 = vmatprep.subr.mxu0 0.0
    %1965 = vmatpush1.msra.mxu0 0.0
    %1966 = vmatprep.subr.mxu0 0.0
    %1967 = vmatpush1.msra.mxu0 0.0
    %1968 = vmatprep.subr.mxu0 0.0
    %1969 = vmatpush1.msra.mxu0 0.0
    %1970 = vmatprep.subr.mxu0 0.0
    %1971 = vmatpush1.msra.mxu0 0.0
    %1972 = vmatprep.subr.mxu0 0.0
    %1973 = vmatpush1.msra.mxu0 0.0
    %1974 = vmatprep.subr.mxu0 0.0
    %1975 = vmatpush1.msra.mxu0 0.0
    %1976 = vmatprep.subr.mxu0 0.0
    %1977 = vmatpush1.msra.mxu0 0.0
    %1978 = vmatprep.subr.mxu0 0.0
    %1979 = vmatpush1.msra.mxu0 0.0
    %1980 = vmatprep.subr.mxu0 0.0
    %1981 = vmatpush1.msra.mxu0 0.0
    %1982 = vmatprep.subr.mxu0 0.0
    %1983 = vmatpush1.msra.mxu0 0.0
    %1984 = vmatprep.subr.mxu0 0.0
    %1985 = vmatpush1.msra.mxu0 0.0
    %1986 = vmatprep.subr.mxu0 0.0
    %1987 = vmatpush1.msra.mxu0 0.0
    %1988 = vmatprep.subr.mxu0 0.0
    %1989 = vmatpush1.msra.mxu0 0.0
    %1990 = vmatprep.subr.mxu0 0.0
    %1991 = vmatpush1.msra.mxu0 0.0
    %1992 = vmatprep.subr.mxu0 0.0
    %1993 = vmatpush1.msra.mxu0 0.0
    %1994 = vmatprep.subr.mxu0 0.0
    %1995 = vmatpush1.msra.mxu0 0.0
    %1996 = vmatprep.subr.mxu0 0.0
    %1997 = vmatpush1.msra.mxu0 0.0
    %1998 = vmatprep.subr.mxu0 0.0
    %1999 = vmatpush1.msra.mxu0 0.0
    %2000 = vmatprep.subr.mxu0 0.0
    %2001 = vmatpush1.msra.mxu0 0.0
    %2002 = vmatprep.subr.mxu0 0.0
    %2003 = vmatpush1.msra.mxu0 0.0
    %2004 = vmatprep.subr.mxu0 0.0
    %2005 = vmatpush1.msra.mxu0 0.0
    %2006 = vmatprep.subr.mxu0 0.0
    %2007 = vmatpush1.msra.mxu0 0.0
    %2008 = vmatprep.subr.mxu0 0.0
    %2009 = vmatpush1.msra.mxu0 0.0
    %2010 = vmatprep.subr.mxu0 0.0
    %2011 = vmatpush1.msra.mxu0 0.0
    %2012 = vmatprep.subr.mxu0 0.0
    %2013 = vmatpush1.msra.mxu0 0.0
    %2014 = vmatprep.subr.mxu0 0.0
    %2015 = vmatpush1.msra.mxu0 0.0
    %2016 = vmatprep.mubr.f32.mxu0 0.0
    %2017 = vmatmul.mubr.f32.gmra.mrb[0].mxu0 %v1819
    %v2018 = vpop.f32.mrb[0].mxu0
    %v2019 = vadd.f32 %v1951, %v2018
    %v2020 = vpop.f32.mrb[0].mxu0
    %2021 = vmatprep.mubr.f32.mxu0 0.0
    %2022 = vmatmul.mubr.f32.gmra.mrb[0].mxu0 %v1822
    %v2023 = vpop.f32.mrb[0].mxu0
    %v2024 = vadd.f32 %v1951, %v2023
    %v2025 = vpop.f32.mrb[0].mxu0
    %2026 = vmatprep.mubr.f32.mxu0 0.0
    %2027 = vmatmul.mubr.f32.gmra.mrb[0].mxu0 %v1825
    %v2028 = vpop.f32.mrb[0].mxu0
    %v2029 = vadd.f32 %v1951, %v2028
    %v2030 = vpop.f32.mrb[0].mxu0
    %2031 = vmatprep.mubr.f32.mxu0 0.0
    %2032 = vmatmul.mubr.f32.gmra.mrb[0].mxu0 %v1828
    %v2033 = vpop.f32.mrb[0].mxu0
    %v2034 = vadd.f32 %v1951, %v2033
    %v2035 = vpop.f32.mrb[0].mxu0
    %2036 = vmatprep.mubr.f32.mxu0 0.0
    %2037 = vmatmul.mubr.f32.gmra.mrb[0].mxu0 %v1831
    %v2038 = vpop.f32.mrb[0].mxu0
    %v2039 = vadd.f32 %v1951, %v2038
    %v2040 = vpop.f32.mrb[0].mxu0
    %2041 = vmatprep.mubr.f32.mxu0 0.0
    %2042 = vmatmul.mubr.f32.gmra.mrb[0].mxu0 %v1834
    %v2043 = vpop.f32.mrb[0].mxu0
    %v2044 = vadd.f32 %v1951, %v2043
    %v2045 = vpop.f32.mrb[0].mxu0
    %2046 = vmatprep.mubr.f32.mxu0 0.0
    %2047 = vmatmul.mubr.f32.gmra.mrb[0].mxu0 %v1837
    %v2048 = vpop.f32.mrb[0].mxu0
    %v2049 = vadd.f32 %v1951, %v2048
    %v2050 = vpop.f32.mrb[0].mxu0
    %2051 = vmatprep.mubr.f32.mxu0 0.0
    %2052 = vmatmul.mubr.f32.gmra.mrb[0].mxu0 %v1840
    %v2053 = vpop.f32.mrb[0].mxu0
    %v2054 = vadd.f32 %v1951, %v2053
    %v2055 = vpop.f32.mrb[0].mxu0
    %2056 = vdwg.mxu0
    %v2057 = vld [vmem:[%s3 + $0xc] sm:$0x1]
    %v2058 = vlaneseq
    %v2059 = vshrl.u32 %v2058, 7
    %v2060 = vsub.s32 0, %v2059
    %v2061 = vrot.slane %v2057, %v2060
    %2062 = vmatprep.subr.mxu0 0.0
    %2063 = vmatpush1.msra.mxu0 %v1805
    %2064 = vmatprep.subr.mxu0 0.0
    %2065 = vmatpush1.msra.mxu0 %v1806
    %2066 = vmatprep.subr.mxu0 0.0
    %2067 = vmatpush1.msra.mxu0 0.0
    %2068 = vmatprep.subr.mxu0 0.0
    %2069 = vmatpush1.msra.mxu0 0.0
    %2070 = vmatprep.subr.mxu0 0.0
    %2071 = vmatpush1.msra.mxu0 0.0
    %2072 = vmatprep.subr.mxu0 0.0
    %2073 = vmatpush1.msra.mxu0 0.0
    %2074 = vmatprep.subr.mxu0 0.0
    %2075 = vmatpush1.msra.mxu0 0.0
    %2076 = vmatprep.subr.mxu0 0.0
    %2077 = vmatpush1.msra.mxu0 0.0
    %2078 = vmatprep.subr.mxu0 0.0
    %2079 = vmatpush1.msra.mxu0 0.0
    %2080 = vmatprep.subr.mxu0 0.0
    %2081 = vmatpush1.msra.mxu0 0.0
    %2082 = vmatprep.subr.mxu0 0.0
    %2083 = vmatpush1.msra.mxu0 0.0
    %2084 = vmatprep.subr.mxu0 0.0
    %2085 = vmatpush1.msra.mxu0 0.0
    %2086 = vmatprep.subr.mxu0 0.0
    %2087 = vmatpush1.msra.mxu0 0.0
    %2088 = vmatprep.subr.mxu0 0.0
    %2089 = vmatpush1.msra.mxu0 0.0
    %2090 = vmatprep.subr.mxu0 0.0
    %2091 = vmatpush1.msra.mxu0 0.0
    %2092 = vmatprep.subr.mxu0 0.0
    %2093 = vmatpush1.msra.mxu0 0.0
    %2094 = vmatprep.subr.mxu0 0.0
    %2095 = vmatpush1.msra.mxu0 0.0
    %2096 = vmatprep.subr.mxu0 0.0
    %2097 = vmatpush1.msra.mxu0 0.0
    %2098 = vmatprep.subr.mxu0 0.0
    %2099 = vmatpush1.msra.mxu0 0.0
    %2100 = vmatprep.subr.mxu0 0.0
    %2101 = vmatpush1.msra.mxu0 0.0
    %2102 = vmatprep.subr.mxu0 0.0
    %2103 = vmatpush1.msra.mxu0 0.0
    %2104 = vmatprep.subr.mxu0 0.0
    %2105 = vmatpush1.msra.mxu0 0.0
    %2106 = vmatprep.subr.mxu0 0.0
    %2107 = vmatpush1.msra.mxu0 0.0
    %2108 = vmatprep.subr.mxu0 0.0
    %2109 = vmatpush1.msra.mxu0 0.0
    %2110 = vmatprep.subr.mxu0 0.0
    %2111 = vmatpush1.msra.mxu0 0.0
    %2112 = vmatprep.subr.mxu0 0.0
    %2113 = vmatpush1.msra.mxu0 0.0
    %2114 = vmatprep.subr.mxu0 0.0
    %2115 = vmatpush1.msra.mxu0 0.0
    %2116 = vmatprep.subr.mxu0 0.0
    %2117 = vmatpush1.msra.mxu0 0.0
    %2118 = vmatprep.subr.mxu0 0.0
    %2119 = vmatpush1.msra.mxu0 0.0
    %2120 = vmatprep.subr.mxu0 0.0
    %2121 = vmatpush1.msra.mxu0 0.0
    %2122 = vmatprep.subr.mxu0 0.0
    %2123 = vmatpush1.msra.mxu0 0.0
    %2124 = vmatprep.subr.mxu0 0.0
    %2125 = vmatpush1.msra.mxu0 0.0
    %2126 = vmatprep.mubr.f32.mxu0 0.0
    %2127 = vmatmul.mubr.f32.gmra.mrb[0].mxu0 %v1819
    %v2128 = vpop.f32.mrb[0].mxu0
    %v2129 = vadd.f32 %v2061, %v2128
    %v2130 = vpop.f32.mrb[0].mxu0
    %2131 = vmatprep.mubr.f32.mxu0 0.0
    %2132 = vmatmul.mubr.f32.gmra.mrb[0].mxu0 %v1822
    %v2133 = vpop.f32.mrb[0].mxu0
    %v2134 = vadd.f32 %v2061, %v2133
    %v2135 = vpop.f32.mrb[0].mxu0
    %2136 = vmatprep.mubr.f32.mxu0 0.0
    %2137 = vmatmul.mubr.f32.gmra.mrb[0].mxu0 %v1825
    %v2138 = vpop.f32.mrb[0].mxu0
    %v2139 = vadd.f32 %v2061, %v2138
    %v2140 = vpop.f32.mrb[0].mxu0
    %2141 = vmatprep.mubr.f32.mxu0 0.0
    %2142 = vmatmul.mubr.f32.gmra.mrb[0].mxu0 %v1828
    %v2143 = vpop.f32.mrb[0].mxu0
    %v2144 = vadd.f32 %v2061, %v2143
    %v2145 = vpop.f32.mrb[0].mxu0
    %2146 = vmatprep.mubr.f32.mxu0 0.0
    %2147 = vmatmul.mubr.f32.gmra.mrb[0].mxu0 %v1831
    %v2148 = vpop.f32.mrb[0].mxu0
    %v2149 = vadd.f32 %v2061, %v2148
    %v2150 = vpop.f32.mrb[0].mxu0
    %2151 = vmatprep.mubr.f32.mxu0 0.0
    %2152 = vmatmul.mubr.f32.gmra.mrb[0].mxu0 %v1834
    %v2153 = vpop.f32.mrb[0].mxu0
    %v2154 = vadd.f32 %v2061, %v2153
    %v2155 = vpop.f32.mrb[0].mxu0
    %2156 = vmatprep.mubr.f32.mxu0 0.0
    %2157 = vmatmul.mubr.f32.gmra.mrb[0].mxu0 %v1837
    %v2158 = vpop.f32.mrb[0].mxu0
    %v2159 = vadd.f32 %v2061, %v2158
    %v2160 = vpop.f32.mrb[0].mxu0
    %2161 = vmatprep.mubr.f32.mxu0 0.0
    %2162 = vmatmul.mubr.f32.gmra.mrb[0].mxu0 %v1840
    %v2163 = vpop.f32.mrb[0].mxu0
    %v2164 = vadd.f32 %v2061, %v2163
    %v2165 = vpop.f32.mrb[0].mxu0
    %2166 = vdwg.mxu0
    %v2168 = vsel %vm263, %v1909, 0
    %v2171 = vsel %vm263, %v1914, 0
    %v2174 = vsel %vm263, %v1919, 0
    %v2177 = vsel %vm263, %v1924, 0
    %v2180 = vsel %vm263, %v2019, 0
    %v2183 = vsel %vm263, %v2024, 0
    %v2186 = vsel %vm263, %v2029, 0
    %v2189 = vsel %vm263, %v2034, 0
    %2191 = vmatprep.subr.mxu0 0.0
    %2192 = vmatpush1.xpose.msra.mxu0 %v2180
    %2193 = vmatprep.subr.mxu0 0.0
    %2194 = vmatpush1.xpose.msra.mxu0 %v2183
    %2195 = vmatprep.subr.mxu0 0.0
    %2196 = vmatpush1.xpose.msra.mxu0 %v2186
    %2197 = vmatprep.subr.mxu0 0.0
    %2198 = vmatpush1.xpose.msra.mxu0 %v2189
    %2199 = vmatprep.subr.mxu0 0.0
    %2200 = vmatpush1.xpose.msra.mxu0 0.0
    %2201 = vmatprep.subr.mxu0 0.0
    %2202 = vmatpush1.xpose.msra.mxu0 0.0
    %2203 = vmatprep.subr.mxu0 0.0
    %2204 = vmatpush1.xpose.msra.mxu0 0.0
    %2205 = vmatprep.subr.mxu0 0.0
    %2206 = vmatpush1.xpose.msra.mxu0 0.0
    %2207 = vmatprep.subr.mxu0 0.0
    %2208 = vmatpush1.xpose.msra.mxu0 0.0
    %2209 = vmatprep.subr.mxu0 0.0
    %2210 = vmatpush1.xpose.msra.mxu0 0.0
    %2211 = vmatprep.subr.mxu0 0.0
    %2212 = vmatpush1.xpose.msra.mxu0 0.0
    %2213 = vmatprep.subr.mxu0 0.0
    %2214 = vmatpush1.xpose.msra.mxu0 0.0
    %2215 = vmatprep.subr.mxu0 0.0
    %2216 = vmatpush1.xpose.msra.mxu0 0.0
    %2217 = vmatprep.subr.mxu0 0.0
    %2218 = vmatpush1.xpose.msra.mxu0 0.0
    %2219 = vmatprep.subr.mxu0 0.0
    %2220 = vmatpush1.xpose.msra.mxu0 0.0
    %2221 = vmatprep.subr.mxu0 0.0
    %2222 = vmatpush1.xpose.msra.mxu0 0.0
    %2223 = vmatprep.subr.mxu0 0.0
    %2224 = vmatpush1.xpose.msra.mxu0 0.0
    %2225 = vmatprep.subr.mxu0 0.0
    %2226 = vmatpush1.xpose.msra.mxu0 0.0
    %2227 = vmatprep.subr.mxu0 0.0
    %2228 = vmatpush1.xpose.msra.mxu0 0.0
    %2229 = vmatprep.subr.mxu0 0.0
    %2230 = vmatpush1.xpose.msra.mxu0 0.0
    %2231 = vmatprep.subr.mxu0 0.0
    %2232 = vmatpush1.xpose.msra.mxu0 0.0
    %2233 = vmatprep.subr.mxu0 0.0
    %2234 = vmatpush1.xpose.msra.mxu0 0.0
    %2235 = vmatprep.subr.mxu0 0.0
    %2236 = vmatpush1.xpose.msra.mxu0 0.0
    %2237 = vmatprep.subr.mxu0 0.0
    %2238 = vmatpush1.xpose.msra.mxu0 0.0
    %2239 = vmatprep.subr.mxu0 0.0
    %2240 = vmatpush1.xpose.msra.mxu0 0.0
    %2241 = vmatprep.subr.mxu0 0.0
    %2242 = vmatpush1.xpose.msra.mxu0 0.0
    %2243 = vmatprep.subr.mxu0 0.0
    %2244 = vmatpush1.xpose.msra.mxu0 0.0
    %2245 = vmatprep.subr.mxu0 0.0
    %2246 = vmatpush1.xpose.msra.mxu0 0.0
    %2247 = vmatprep.subr.mxu0 0.0
    %2248 = vmatpush1.xpose.msra.mxu0 0.0
    %2249 = vmatprep.subr.mxu0 0.0
    %2250 = vmatpush1.xpose.msra.mxu0 0.0
    %2251 = vmatprep.subr.mxu0 0.0
    %2252 = vmatpush1.xpose.msra.mxu0 0.0
    %2253 = vmatprep.subr.mxu0 0.0
    %2254 = vmatpush1.xpose.msra.mxu0 0.0
    %2255 = vmatprep.mubr.f32.mxu0 0.0
    %2256 = vmatmul.mubr.f32.gmra.mrb[0].mxu0 %v2168
    %v2257 = vpop.f32.mrb[0].mxu0
    %v2258 = vadd.f32 0.0, %v2257
    %v2259 = vpop.f32.mrb[0].mxu0
    %2260 = vmatprep.mubr.f32.mxu0 0.0
    %2261 = vmatmul.mubr.f32.gmra.mrb[0].mxu0 %v2171
    %v2262 = vpop.f32.mrb[0].mxu0
    %v2263 = vadd.f32 0.0, %v2262
    %v2264 = vpop.f32.mrb[0].mxu0
    %2265 = vmatprep.mubr.f32.mxu0 0.0
    %2266 = vmatmul.mubr.f32.gmra.mrb[0].mxu0 %v2174
    %v2267 = vpop.f32.mrb[0].mxu0
    %v2268 = vadd.f32 0.0, %v2267
    %v2269 = vpop.f32.mrb[0].mxu0
    %2270 = vmatprep.mubr.f32.mxu0 0.0
    %2271 = vmatmul.mubr.f32.gmra.mrb[0].mxu0 %v2177
    %v2272 = vpop.f32.mrb[0].mxu0
    %v2273 = vadd.f32 0.0, %v2272
    %v2274 = vpop.f32.mrb[0].mxu0
    %2275 = vdwg.mxu0
    %v2277 = vsel %vm263, %v1929, 0
    %v2280 = vsel %vm263, %v1934, 0
    %v2283 = vsel %vm263, %v1939, 0
    %v2286 = vsel %vm263, %v1944, 0
    %v2289 = vsel %vm263, %v2039, 0
    %v2292 = vsel %vm263, %v2044, 0
    %v2295 = vsel %vm263, %v2049, 0
    %v2298 = vsel %vm263, %v2054, 0
    %2300 = vmatprep.subr.mxu0 0.0
    %2301 = vmatpush1.xpose.msra.mxu0 %v2289
    %2302 = vmatprep.subr.mxu0 0.0
    %2303 = vmatpush1.xpose.msra.mxu0 %v2292
    %2304 = vmatprep.subr.mxu0 0.0
    %2305 = vmatpush1.xpose.msra.mxu0 %v2295
    %2306 = vmatprep.subr.mxu0 0.0
    %2307 = vmatpush1.xpose.msra.mxu0 %v2298
    %2308 = vmatprep.subr.mxu0 0.0
    %2309 = vmatpush1.xpose.msra.mxu0 0.0
    %2310 = vmatprep.subr.mxu0 0.0
    %2311 = vmatpush1.xpose.msra.mxu0 0.0
    %2312 = vmatprep.subr.mxu0 0.0
    %2313 = vmatpush1.xpose.msra.mxu0 0.0
    %2314 = vmatprep.subr.mxu0 0.0
    %2315 = vmatpush1.xpose.msra.mxu0 0.0
    %2316 = vmatprep.subr.mxu0 0.0
    %2317 = vmatpush1.xpose.msra.mxu0 0.0
    %2318 = vmatprep.subr.mxu0 0.0
    %2319 = vmatpush1.xpose.msra.mxu0 0.0
    %2320 = vmatprep.subr.mxu0 0.0
    %2321 = vmatpush1.xpose.msra.mxu0 0.0
    %2322 = vmatprep.subr.mxu0 0.0
    %2323 = vmatpush1.xpose.msra.mxu0 0.0
    %2324 = vmatprep.subr.mxu0 0.0
    %2325 = vmatpush1.xpose.msra.mxu0 0.0
    %2326 = vmatprep.subr.mxu0 0.0
    %2327 = vmatpush1.xpose.msra.mxu0 0.0
    %2328 = vmatprep.subr.mxu0 0.0
    %2329 = vmatpush1.xpose.msra.mxu0 0.0
    %2330 = vmatprep.subr.mxu0 0.0
    %2331 = vmatpush1.xpose.msra.mxu0 0.0
    %2332 = vmatprep.subr.mxu0 0.0
    %2333 = vmatpush1.xpose.msra.mxu0 0.0
    %2334 = vmatprep.subr.mxu0 0.0
    %2335 = vmatpush1.xpose.msra.mxu0 0.0
    %2336 = vmatprep.subr.mxu0 0.0
    %2337 = vmatpush1.xpose.msra.mxu0 0.0
    %2338 = vmatprep.subr.mxu0 0.0
    %2339 = vmatpush1.xpose.msra.mxu0 0.0
    %2340 = vmatprep.subr.mxu0 0.0
    %2341 = vmatpush1.xpose.msra.mxu0 0.0
    %2342 = vmatprep.subr.mxu0 0.0
    %2343 = vmatpush1.xpose.msra.mxu0 0.0
    %2344 = vmatprep.subr.mxu0 0.0
    %2345 = vmatpush1.xpose.msra.mxu0 0.0
    %2346 = vmatprep.subr.mxu0 0.0
    %2347 = vmatpush1.xpose.msra.mxu0 0.0
    %2348 = vmatprep.subr.mxu0 0.0
    %2349 = vmatpush1.xpose.msra.mxu0 0.0
    %2350 = vmatprep.subr.mxu0 0.0
    %2351 = vmatpush1.xpose.msra.mxu0 0.0
    %2352 = vmatprep.subr.mxu0 0.0
    %2353 = vmatpush1.xpose.msra.mxu0 0.0
    %2354 = vmatprep.subr.mxu0 0.0
    %2355 = vmatpush1.xpose.msra.mxu0 0.0
    %2356 = vmatprep.subr.mxu0 0.0
    %2357 = vmatpush1.xpose.msra.mxu0 0.0
    %2358 = vmatprep.subr.mxu0 0.0
    %2359 = vmatpush1.xpose.msra.mxu0 0.0
    %2360 = vmatprep.subr.mxu0 0.0
    %2361 = vmatpush1.xpose.msra.mxu0 0.0
    %2362 = vmatprep.subr.mxu0 0.0
    %2363 = vmatpush1.xpose.msra.mxu0 0.0
    %2364 = vmatprep.mubr.f32.mxu0 0.0
    %2365 = vmatmul.mubr.f32.gmra.mrb[0].mxu0 %v2277
    %v2366 = vpop.f32.mrb[0].mxu0
    %v2367 = vadd.f32 0.0, %v2366
    %v2368 = vpop.f32.mrb[0].mxu0
    %2369 = vmatprep.mubr.f32.mxu0 0.0
    %2370 = vmatmul.mubr.f32.gmra.mrb[0].mxu0 %v2280
    %v2371 = vpop.f32.mrb[0].mxu0
    %v2372 = vadd.f32 0.0, %v2371
    %v2373 = vpop.f32.mrb[0].mxu0
    %2374 = vmatprep.mubr.f32.mxu0 0.0
    %2375 = vmatmul.mubr.f32.gmra.mrb[0].mxu0 %v2283
    %v2376 = vpop.f32.mrb[0].mxu0
    %v2377 = vadd.f32 0.0, %v2376
    %v2378 = vpop.f32.mrb[0].mxu0
    %2379 = vmatprep.mubr.f32.mxu0 0.0
    %2380 = vmatmul.mubr.f32.gmra.mrb[0].mxu0 %v2286
    %v2381 = vpop.f32.mrb[0].mxu0
    %v2382 = vadd.f32 0.0, %v2381
    %v2383 = vpop.f32.mrb[0].mxu0
    %2384 = vdwg.mxu0
    %v2385 = vsel %vm831, %v2258, -inf
    %2386 = vmax.xlane.f32.xlu0 %v2385
    %v2387 = vpop.xlane.xlu0 %2386
    %v2388 = vsel %vm831, %v2263, -inf
    %2389 = vmax.xlane.f32.xlu0 %v2388
    %v2390 = vpop.xlane.xlu0 %2389
    %v2391 = vsel %vm831, %v2268, -inf
    %2392 = vmax.xlane.f32.xlu0 %v2391
    %v2393 = vpop.xlane.xlu0 %2392
    %v2394 = vsel %vm831, %v2273, -inf
    %2395 = vmax.xlane.f32.xlu0 %v2394
    %v2396 = vpop.xlane.xlu0 %2395
    %v2397 = vsel %vm831, %v2367, -inf
    %2398 = vmax.xlane.f32.xlu0 %v2397
    %v2399 = vpop.xlane.xlu0 %2398
    %v2400 = vsel %vm831, %v2372, -inf
    %2401 = vmax.xlane.f32.xlu0 %v2400
    %v2402 = vpop.xlane.xlu0 %2401
    %v2403 = vsel %vm831, %v2377, -inf
    %2404 = vmax.xlane.f32.xlu0 %v2403
    %v2405 = vpop.xlane.xlu0 %2404
    %v2406 = vsel %vm831, %v2382, -inf
    %2407 = vmax.xlane.f32.xlu0 %v2406
    %v2408 = vpop.xlane.xlu0 %2407
    %v2409 = vsub.f32 %v2258, %v2387
    %v2410 = vsub.f32 %v2263, %v2390
    %v2411 = vsub.f32 %v2268, %v2393
    %v2412 = vsub.f32 %v2273, %v2396
    %v2413 = vsub.f32 %v2367, %v2399
    %v2414 = vsub.f32 %v2372, %v2402
    %v2415 = vsub.f32 %v2377, %v2405
    %v2416 = vsub.f32 %v2382, %v2408
    %v2417 = vmul.f32 %v2409, 1.442695
    %v2418 = vpow.pop %v2417
    %v2419 = vmul.f32 %v2410, 1.442695
    %v2420 = vpow.pop %v2419
    %v2421 = vmul.f32 %v2411, 1.442695
    %v2422 = vpow.pop %v2421
    %v2423 = vmul.f32 %v2412, 1.442695
    %v2424 = vpow.pop %v2423
    %v2425 = vmul.f32 %v2413, 1.442695
    %v2426 = vpow.pop %v2425
    %v2427 = vmul.f32 %v2414, 1.442695
    %v2428 = vpow.pop %v2427
    %v2429 = vmul.f32 %v2415, 1.442695
    %v2430 = vpow.pop %v2429
    %v2431 = vmul.f32 %v2416, 1.442695
    %v2432 = vpow.pop %v2431
    %v2433 = vsel %vm831, %v2418, 0.0
    %2434 = vadd.xlane.f32.xlu0 %v2433
    %v2435 = vpop.xlane.xlu0 %2434
    %v2436 = vsel %vm831, %v2420, 0.0
    %2437 = vadd.xlane.f32.xlu0 %v2436
    %v2438 = vpop.xlane.xlu0 %2437
    %v2439 = vsel %vm831, %v2422, 0.0
    %2440 = vadd.xlane.f32.xlu0 %v2439
    %v2441 = vpop.xlane.xlu0 %2440
    %v2442 = vsel %vm831, %v2424, 0.0
    %2443 = vadd.xlane.f32.xlu0 %v2442
    %v2444 = vpop.xlane.xlu0 %2443
    %v2445 = vsel %vm831, %v2426, 0.0
    %2446 = vadd.xlane.f32.xlu0 %v2445
    %v2447 = vpop.xlane.xlu0 %2446
    %v2448 = vsel %vm831, %v2428, 0.0
    %2449 = vadd.xlane.f32.xlu0 %v2448
    %v2450 = vpop.xlane.xlu0 %2449
    %v2451 = vsel %vm831, %v2430, 0.0
    %2452 = vadd.xlane.f32.xlu0 %v2451
    %v2453 = vpop.xlane.xlu0 %2452
    %v2454 = vsel %vm831, %v2432, 0.0
    %2455 = vadd.xlane.f32.xlu0 %v2454
    %v2456 = vpop.xlane.xlu0 %2455
    %v2457 = vrcp.pop %v2435
    %v2458 = vmul.f32 %v2418, %v2457
    %v2459 = vrcp.pop %v2438
    %v2460 = vmul.f32 %v2420, %v2459
    %v2461 = vrcp.pop %v2441
    %v2462 = vmul.f32 %v2422, %v2461
    %v2463 = vrcp.pop %v2444
    %v2464 = vmul.f32 %v2424, %v2463
    %v2465 = vrcp.pop %v2447
    %v2466 = vmul.f32 %v2426, %v2465
    %v2467 = vrcp.pop %v2450
    %v2468 = vmul.f32 %v2428, %v2467
    %v2469 = vrcp.pop %v2453
    %v2470 = vmul.f32 %v2430, %v2469
    %v2471 = vrcp.pop %v2456
    %v2472 = vmul.f32 %v2432, %v2471
    %v2474 = vsel %vm831, %v2458, 0
    %v2477 = vsel %vm831, %v2460, 0
    %v2480 = vsel %vm831, %v2462, 0
    %v2483 = vsel %vm831, %v2464, 0
    %2485 = vmatprep.subr.mxu0 0.0
    %2486 = vmatpush1.msra.mxu0 %v2129
    %2487 = vmatprep.subr.mxu0 0.0
    %2488 = vmatpush1.msra.mxu0 %v2134
    %2489 = vmatprep.subr.mxu0 0.0
    %2490 = vmatpush1.msra.mxu0 %v2139
    %2491 = vmatprep.subr.mxu0 0.0
    %2492 = vmatpush1.msra.mxu0 %v2144
    %2493 = vmatprep.subr.mxu0 0.0
    %2494 = vmatpush1.msra.mxu0 0.0
    %2495 = vmatprep.subr.mxu0 0.0
    %2496 = vmatpush1.msra.mxu0 0.0
    %2497 = vmatprep.subr.mxu0 0.0
    %2498 = vmatpush1.msra.mxu0 0.0
    %2499 = vmatprep.subr.mxu0 0.0
    %2500 = vmatpush1.msra.mxu0 0.0
    %2501 = vmatprep.subr.mxu0 0.0
    %2502 = vmatpush1.msra.mxu0 0.0
    %2503 = vmatprep.subr.mxu0 0.0
    %2504 = vmatpush1.msra.mxu0 0.0
    %2505 = vmatprep.subr.mxu0 0.0
    %2506 = vmatpush1.msra.mxu0 0.0
    %2507 = vmatprep.subr.mxu0 0.0
    %2508 = vmatpush1.msra.mxu0 0.0
    %2509 = vmatprep.subr.mxu0 0.0
    %2510 = vmatpush1.msra.mxu0 0.0
    %2511 = vmatprep.subr.mxu0 0.0
    %2512 = vmatpush1.msra.mxu0 0.0
    %2513 = vmatprep.subr.mxu0 0.0
    %2514 = vmatpush1.msra.mxu0 0.0
    %2515 = vmatprep.subr.mxu0 0.0
    %2516 = vmatpush1.msra.mxu0 0.0
    %2517 = vmatprep.subr.mxu0 0.0
    %2518 = vmatpush1.msra.mxu0 0.0
    %2519 = vmatprep.subr.mxu0 0.0
    %2520 = vmatpush1.msra.mxu0 0.0
    %2521 = vmatprep.subr.mxu0 0.0
    %2522 = vmatpush1.msra.mxu0 0.0
    %2523 = vmatprep.subr.mxu0 0.0
    %2524 = vmatpush1.msra.mxu0 0.0
    %2525 = vmatprep.subr.mxu0 0.0
    %2526 = vmatpush1.msra.mxu0 0.0
    %2527 = vmatprep.subr.mxu0 0.0
    %2528 = vmatpush1.msra.mxu0 0.0
    %2529 = vmatprep.subr.mxu0 0.0
    %2530 = vmatpush1.msra.mxu0 0.0
    %2531 = vmatprep.subr.mxu0 0.0
    %2532 = vmatpush1.msra.mxu0 0.0
    %2533 = vmatprep.subr.mxu0 0.0
    %2534 = vmatpush1.msra.mxu0 0.0
    %2535 = vmatprep.subr.mxu0 0.0
    %2536 = vmatpush1.msra.mxu0 0.0
    %2537 = vmatprep.subr.mxu0 0.0
    %2538 = vmatpush1.msra.mxu0 0.0
    %2539 = vmatprep.subr.mxu0 0.0
    %2540 = vmatpush1.msra.mxu0 0.0
    %2541 = vmatprep.subr.mxu0 0.0
    %2542 = vmatpush1.msra.mxu0 0.0
    %2543 = vmatprep.subr.mxu0 0.0
    %2544 = vmatpush1.msra.mxu0 0.0
    %2545 = vmatprep.subr.mxu0 0.0
    %2546 = vmatpush1.msra.mxu0 0.0
    %2547 = vmatprep.subr.mxu0 0.0
    %2548 = vmatpush1.msra.mxu0 0.0
    %2549 = vmatprep.mubr.f32.mxu0 0.0
    %2550 = vmatmul.mubr.f32.gmra.mrb[0].mxu0 %v2474
    %v2551 = vpop.f32.mrb[0].mxu0
    %v2552 = vadd.f32 0.0, %v2551
    %v2553 = vpop.f32.mrb[0].mxu0
    %2554 = vmatprep.mubr.f32.mxu0 0.0
    %2555 = vmatmul.mubr.f32.gmra.mrb[0].mxu0 %v2477
    %v2556 = vpop.f32.mrb[0].mxu0
    %v2557 = vadd.f32 0.0, %v2556
    %v2558 = vpop.f32.mrb[0].mxu0
    %2559 = vmatprep.mubr.f32.mxu0 0.0
    %2560 = vmatmul.mubr.f32.gmra.mrb[0].mxu0 %v2480
    %v2561 = vpop.f32.mrb[0].mxu0
    %v2562 = vadd.f32 0.0, %v2561
    %v2563 = vpop.f32.mrb[0].mxu0
    %2564 = vmatprep.mubr.f32.mxu0 0.0
    %2565 = vmatmul.mubr.f32.gmra.mrb[0].mxu0 %v2483
    %v2566 = vpop.f32.mrb[0].mxu0
    %v2567 = vadd.f32 0.0, %v2566
    %v2568 = vpop.f32.mrb[0].mxu0
    %2569 = vdwg.mxu0
    %v2571 = vsel %vm831, %v2466, 0
    %v2574 = vsel %vm831, %v2468, 0
    %v2577 = vsel %vm831, %v2470, 0
    %v2580 = vsel %vm831, %v2472, 0
    %2582 = vmatprep.subr.mxu0 0.0
    %2583 = vmatpush1.msra.mxu0 %v2149
    %2584 = vmatprep.subr.mxu0 0.0
    %2585 = vmatpush1.msra.mxu0 %v2154
    %2586 = vmatprep.subr.mxu0 0.0
    %2587 = vmatpush1.msra.mxu0 %v2159
    %2588 = vmatprep.subr.mxu0 0.0
    %2589 = vmatpush1.msra.mxu0 %v2164
    %2590 = vmatprep.subr.mxu0 0.0
    %2591 = vmatpush1.msra.mxu0 0.0
    %2592 = vmatprep.subr.mxu0 0.0
    %2593 = vmatpush1.msra.mxu0 0.0
    %2594 = vmatprep.subr.mxu0 0.0
    %2595 = vmatpush1.msra.mxu0 0.0
    %2596 = vmatprep.subr.mxu0 0.0
    %2597 = vmatpush1.msra.mxu0 0.0
    %2598 = vmatprep.subr.mxu0 0.0
    %2599 = vmatpush1.msra.mxu0 0.0
    %2600 = vmatprep.subr.mxu0 0.0
    %2601 = vmatpush1.msra.mxu0 0.0
    %2602 = vmatprep.subr.mxu0 0.0
    %2603 = vmatpush1.msra.mxu0 0.0
    %2604 = vmatprep.subr.mxu0 0.0
    %2605 = vmatpush1.msra.mxu0 0.0
    %2606 = vmatprep.subr.mxu0 0.0
    %2607 = vmatpush1.msra.mxu0 0.0
    %2608 = vmatprep.subr.mxu0 0.0
    %2609 = vmatpush1.msra.mxu0 0.0
    %2610 = vmatprep.subr.mxu0 0.0
    %2611 = vmatpush1.msra.mxu0 0.0
    %2612 = vmatprep.subr.mxu0 0.0
    %2613 = vmatpush1.msra.mxu0 0.0
    %2614 = vmatprep.subr.mxu0 0.0
    %2615 = vmatpush1.msra.mxu0 0.0
    %2616 = vmatprep.subr.mxu0 0.0
    %2617 = vmatpush1.msra.mxu0 0.0
    %2618 = vmatprep.subr.mxu0 0.0
    %2619 = vmatpush1.msra.mxu0 0.0
    %2620 = vmatprep.subr.mxu0 0.0
    %2621 = vmatpush1.msra.mxu0 0.0
    %2622 = vmatprep.subr.mxu0 0.0
    %2623 = vmatpush1.msra.mxu0 0.0
    %2624 = vmatprep.subr.mxu0 0.0
    %2625 = vmatpush1.msra.mxu0 0.0
    %2626 = vmatprep.subr.mxu0 0.0
    %2627 = vmatpush1.msra.mxu0 0.0
    %2628 = vmatprep.subr.mxu0 0.0
    %2629 = vmatpush1.msra.mxu0 0.0
    %2630 = vmatprep.subr.mxu0 0.0
    %2631 = vmatpush1.msra.mxu0 0.0
    %2632 = vmatprep.subr.mxu0 0.0
    %2633 = vmatpush1.msra.mxu0 0.0
    %2634 = vmatprep.subr.mxu0 0.0
    %2635 = vmatpush1.msra.mxu0 0.0
    %2636 = vmatprep.subr.mxu0 0.0
    %2637 = vmatpush1.msra.mxu0 0.0
    %2638 = vmatprep.subr.mxu0 0.0
    %2639 = vmatpush1.msra.mxu0 0.0
    %2640 = vmatprep.subr.mxu0 0.0
    %2641 = vmatpush1.msra.mxu0 0.0
    %2642 = vmatprep.subr.mxu0 0.0
    %2643 = vmatpush1.msra.mxu0 0.0
    %2644 = vmatprep.subr.mxu0 0.0
    %2645 = vmatpush1.msra.mxu0 0.0
    %2646 = vmatprep.mubr.f32.mxu0 0.0
    %2647 = vmatmul.mubr.f32.gmra.mrb[0].mxu0 %v2571
    %v2648 = vpop.f32.mrb[0].mxu0
    %v2649 = vadd.f32 0.0, %v2648
    %v2650 = vpop.f32.mrb[0].mxu0
    %2651 = vmatprep.mubr.f32.mxu0 0.0
    %2652 = vmatmul.mubr.f32.gmra.mrb[0].mxu0 %v2574
    %v2653 = vpop.f32.mrb[0].mxu0
    %v2654 = vadd.f32 0.0, %v2653
    %v2655 = vpop.f32.mrb[0].mxu0
    %2656 = vmatprep.mubr.f32.mxu0 0.0
    %2657 = vmatmul.mubr.f32.gmra.mrb[0].mxu0 %v2577
    %v2658 = vpop.f32.mrb[0].mxu0
    %v2659 = vadd.f32 0.0, %v2658
    %v2660 = vpop.f32.mrb[0].mxu0
    %2661 = vmatprep.mubr.f32.mxu0 0.0
    %2662 = vmatmul.mubr.f32.gmra.mrb[0].mxu0 %v2580
    %v2663 = vpop.f32.mrb[0].mxu0
    %v2664 = vadd.f32 0.0, %v2663
    %v2665 = vpop.f32.mrb[0].mxu0
    %2666 = vdwg.mxu0
    %v2667 = vld [vmem:[%s3 + $0xd] sm:$0x1]
    %v2668 = vlaneseq
    %v2669 = vshrl.u32 %v2668, 7
    %v2670 = vsub.s32 0, %v2669
    %v2671 = vrot.slane %v2667, %v2670
    %v2673 = vsel %vm263, %v2552, 0
    %v2676 = vsel %vm263, %v2557, 0
    %v2679 = vsel %vm263, %v2562, 0
    %v2682 = vsel %vm263, %v2567, 0
    %v2685 = vsel %vm263, %v2649, 0
    %v2688 = vsel %vm263, %v2654, 0
    %v2691 = vsel %vm263, %v2659, 0
    %v2694 = vsel %vm263, %v2664, 0
    %2696 = vmatprep.subr.mxu0 0.0
    %2697 = vmatpush1.msra.mxu0 %v1807
    %2698 = vmatprep.subr.mxu0 0.0
    %2699 = vmatpush1.msra.mxu0 %v1808
    %2700 = vmatprep.subr.mxu0 0.0
    %2701 = vmatpush1.msra.mxu0 0.0
    %2702 = vmatprep.subr.mxu0 0.0
    %2703 = vmatpush1.msra.mxu0 0.0
    %2704 = vmatprep.subr.mxu0 0.0
    %2705 = vmatpush1.msra.mxu0 0.0
    %2706 = vmatprep.subr.mxu0 0.0
    %2707 = vmatpush1.msra.mxu0 0.0
    %2708 = vmatprep.subr.mxu0 0.0
    %2709 = vmatpush1.msra.mxu0 0.0
    %2710 = vmatprep.subr.mxu0 0.0
    %2711 = vmatpush1.msra.mxu0 0.0
    %2712 = vmatprep.subr.mxu0 0.0
    %2713 = vmatpush1.msra.mxu0 0.0
    %2714 = vmatprep.subr.mxu0 0.0
    %2715 = vmatpush1.msra.mxu0 0.0
    %2716 = vmatprep.subr.mxu0 0.0
    %2717 = vmatpush1.msra.mxu0 0.0
    %2718 = vmatprep.subr.mxu0 0.0
    %2719 = vmatpush1.msra.mxu0 0.0
    %2720 = vmatprep.subr.mxu0 0.0
    %2721 = vmatpush1.msra.mxu0 0.0
    %2722 = vmatprep.subr.mxu0 0.0
    %2723 = vmatpush1.msra.mxu0 0.0
    %2724 = vmatprep.subr.mxu0 0.0
    %2725 = vmatpush1.msra.mxu0 0.0
    %2726 = vmatprep.subr.mxu0 0.0
    %2727 = vmatpush1.msra.mxu0 0.0
    %2728 = vmatprep.subr.mxu0 0.0
    %2729 = vmatpush1.msra.mxu0 0.0
    %2730 = vmatprep.subr.mxu0 0.0
    %2731 = vmatpush1.msra.mxu0 0.0
    %2732 = vmatprep.subr.mxu0 0.0
    %2733 = vmatpush1.msra.mxu0 0.0
    %2734 = vmatprep.subr.mxu0 0.0
    %2735 = vmatpush1.msra.mxu0 0.0
    %2736 = vmatprep.subr.mxu0 0.0
    %2737 = vmatpush1.msra.mxu0 0.0
    %2738 = vmatprep.subr.mxu0 0.0
    %2739 = vmatpush1.msra.mxu0 0.0
    %2740 = vmatprep.subr.mxu0 0.0
    %2741 = vmatpush1.msra.mxu0 0.0
    %2742 = vmatprep.subr.mxu0 0.0
    %2743 = vmatpush1.msra.mxu0 0.0
    %2744 = vmatprep.subr.mxu0 0.0
    %2745 = vmatpush1.msra.mxu0 0.0
    %2746 = vmatprep.subr.mxu0 0.0
    %2747 = vmatpush1.msra.mxu0 0.0
    %2748 = vmatprep.subr.mxu0 0.0
    %2749 = vmatpush1.msra.mxu0 0.0
    %2750 = vmatprep.subr.mxu0 0.0
    %2751 = vmatpush1.msra.mxu0 0.0
    %2752 = vmatprep.subr.mxu0 0.0
    %2753 = vmatpush1.msra.mxu0 0.0
    %2754 = vmatprep.subr.mxu0 0.0
    %2755 = vmatpush1.msra.mxu0 0.0
    %2756 = vmatprep.subr.mxu0 0.0
    %2757 = vmatpush1.msra.mxu0 0.0
    %2758 = vmatprep.subr.mxu0 0.0
    %2759 = vmatpush1.msra.mxu0 0.0
    %2760 = vmatprep.mubr.f32.mxu0 0.0
    %2761 = vmatmul.mubr.f32.gmra.mrb[0].mxu0 %v2673
    %v2762 = vpop.f32.mrb[0].mxu0
    %v2763 = vadd.f32 %v2671, %v2762
    %v2764 = vpop.f32.mrb[0].mxu0
    %2765 = vmatprep.mubr.f32.mxu0 0.0
    %2766 = vmatmul.mubr.f32.gmra.mrb[0].mxu0 %v2676
    %v2767 = vpop.f32.mrb[0].mxu0
    %v2768 = vadd.f32 %v2671, %v2767
    %v2769 = vpop.f32.mrb[0].mxu0
    %2770 = vmatprep.mubr.f32.mxu0 0.0
    %2771 = vmatmul.mubr.f32.gmra.mrb[0].mxu0 %v2679
    %v2772 = vpop.f32.mrb[0].mxu0
    %v2773 = vadd.f32 %v2671, %v2772
    %v2774 = vpop.f32.mrb[0].mxu0
    %2775 = vmatprep.mubr.f32.mxu0 0.0
    %2776 = vmatmul.mubr.f32.gmra.mrb[0].mxu0 %v2682
    %v2777 = vpop.f32.mrb[0].mxu0
    %v2778 = vadd.f32 %v2671, %v2777
    %v2779 = vpop.f32.mrb[0].mxu0
    %2780 = vmatprep.mubr.f32.mxu0 0.0
    %2781 = vmatmul.mubr.f32.gmra.mrb[0].mxu0 %v2685
    %v2782 = vpop.f32.mrb[0].mxu0
    %v2783 = vadd.f32 %v2671, %v2782
    %v2784 = vpop.f32.mrb[0].mxu0
    %2785 = vmatprep.mubr.f32.mxu0 0.0
    %2786 = vmatmul.mubr.f32.gmra.mrb[0].mxu0 %v2688
    %v2787 = vpop.f32.mrb[0].mxu0
    %v2788 = vadd.f32 %v2671, %v2787
    %v2789 = vpop.f32.mrb[0].mxu0
    %2790 = vmatprep.mubr.f32.mxu0 0.0
    %2791 = vmatmul.mubr.f32.gmra.mrb[0].mxu0 %v2691
    %v2792 = vpop.f32.mrb[0].mxu0
    %v2793 = vadd.f32 %v2671, %v2792
    %v2794 = vpop.f32.mrb[0].mxu0
    %2795 = vmatprep.mubr.f32.mxu0 0.0
    %2796 = vmatmul.mubr.f32.gmra.mrb[0].mxu0 %v2694
    %v2797 = vpop.f32.mrb[0].mxu0
    %v2798 = vadd.f32 %v2671, %v2797
    %v2799 = vpop.f32.mrb[0].mxu0
    %2800 = vdwg.mxu0
    %v2801 = vadd.f32 %v1793, %v2763
    %v2802 = vadd.f32 %v1794, %v2768
    %v2803 = vadd.f32 %v1795, %v2773
    %v2804 = vadd.f32 %v1796, %v2778
    %v2805 = vadd.f32 %v1797, %v2783
    %v2806 = vadd.f32 %v1798, %v2788
    %v2807 = vadd.f32 %v1799, %v2793
    %v2808 = vadd.f32 %v1800, %v2798
    %v2809 = vld [vmem:[%s3 + $0x10] sm:$0x1]
    %v2810 = vld [vmem:[%s3 + $0x11] sm:$0x1]
    %v2811 = vsel %vm263, %v2801, 0.0
    %2812 = vadd.xlane.f32.xlu0 %v2811
    %v2813 = vpop.xlane.xlu0 %2812
    %v2814 = vsel %vm263, %v2802, 0.0
    %2815 = vadd.xlane.f32.xlu0 %v2814
    %v2816 = vpop.xlane.xlu0 %2815
    %v2817 = vsel %vm263, %v2803, 0.0
    %2818 = vadd.xlane.f32.xlu0 %v2817
    %v2819 = vpop.xlane.xlu0 %2818
    %v2820 = vsel %vm263, %v2804, 0.0
    %2821 = vadd.xlane.f32.xlu0 %v2820
    %v2822 = vpop.xlane.xlu0 %2821
    %v2823 = vsel %vm263, %v2805, 0.0
    %2824 = vadd.xlane.f32.xlu0 %v2823
    %v2825 = vpop.xlane.xlu0 %2824
    %v2826 = vsel %vm263, %v2806, 0.0
    %2827 = vadd.xlane.f32.xlu0 %v2826
    %v2828 = vpop.xlane.xlu0 %2827
    %v2829 = vsel %vm263, %v2807, 0.0
    %2830 = vadd.xlane.f32.xlu0 %v2829
    %v2831 = vpop.xlane.xlu0 %2830
    %v2832 = vsel %vm263, %v2808, 0.0
    %2833 = vadd.xlane.f32.xlu0 %v2832
    %v2834 = vpop.xlane.xlu0 %2833
    %v2835 = vmul.f32 %v2813, %v1282
    %v2836 = vmul.f32 %v2816, %v1282
    %v2837 = vmul.f32 %v2819, %v1282
    %v2838 = vmul.f32 %v2822, %v1282
    %v2839 = vmul.f32 %v2825, %v1282
    %v2840 = vmul.f32 %v2828, %v1282
    %v2841 = vmul.f32 %v2831, %v1282
    %v2842 = vmul.f32 %v2834, %v1282
    %v2843 = vsub.f32 %v2801, %v2835
    %v2844 = vsub.f32 %v2802, %v2836
    %v2845 = vsub.f32 %v2803, %v2837
    %v2846 = vsub.f32 %v2804, %v2838
    %v2847 = vsub.f32 %v2805, %v2839
    %v2848 = vsub.f32 %v2806, %v2840
    %v2849 = vsub.f32 %v2807, %v2841
    %v2850 = vsub.f32 %v2808, %v2842
    %v2851 = vmul.f32 %v2843, %v2843
    %v2852 = vmul.f32 %v2844, %v2844
    %v2853 = vmul.f32 %v2845, %v2845
    %v2854 = vmul.f32 %v2846, %v2846
    %v2855 = vmul.f32 %v2847, %v2847
    %v2856 = vmul.f32 %v2848, %v2848
    %v2857 = vmul.f32 %v2849, %v2849
    %v2858 = vmul.f32 %v2850, %v2850
    %v2859 = vsel %vm263, %v2851, 0.0
    %2860 = vadd.xlane.f32.xlu0 %v2859
    %v2861 = vpop.xlane.xlu0 %2860
    %v2862 = vsel %vm263, %v2852, 0.0
    %2863 = vadd.xlane.f32.xlu0 %v2862
    %v2864 = vpop.xlane.xlu0 %2863
    %v2865 = vsel %vm263, %v2853, 0.0
    %2866 = vadd.xlane.f32.xlu0 %v2865
    %v2867 = vpop.xlane.xlu0 %2866
    %v2868 = vsel %vm263, %v2854, 0.0
    %2869 = vadd.xlane.f32.xlu0 %v2868
    %v2870 = vpop.xlane.xlu0 %2869
    %v2871 = vsel %vm263, %v2855, 0.0
    %2872 = vadd.xlane.f32.xlu0 %v2871
    %v2873 = vpop.xlane.xlu0 %2872
    %v2874 = vsel %vm263, %v2856, 0.0
    %2875 = vadd.xlane.f32.xlu0 %v2874
    %v2876 = vpop.xlane.xlu0 %2875
    %v2877 = vsel %vm263, %v2857, 0.0
    %2878 = vadd.xlane.f32.xlu0 %v2877
    %v2879 = vpop.xlane.xlu0 %2878
    %v2880 = vsel %vm263, %v2858, 0.0
    %2881 = vadd.xlane.f32.xlu0 %v2880
    %v2882 = vpop.xlane.xlu0 %2881
    %v2883 = vmul.f32 %v2861, %v1282
    %v2884 = vmul.f32 %v2864, %v1282
    %v2885 = vmul.f32 %v2867, %v1282
    %v2886 = vmul.f32 %v2870, %v1282
    %v2887 = vmul.f32 %v2873, %v1282
    %v2888 = vmul.f32 %v2876, %v1282
    %v2889 = vmul.f32 %v2879, %v1282
    %v2890 = vmul.f32 %v2882, %v1282
    %v2891 = vadd.f32 %v2883, 1e-05
    %v2892 = vadd.f32 %v2884, 1e-05
    %v2893 = vadd.f32 %v2885, 1e-05
    %v2894 = vadd.f32 %v2886, 1e-05
    %v2895 = vadd.f32 %v2887, 1e-05
    %v2896 = vadd.f32 %v2888, 1e-05
    %v2897 = vadd.f32 %v2889, 1e-05
    %v2898 = vadd.f32 %v2890, 1e-05
    %v2899 = vrsqrt.pop %v2891
    %v2900 = vrsqrt.pop %v2892
    %v2901 = vrsqrt.pop %v2893
    %v2902 = vrsqrt.pop %v2894
    %v2903 = vrsqrt.pop %v2895
    %v2904 = vrsqrt.pop %v2896
    %v2905 = vrsqrt.pop %v2897
    %v2906 = vrsqrt.pop %v2898
    %v2907 = vmul.f32 %v2843, %v2899
    %v2908 = vmul.f32 %v2844, %v2900
    %v2909 = vmul.f32 %v2845, %v2901
    %v2910 = vmul.f32 %v2846, %v2902
    %v2911 = vmul.f32 %v2847, %v2903
    %v2912 = vmul.f32 %v2848, %v2904
    %v2913 = vmul.f32 %v2849, %v2905
    %v2914 = vmul.f32 %v2850, %v2906
    %v2915 = vlaneseq
    %v2916 = vshrl.u32 %v2915, 7
    %v2917 = vsub.s32 0, %v2916
    %v2918 = vrot.slane %v2809, %v2917
    %v2919 = vmul.f32 %v2907, %v2918
    %v2920 = vmul.f32 %v2908, %v2918
    %v2921 = vmul.f32 %v2909, %v2918
    %v2922 = vmul.f32 %v2910, %v2918
    %v2923 = vmul.f32 %v2911, %v2918
    %v2924 = vmul.f32 %v2912, %v2918
    %v2925 = vmul.f32 %v2913, %v2918
    %v2926 = vmul.f32 %v2914, %v2918
    %v2927 = vlaneseq
    %v2928 = vshrl.u32 %v2927, 7
    %v2929 = vsub.s32 0, %v2928
    %v2930 = vrot.slane %v2810, %v2929
    %v2931 = vadd.f32 %v2919, %v2930
    %v2932 = vadd.f32 %v2920, %v2930
    %v2933 = vadd.f32 %v2921, %v2930
    %v2934 = vadd.f32 %v2922, %v2930
    %v2935 = vadd.f32 %v2923, %v2930
    %v2936 = vadd.f32 %v2924, %v2930
    %v2937 = vadd.f32 %v2925, %v2930
    %v2938 = vadd.f32 %v2926, %v2930
    %v2939 = vld [vmem:[%s3 + $0xe] sm:$0x1]
    %v2940 = vlaneseq
    %v2941 = vshrl.u32 %v2940, 7
    %v2942 = vsub.s32 0, %v2941
    %v2943 = vrot.slane %v2939, %v2942
    %v2945 = vsel %vm263, %v2931, 0
    %v2948 = vsel %vm263, %v2932, 0
    %v2951 = vsel %vm263, %v2933, 0
    %v2954 = vsel %vm263, %v2934, 0
    %v2957 = vsel %vm263, %v2935, 0
    %v2960 = vsel %vm263, %v2936, 0
    %v2963 = vsel %vm263, %v2937, 0
    %v2966 = vsel %vm263, %v2938, 0
    %2968 = vmatprep.subr.mxu0 0.0
    %2969 = vmatpush1.msra.mxu0 %v1809
    %2970 = vmatprep.subr.mxu0 0.0
    %2971 = vmatpush1.msra.mxu0 %v1810
    %2972 = vmatprep.subr.mxu0 0.0
    %2973 = vmatpush1.msra.mxu0 0.0
    %2974 = vmatprep.subr.mxu0 0.0
    %2975 = vmatpush1.msra.mxu0 0.0
    %2976 = vmatprep.subr.mxu0 0.0
    %2977 = vmatpush1.msra.mxu0 0.0
    %2978 = vmatprep.subr.mxu0 0.0
    %2979 = vmatpush1.msra.mxu0 0.0
    %2980 = vmatprep.subr.mxu0 0.0
    %2981 = vmatpush1.msra.mxu0 0.0
    %2982 = vmatprep.subr.mxu0 0.0
    %2983 = vmatpush1.msra.mxu0 0.0
    %2984 = vmatprep.subr.mxu0 0.0
    %2985 = vmatpush1.msra.mxu0 0.0
    %2986 = vmatprep.subr.mxu0 0.0
    %2987 = vmatpush1.msra.mxu0 0.0
    %2988 = vmatprep.subr.mxu0 0.0
    %2989 = vmatpush1.msra.mxu0 0.0
    %2990 = vmatprep.subr.mxu0 0.0
    %2991 = vmatpush1.msra.mxu0 0.0
    %2992 = vmatprep.subr.mxu0 0.0
    %2993 = vmatpush1.msra.mxu0 0.0
    %2994 = vmatprep.subr.mxu0 0.0
    %2995 = vmatpush1.msra.mxu0 0.0
    %2996 = vmatprep.subr.mxu0 0.0
    %2997 = vmatpush1.msra.mxu0 0.0
    %2998 = vmatprep.subr.mxu0 0.0
    %2999 = vmatpush1.msra.mxu0 0.0
    %3000 = vmatprep.subr.mxu0 0.0
    %3001 = vmatpush1.msra.mxu0 0.0
    %3002 = vmatprep.subr.mxu0 0.0
    %3003 = vmatpush1.msra.mxu0 0.0
    %3004 = vmatprep.subr.mxu0 0.0
    %3005 = vmatpush1.msra.mxu0 0.0
    %3006 = vmatprep.subr.mxu0 0.0
    %3007 = vmatpush1.msra.mxu0 0.0
    %3008 = vmatprep.subr.mxu0 0.0
    %3009 = vmatpush1.msra.mxu0 0.0
    %3010 = vmatprep.subr.mxu0 0.0
    %3011 = vmatpush1.msra.mxu0 0.0
    %3012 = vmatprep.subr.mxu0 0.0
    %3013 = vmatpush1.msra.mxu0 0.0
    %3014 = vmatprep.subr.mxu0 0.0
    %3015 = vmatpush1.msra.mxu0 0.0
    %3016 = vmatprep.subr.mxu0 0.0
    %3017 = vmatpush1.msra.mxu0 0.0
    %3018 = vmatprep.subr.mxu0 0.0
    %3019 = vmatpush1.msra.mxu0 0.0
    %3020 = vmatprep.subr.mxu0 0.0
    %3021 = vmatpush1.msra.mxu0 0.0
    %3022 = vmatprep.subr.mxu0 0.0
    %3023 = vmatpush1.msra.mxu0 0.0
    %3024 = vmatprep.subr.mxu0 0.0
    %3025 = vmatpush1.msra.mxu0 0.0
    %3026 = vmatprep.subr.mxu0 0.0
    %3027 = vmatpush1.msra.mxu0 0.0
    %3028 = vmatprep.subr.mxu0 0.0
    %3029 = vmatpush1.msra.mxu0 0.0
    %3030 = vmatprep.subr.mxu0 0.0
    %3031 = vmatpush1.msra.mxu0 0.0
    %3032 = vmatprep.mubr.f32.mxu0 0.0
    %3033 = vmatmul.mubr.f32.gmra.mrb[0].mxu0 %v2945
    %v3034 = vpop.f32.mrb[0].mxu0
    %v3035 = vadd.f32 %v2943, %v3034
    %v3036 = vpop.f32.mrb[0].mxu0
    %3037 = vmatprep.mubr.f32.mxu0 0.0
    %3038 = vmatmul.mubr.f32.gmra.mrb[0].mxu0 %v2948
    %v3039 = vpop.f32.mrb[0].mxu0
    %v3040 = vadd.f32 %v2943, %v3039
    %v3041 = vpop.f32.mrb[0].mxu0
    %3042 = vmatprep.mubr.f32.mxu0 0.0
    %3043 = vmatmul.mubr.f32.gmra.mrb[0].mxu0 %v2951
    %v3044 = vpop.f32.mrb[0].mxu0
    %v3045 = vadd.f32 %v2943, %v3044
    %v3046 = vpop.f32.mrb[0].mxu0
    %3047 = vmatprep.mubr.f32.mxu0 0.0
    %3048 = vmatmul.mubr.f32.gmra.mrb[0].mxu0 %v2954
    %v3049 = vpop.f32.mrb[0].mxu0
    %v3050 = vadd.f32 %v2943, %v3049
    %v3051 = vpop.f32.mrb[0].mxu0
    %3052 = vmatprep.mubr.f32.mxu0 0.0
    %3053 = vmatmul.mubr.f32.gmra.mrb[0].mxu0 %v2957
    %v3054 = vpop.f32.mrb[0].mxu0
    %v3055 = vadd.f32 %v2943, %v3054
    %v3056 = vpop.f32.mrb[0].mxu0
    %3057 = vmatprep.mubr.f32.mxu0 0.0
    %3058 = vmatmul.mubr.f32.gmra.mrb[0].mxu0 %v2960
    %v3059 = vpop.f32.mrb[0].mxu0
    %v3060 = vadd.f32 %v2943, %v3059
    %v3061 = vpop.f32.mrb[0].mxu0
    %3062 = vmatprep.mubr.f32.mxu0 0.0
    %3063 = vmatmul.mubr.f32.gmra.mrb[0].mxu0 %v2963
    %v3064 = vpop.f32.mrb[0].mxu0
    %v3065 = vadd.f32 %v2943, %v3064
    %v3066 = vpop.f32.mrb[0].mxu0
    %3067 = vmatprep.mubr.f32.mxu0 0.0
    %3068 = vmatmul.mubr.f32.gmra.mrb[0].mxu0 %v2966
    %v3069 = vpop.f32.mrb[0].mxu0
    %v3070 = vadd.f32 %v2943, %v3069
    %v3071 = vpop.f32.mrb[0].mxu0
    %3072 = vdwg.mxu0
    %v3073 = vmax.f32 %v3035, 0.0
    %v3074 = vmax.f32 %v3040, 0.0
    %v3075 = vmax.f32 %v3045, 0.0
    %v3076 = vmax.f32 %v3050, 0.0
    %v3077 = vmax.f32 %v3055, 0.0
    %v3078 = vmax.f32 %v3060, 0.0
    %v3079 = vmax.f32 %v3065, 0.0
    %v3080 = vmax.f32 %v3070, 0.0
    %v3081 = vld [vmem:[%s3 + $0xf] sm:$0x1]
    %v3082 = vlaneseq
    %v3083 = vshrl.u32 %v3082, 7
    %v3084 = vsub.s32 0, %v3083
    %v3085 = vrot.slane %v3081, %v3084
    %v3087 = vsel %vm263, %v3073, 0
    %v3090 = vsel %vm263, %v3074, 0
    %v3093 = vsel %vm263, %v3075, 0
    %v3096 = vsel %vm263, %v3076, 0
    %v3099 = vsel %vm263, %v3077, 0
    %v3102 = vsel %vm263, %v3078, 0
    %v3105 = vsel %vm263, %v3079, 0
    %v3108 = vsel %vm263, %v3080, 0
    %3110 = vmatprep.subr.mxu0 0.0
    %3111 = vmatpush1.msra.mxu0 %v1811
    %3112 = vmatprep.subr.mxu0 0.0
    %3113 = vmatpush1.msra.mxu0 %v1812
    %3114 = vmatprep.subr.mxu0 0.0
    %3115 = vmatpush1.msra.mxu0 0.0
    %3116 = vmatprep.subr.mxu0 0.0
    %3117 = vmatpush1.msra.mxu0 0.0
    %3118 = vmatprep.subr.mxu0 0.0
    %3119 = vmatpush1.msra.mxu0 0.0
    %3120 = vmatprep.subr.mxu0 0.0
    %3121 = vmatpush1.msra.mxu0 0.0
    %3122 = vmatprep.subr.mxu0 0.0
    %3123 = vmatpush1.msra.mxu0 0.0
    %3124 = vmatprep.subr.mxu0 0.0
    %3125 = vmatpush1.msra.mxu0 0.0
    %3126 = vmatprep.subr.mxu0 0.0
    %3127 = vmatpush1.msra.mxu0 0.0
    %3128 = vmatprep.subr.mxu0 0.0
    %3129 = vmatpush1.msra.mxu0 0.0
    %3130 = vmatprep.subr.mxu0 0.0
    %3131 = vmatpush1.msra.mxu0 0.0
    %3132 = vmatprep.subr.mxu0 0.0
    %3133 = vmatpush1.msra.mxu0 0.0
    %3134 = vmatprep.subr.mxu0 0.0
    %3135 = vmatpush1.msra.mxu0 0.0
    %3136 = vmatprep.subr.mxu0 0.0
    %3137 = vmatpush1.msra.mxu0 0.0
    %3138 = vmatprep.subr.mxu0 0.0
    %3139 = vmatpush1.msra.mxu0 0.0
    %3140 = vmatprep.subr.mxu0 0.0
    %3141 = vmatpush1.msra.mxu0 0.0
    %3142 = vmatprep.subr.mxu0 0.0
    %3143 = vmatpush1.msra.mxu0 0.0
    %3144 = vmatprep.subr.mxu0 0.0
    %3145 = vmatpush1.msra.mxu0 0.0
    %3146 = vmatprep.subr.mxu0 0.0
    %3147 = vmatpush1.msra.mxu0 0.0
    %3148 = vmatprep.subr.mxu0 0.0
    %3149 = vmatpush1.msra.mxu0 0.0
    %3150 = vmatprep.subr.mxu0 0.0
    %3151 = vmatpush1.msra.mxu0 0.0
    %3152 = vmatprep.subr.mxu0 0.0
    %3153 = vmatpush1.msra.mxu0 0.0
    %3154 = vmatprep.subr.mxu0 0.0
    %3155 = vmatpush1.msra.mxu0 0.0
    %3156 = vmatprep.subr.mxu0 0.0
    %3157 = vmatpush1.msra.mxu0 0.0
    %3158 = vmatprep.subr.mxu0 0.0
    %3159 = vmatpush1.msra.mxu0 0.0
    %3160 = vmatprep.subr.mxu0 0.0
    %3161 = vmatpush1.msra.mxu0 0.0
    %3162 = vmatprep.subr.mxu0 0.0
    %3163 = vmatpush1.msra.mxu0 0.0
    %3164 = vmatprep.subr.mxu0 0.0
    %3165 = vmatpush1.msra.mxu0 0.0
    %3166 = vmatprep.subr.mxu0 0.0
    %3167 = vmatpush1.msra.mxu0 0.0
    %3168 = vmatprep.subr.mxu0 0.0
    %3169 = vmatpush1.msra.mxu0 0.0
    %3170 = vmatprep.subr.mxu0 0.0
    %3171 = vmatpush1.msra.mxu0 0.0
    %3172 = vmatprep.subr.mxu0 0.0
    %3173 = vmatpush1.msra.mxu0 0.0
    %3174 = vmatprep.mubr.f32.mxu0 0.0
    %3175 = vmatmul.mubr.f32.gmra.mrb[0].mxu0 %v3087
    %v3176 = vpop.f32.mrb[0].mxu0
    %v3177 = vadd.f32 %v3085, %v3176
    %v3178 = vpop.f32.mrb[0].mxu0
    %3179 = vmatprep.mubr.f32.mxu0 0.0
    %3180 = vmatmul.mubr.f32.gmra.mrb[0].mxu0 %v3090
    %v3181 = vpop.f32.mrb[0].mxu0
    %v3182 = vadd.f32 %v3085, %v3181
    %v3183 = vpop.f32.mrb[0].mxu0
    %3184 = vmatprep.mubr.f32.mxu0 0.0
    %3185 = vmatmul.mubr.f32.gmra.mrb[0].mxu0 %v3093
    %v3186 = vpop.f32.mrb[0].mxu0
    %v3187 = vadd.f32 %v3085, %v3186
    %v3188 = vpop.f32.mrb[0].mxu0
    %3189 = vmatprep.mubr.f32.mxu0 0.0
    %3190 = vmatmul.mubr.f32.gmra.mrb[0].mxu0 %v3096
    %v3191 = vpop.f32.mrb[0].mxu0
    %v3192 = vadd.f32 %v3085, %v3191
    %v3193 = vpop.f32.mrb[0].mxu0
    %3194 = vmatprep.mubr.f32.mxu0 0.0
    %3195 = vmatmul.mubr.f32.gmra.mrb[0].mxu0 %v3099
    %v3196 = vpop.f32.mrb[0].mxu0
    %v3197 = vadd.f32 %v3085, %v3196
    %v3198 = vpop.f32.mrb[0].mxu0
    %3199 = vmatprep.mubr.f32.mxu0 0.0
    %3200 = vmatmul.mubr.f32.gmra.mrb[0].mxu0 %v3102
    %v3201 = vpop.f32.mrb[0].mxu0
    %v3202 = vadd.f32 %v3085, %v3201
    %v3203 = vpop.f32.mrb[0].mxu0
    %3204 = vmatprep.mubr.f32.mxu0 0.0
    %3205 = vmatmul.mubr.f32.gmra.mrb[0].mxu0 %v3105
    %v3206 = vpop.f32.mrb[0].mxu0
    %v3207 = vadd.f32 %v3085, %v3206
    %v3208 = vpop.f32.mrb[0].mxu0
    %3209 = vmatprep.mubr.f32.mxu0 0.0
    %3210 = vmatmul.mubr.f32.gmra.mrb[0].mxu0 %v3108
    %v3211 = vpop.f32.mrb[0].mxu0
    %v3212 = vadd.f32 %v3085, %v3211
    %v3213 = vpop.f32.mrb[0].mxu0
    %3214 = vdwg.mxu0
    %v3215 = vadd.f32 %v2931, %v3177
    %v3216 = vadd.f32 %v2932, %v3182
    %v3217 = vadd.f32 %v2933, %v3187
    %v3218 = vadd.f32 %v2934, %v3192
    %v3219 = vadd.f32 %v2935, %v3197
    %v3220 = vadd.f32 %v2936, %v3202
    %v3221 = vadd.f32 %v2937, %v3207
    %v3222 = vadd.f32 %v2938, %v3212
    %v3223 = vld [vmem:[%s3 + $0x12] sm:$0x1]
    %v3224 = vld [vmem:[%s3 + $0x13] sm:$0x1]
    %v3225 = vsel %vm263, %v3215, 0.0
    %3226 = vadd.xlane.f32.xlu0 %v3225
    %v3227 = vpop.xlane.xlu0 %3226
    %v3228 = vsel %vm263, %v3216, 0.0
    %3229 = vadd.xlane.f32.xlu0 %v3228
    %v3230 = vpop.xlane.xlu0 %3229
    %v3231 = vsel %vm263, %v3217, 0.0
    %3232 = vadd.xlane.f32.xlu0 %v3231
    %v3233 = vpop.xlane.xlu0 %3232
    %v3234 = vsel %vm263, %v3218, 0.0
    %3235 = vadd.xlane.f32.xlu0 %v3234
    %v3236 = vpop.xlane.xlu0 %3235
    %v3237 = vsel %vm263, %v3219, 0.0
    %3238 = vadd.xlane.f32.xlu0 %v3237
    %v3239 = vpop.xlane.xlu0 %3238
    %v3240 = vsel %vm263, %v3220, 0.0
    %3241 = vadd.xlane.f32.xlu0 %v3240
    %v3242 = vpop.xlane.xlu0 %3241
    %v3243 = vsel %vm263, %v3221, 0.0
    %3244 = vadd.xlane.f32.xlu0 %v3243
    %v3245 = vpop.xlane.xlu0 %3244
    %v3246 = vsel %vm263, %v3222, 0.0
    %3247 = vadd.xlane.f32.xlu0 %v3246
    %v3248 = vpop.xlane.xlu0 %3247
    %v3249 = vmul.f32 %v3227, %v1282
    %v3250 = vmul.f32 %v3230, %v1282
    %v3251 = vmul.f32 %v3233, %v1282
    %v3252 = vmul.f32 %v3236, %v1282
    %v3253 = vmul.f32 %v3239, %v1282
    %v3254 = vmul.f32 %v3242, %v1282
    %v3255 = vmul.f32 %v3245, %v1282
    %v3256 = vmul.f32 %v3248, %v1282
    %v3257 = vsub.f32 %v3215, %v3249
    %v3258 = vsub.f32 %v3216, %v3250
    %v3259 = vsub.f32 %v3217, %v3251
    %v3260 = vsub.f32 %v3218, %v3252
    %v3261 = vsub.f32 %v3219, %v3253
    %v3262 = vsub.f32 %v3220, %v3254
    %v3263 = vsub.f32 %v3221, %v3255
    %v3264 = vsub.f32 %v3222, %v3256
    %v3265 = vmul.f32 %v3257, %v3257
    %v3266 = vmul.f32 %v3258, %v3258
    %v3267 = vmul.f32 %v3259, %v3259
    %v3268 = vmul.f32 %v3260, %v3260
    %v3269 = vmul.f32 %v3261, %v3261
    %v3270 = vmul.f32 %v3262, %v3262
    %v3271 = vmul.f32 %v3263, %v3263
    %v3272 = vmul.f32 %v3264, %v3264
    %v3273 = vsel %vm263, %v3265, 0.0
    %3274 = vadd.xlane.f32.xlu0 %v3273
    %v3275 = vpop.xlane.xlu0 %3274
    %v3276 = vsel %vm263, %v3266, 0.0
    %3277 = vadd.xlane.f32.xlu0 %v3276
    %v3278 = vpop.xlane.xlu0 %3277
    %v3279 = vsel %vm263, %v3267, 0.0
    %3280 = vadd.xlane.f32.xlu0 %v3279
    %v3281 = vpop.xlane.xlu0 %3280
    %v3282 = vsel %vm263, %v3268, 0.0
    %3283 = vadd.xlane.f32.xlu0 %v3282
    %v3284 = vpop.xlane.xlu0 %3283
    %v3285 = vsel %vm263, %v3269, 0.0
    %3286 = vadd.xlane.f32.xlu0 %v3285
    %v3287 = vpop.xlane.xlu0 %3286
    %v3288 = vsel %vm263, %v3270, 0.0
    %3289 = vadd.xlane.f32.xlu0 %v3288
    %v3290 = vpop.xlane.xlu0 %3289
    %v3291 = vsel %vm263, %v3271, 0.0
    %3292 = vadd.xlane.f32.xlu0 %v3291
    %v3293 = vpop.xlane.xlu0 %3292
    %v3294 = vsel %vm263, %v3272, 0.0
    %3295 = vadd.xlane.f32.xlu0 %v3294
    %v3296 = vpop.xlane.xlu0 %3295
    %v3297 = vmul.f32 %v3275, %v1282
    %v3298 = vmul.f32 %v3278, %v1282
    %v3299 = vmul.f32 %v3281, %v1282
    %v3300 = vmul.f32 %v3284, %v1282
    %v3301 = vmul.f32 %v3287, %v1282
    %v3302 = vmul.f32 %v3290, %v1282
    %v3303 = vmul.f32 %v3293, %v1282
    %v3304 = vmul.f32 %v3296, %v1282
    %v3305 = vadd.f32 %v3297, 1e-05
    %v3306 = vadd.f32 %v3298, 1e-05
    %v3307 = vadd.f32 %v3299, 1e-05
    %v3308 = vadd.f32 %v3300, 1e-05
    %v3309 = vadd.f32 %v3301, 1e-05
    %v3310 = vadd.f32 %v3302, 1e-05
    %v3311 = vadd.f32 %v3303, 1e-05
    %v3312 = vadd.f32 %v3304, 1e-05
    %v3313 = vrsqrt.pop %v3305
    %v3314 = vrsqrt.pop %v3306
    %v3315 = vrsqrt.pop %v3307
    %v3316 = vrsqrt.pop %v3308
    %v3317 = vrsqrt.pop %v3309
    %v3318 = vrsqrt.pop %v3310
    %v3319 = vrsqrt.pop %v3311
    %v3320 = vrsqrt.pop %v3312
    %v3321 = vmul.f32 %v3257, %v3313
    %v3322 = vmul.f32 %v3258, %v3314
    %v3323 = vmul.f32 %v3259, %v3315
    %v3324 = vmul.f32 %v3260, %v3316
    %v3325 = vmul.f32 %v3261, %v3317
    %v3326 = vmul.f32 %v3262, %v3318
    %v3327 = vmul.f32 %v3263, %v3319
    %v3328 = vmul.f32 %v3264, %v3320
    %v3329 = vlaneseq
    %v3330 = vshrl.u32 %v3329, 7
    %v3331 = vsub.s32 0, %v3330
    %v3332 = vrot.slane %v3223, %v3331
    %v3333 = vmul.f32 %v3321, %v3332
    %v3334 = vmul.f32 %v3322, %v3332
    %v3335 = vmul.f32 %v3323, %v3332
    %v3336 = vmul.f32 %v3324, %v3332
    %v3337 = vmul.f32 %v3325, %v3332
    %v3338 = vmul.f32 %v3326, %v3332
    %v3339 = vmul.f32 %v3327, %v3332
    %v3340 = vmul.f32 %v3328, %v3332
    %v3341 = vlaneseq
    %v3342 = vshrl.u32 %v3341, 7
    %v3343 = vsub.s32 0, %v3342
    %v3344 = vrot.slane %v3224, %v3343
    %v3345 = vadd.f32 %v3333, %v3344
    %v3346 = vadd.f32 %v3334, %v3344
    %v3347 = vadd.f32 %v3335, %v3344
    %v3348 = vadd.f32 %v3336, %v3344
    %v3349 = vadd.f32 %v3337, %v3344
    %v3350 = vadd.f32 %v3338, %v3344
    %v3351 = vadd.f32 %v3339, %v3344
    %v3352 = vadd.f32 %v3340, %v3344
    %v3353 = vld [vmem:[%s2 + $0xc0] sm:$0xff]
    %v3354 = vld [vmem:[%s2 + $0xc8] sm:$0xff]
    %v3355 = vld [vmem:[%s2 + $0xd0] sm:$0xff]
    %v3356 = vld [vmem:[%s2 + $0xd8] sm:$0xff]
    %v3357 = vld [vmem:[%s2 + $0xe0] sm:$0xff]
    %v3358 = vld [vmem:[%s2 + $0xe8] sm:$0xff]
    %v3359 = vld [vmem:[%s2 + $0xf0] sm:$0xff]
    %v3360 = vld [vmem:[%s2 + $0xf8] sm:$0xff]
    %v3361 = vld [vmem:[%s2 + $0x100] sm:$0xff]
    %v3362 = vld [vmem:[%s2 + $0x108] sm:$0xff]
    %v3363 = vld [vmem:[%s2 + $0x110] sm:$0xff]
    %v3364 = vld [vmem:[%s2 + $0x118] sm:$0xff]
    %v3365 = vld [vmem:[%s3 + $0x14] sm:$0x1]
    %v3366 = vlaneseq
    %v3367 = vshrl.u32 %v3366, 7
    %v3368 = vsub.s32 0, %v3367
    %v3369 = vrot.slane %v3365, %v3368
    %v3371 = vsel %vm263, %v3345, 0
    %v3374 = vsel %vm263, %v3346, 0
    %v3377 = vsel %vm263, %v3347, 0
    %v3380 = vsel %vm263, %v3348, 0
    %v3383 = vsel %vm263, %v3349, 0
    %v3386 = vsel %vm263, %v3350, 0
    %v3389 = vsel %vm263, %v3351, 0
    %v3392 = vsel %vm263, %v3352, 0
    %3394 = vmatprep.subr.mxu0 0.0
    %3395 = vmatpush1.msra.mxu0 %v3353
    %3396 = vmatprep.subr.mxu0 0.0
    %3397 = vmatpush1.msra.mxu0 %v3354
    %3398 = vmatprep.subr.mxu0 0.0
    %3399 = vmatpush1.msra.mxu0 0.0
    %3400 = vmatprep.subr.mxu0 0.0
    %3401 = vmatpush1.msra.mxu0 0.0
    %3402 = vmatprep.subr.mxu0 0.0
    %3403 = vmatpush1.msra.mxu0 0.0
    %3404 = vmatprep.subr.mxu0 0.0
    %3405 = vmatpush1.msra.mxu0 0.0
    %3406 = vmatprep.subr.mxu0 0.0
    %3407 = vmatpush1.msra.mxu0 0.0
    %3408 = vmatprep.subr.mxu0 0.0
    %3409 = vmatpush1.msra.mxu0 0.0
    %3410 = vmatprep.subr.mxu0 0.0
    %3411 = vmatpush1.msra.mxu0 0.0
    %3412 = vmatprep.subr.mxu0 0.0
    %3413 = vmatpush1.msra.mxu0 0.0
    %3414 = vmatprep.subr.mxu0 0.0
    %3415 = vmatpush1.msra.mxu0 0.0
    %3416 = vmatprep.subr.mxu0 0.0
    %3417 = vmatpush1.msra.mxu0 0.0
    %3418 = vmatprep.subr.mxu0 0.0
    %3419 = vmatpush1.msra.mxu0 0.0
    %3420 = vmatprep.subr.mxu0 0.0
    %3421 = vmatpush1.msra.mxu0 0.0
    %3422 = vmatprep.subr.mxu0 0.0
    %3423 = vmatpush1.msra.mxu0 0.0
    %3424 = vmatprep.subr.mxu0 0.0
    %3425 = vmatpush1.msra.mxu0 0.0
    %3426 = vmatprep.subr.mxu0 0.0
    %3427 = vmatpush1.msra.mxu0 0.0
    %3428 = vmatprep.subr.mxu0 0.0
    %3429 = vmatpush1.msra.mxu0 0.0
    %3430 = vmatprep.subr.mxu0 0.0
    %3431 = vmatpush1.msra.mxu0 0.0
    %3432 = vmatprep.subr.mxu0 0.0
    %3433 = vmatpush1.msra.mxu0 0.0
    %3434 = vmatprep.subr.mxu0 0.0
    %3435 = vmatpush1.msra.mxu0 0.0
    %3436 = vmatprep.subr.mxu0 0.0
    %3437 = vmatpush1.msra.mxu0 0.0
    %3438 = vmatprep.subr.mxu0 0.0
    %3439 = vmatpush1.msra.mxu0 0.0
    %3440 = vmatprep.subr.mxu0 0.0
    %3441 = vmatpush1.msra.mxu0 0.0
    %3442 = vmatprep.subr.mxu0 0.0
    %3443 = vmatpush1.msra.mxu0 0.0
    %3444 = vmatprep.subr.mxu0 0.0
    %3445 = vmatpush1.msra.mxu0 0.0
    %3446 = vmatprep.subr.mxu0 0.0
    %3447 = vmatpush1.msra.mxu0 0.0
    %3448 = vmatprep.subr.mxu0 0.0
    %3449 = vmatpush1.msra.mxu0 0.0
    %3450 = vmatprep.subr.mxu0 0.0
    %3451 = vmatpush1.msra.mxu0 0.0
    %3452 = vmatprep.subr.mxu0 0.0
    %3453 = vmatpush1.msra.mxu0 0.0
    %3454 = vmatprep.subr.mxu0 0.0
    %3455 = vmatpush1.msra.mxu0 0.0
    %3456 = vmatprep.subr.mxu0 0.0
    %3457 = vmatpush1.msra.mxu0 0.0
    %3458 = vmatprep.mubr.f32.mxu0 0.0
    %3459 = vmatmul.mubr.f32.gmra.mrb[0].mxu0 %v3371
    %v3460 = vpop.f32.mrb[0].mxu0
    %v3461 = vadd.f32 %v3369, %v3460
    %v3462 = vpop.f32.mrb[0].mxu0
    %3463 = vmatprep.mubr.f32.mxu0 0.0
    %3464 = vmatmul.mubr.f32.gmra.mrb[0].mxu0 %v3374
    %v3465 = vpop.f32.mrb[0].mxu0
    %v3466 = vadd.f32 %v3369, %v3465
    %v3467 = vpop.f32.mrb[0].mxu0
    %3468 = vmatprep.mubr.f32.mxu0 0.0
    %3469 = vmatmul.mubr.f32.gmra.mrb[0].mxu0 %v3377
    %v3470 = vpop.f32.mrb[0].mxu0
    %v3471 = vadd.f32 %v3369, %v3470
    %v3472 = vpop.f32.mrb[0].mxu0
    %3473 = vmatprep.mubr.f32.mxu0 0.0
    %3474 = vmatmul.mubr.f32.gmra.mrb[0].mxu0 %v3380
    %v3475 = vpop.f32.mrb[0].mxu0
    %v3476 = vadd.f32 %v3369, %v3475
    %v3477 = vpop.f32.mrb[0].mxu0
    %3478 = vmatprep.mubr.f32.mxu0 0.0
    %3479 = vmatmul.mubr.f32.gmra.mrb[0].mxu0 %v3383
    %v3480 = vpop.f32.mrb[0].mxu0
    %v3481 = vadd.f32 %v3369, %v3480
    %v3482 = vpop.f32.mrb[0].mxu0
    %3483 = vmatprep.mubr.f32.mxu0 0.0
    %3484 = vmatmul.mubr.f32.gmra.mrb[0].mxu0 %v3386
    %v3485 = vpop.f32.mrb[0].mxu0
    %v3486 = vadd.f32 %v3369, %v3485
    %v3487 = vpop.f32.mrb[0].mxu0
    %3488 = vmatprep.mubr.f32.mxu0 0.0
    %3489 = vmatmul.mubr.f32.gmra.mrb[0].mxu0 %v3389
    %v3490 = vpop.f32.mrb[0].mxu0
    %v3491 = vadd.f32 %v3369, %v3490
    %v3492 = vpop.f32.mrb[0].mxu0
    %3493 = vmatprep.mubr.f32.mxu0 0.0
    %3494 = vmatmul.mubr.f32.gmra.mrb[0].mxu0 %v3392
    %v3495 = vpop.f32.mrb[0].mxu0
    %v3496 = vadd.f32 %v3369, %v3495
    %v3497 = vpop.f32.mrb[0].mxu0
    %3498 = vdwg.mxu0
    %v3499 = vld [vmem:[%s3 + $0x15] sm:$0x1]
    %v3500 = vlaneseq
    %v3501 = vshrl.u32 %v3500, 7
    %v3502 = vsub.s32 0, %v3501
    %v3503 = vrot.slane %v3499, %v3502
    %3504 = vmatprep.subr.mxu0 0.0
    %3505 = vmatpush1.msra.mxu0 %v3355
    %3506 = vmatprep.subr.mxu0 0.0
    %3507 = vmatpush1.msra.mxu0 %v3356
    %3508 = vmatprep.subr.mxu0 0.0
    %3509 = vmatpush1.msra.mxu0 0.0
    %3510 = vmatprep.subr.mxu0 0.0
    %3511 = vmatpush1.msra.mxu0 0.0
    %3512 = vmatprep.subr.mxu0 0.0
    %3513 = vmatpush1.msra.mxu0 0.0
    %3514 = vmatprep.subr.mxu0 0.0
    %3515 = vmatpush1.msra.mxu0 0.0
    %3516 = vmatprep.subr.mxu0 0.0
    %3517 = vmatpush1.msra.mxu0 0.0
    %3518 = vmatprep.subr.mxu0 0.0
    %3519 = vmatpush1.msra.mxu0 0.0
    %3520 = vmatprep.subr.mxu0 0.0
    %3521 = vmatpush1.msra.mxu0 0.0
    %3522 = vmatprep.subr.mxu0 0.0
    %3523 = vmatpush1.msra.mxu0 0.0
    %3524 = vmatprep.subr.mxu0 0.0
    %3525 = vmatpush1.msra.mxu0 0.0
    %3526 = vmatprep.subr.mxu0 0.0
    %3527 = vmatpush1.msra.mxu0 0.0
    %3528 = vmatprep.subr.mxu0 0.0
    %3529 = vmatpush1.msra.mxu0 0.0
    %3530 = vmatprep.subr.mxu0 0.0
    %3531 = vmatpush1.msra.mxu0 0.0
    %3532 = vmatprep.subr.mxu0 0.0
    %3533 = vmatpush1.msra.mxu0 0.0
    %3534 = vmatprep.subr.mxu0 0.0
    %3535 = vmatpush1.msra.mxu0 0.0
    %3536 = vmatprep.subr.mxu0 0.0
    %3537 = vmatpush1.msra.mxu0 0.0
    %3538 = vmatprep.subr.mxu0 0.0
    %3539 = vmatpush1.msra.mxu0 0.0
    %3540 = vmatprep.subr.mxu0 0.0
    %3541 = vmatpush1.msra.mxu0 0.0
    %3542 = vmatprep.subr.mxu0 0.0
    %3543 = vmatpush1.msra.mxu0 0.0
    %3544 = vmatprep.subr.mxu0 0.0
    %3545 = vmatpush1.msra.mxu0 0.0
    %3546 = vmatprep.subr.mxu0 0.0
    %3547 = vmatpush1.msra.mxu0 0.0
    %3548 = vmatprep.subr.mxu0 0.0
    %3549 = vmatpush1.msra.mxu0 0.0
    %3550 = vmatprep.subr.mxu0 0.0
    %3551 = vmatpush1.msra.mxu0 0.0
    %3552 = vmatprep.subr.mxu0 0.0
    %3553 = vmatpush1.msra.mxu0 0.0
    %3554 = vmatprep.subr.mxu0 0.0
    %3555 = vmatpush1.msra.mxu0 0.0
    %3556 = vmatprep.subr.mxu0 0.0
    %3557 = vmatpush1.msra.mxu0 0.0
    %3558 = vmatprep.subr.mxu0 0.0
    %3559 = vmatpush1.msra.mxu0 0.0
    %3560 = vmatprep.subr.mxu0 0.0
    %3561 = vmatpush1.msra.mxu0 0.0
    %3562 = vmatprep.subr.mxu0 0.0
    %3563 = vmatpush1.msra.mxu0 0.0
    %3564 = vmatprep.subr.mxu0 0.0
    %3565 = vmatpush1.msra.mxu0 0.0
    %3566 = vmatprep.subr.mxu0 0.0
    %3567 = vmatpush1.msra.mxu0 0.0
    %3568 = vmatprep.mubr.f32.mxu0 0.0
    %3569 = vmatmul.mubr.f32.gmra.mrb[0].mxu0 %v3371
    %v3570 = vpop.f32.mrb[0].mxu0
    %v3571 = vadd.f32 %v3503, %v3570
    %v3572 = vpop.f32.mrb[0].mxu0
    %3573 = vmatprep.mubr.f32.mxu0 0.0
    %3574 = vmatmul.mubr.f32.gmra.mrb[0].mxu0 %v3374
    %v3575 = vpop.f32.mrb[0].mxu0
    %v3576 = vadd.f32 %v3503, %v3575
    %v3577 = vpop.f32.mrb[0].mxu0
    %3578 = vmatprep.mubr.f32.mxu0 0.0
    %3579 = vmatmul.mubr.f32.gmra.mrb[0].mxu0 %v3377
    %v3580 = vpop.f32.mrb[0].mxu0
    %v3581 = vadd.f32 %v3503, %v3580
    %v3582 = vpop.f32.mrb[0].mxu0
    %3583 = vmatprep.mubr.f32.mxu0 0.0
    %3584 = vmatmul.mubr.f32.gmra.mrb[0].mxu0 %v3380
    %v3585 = vpop.f32.mrb[0].mxu0
    %v3586 = vadd.f32 %v3503, %v3585
    %v3587 = vpop.f32.mrb[0].mxu0
    %3588 = vmatprep.mubr.f32.mxu0 0.0
    %3589 = vmatmul.mubr.f32.gmra.mrb[0].mxu0 %v3383
    %v3590 = vpop.f32.mrb[0].mxu0
    %v3591 = vadd.f32 %v3503, %v3590
    %v3592 = vpop.f32.mrb[0].mxu0
    %3593 = vmatprep.mubr.f32.mxu0 0.0
    %3594 = vmatmul.mubr.f32.gmra.mrb[0].mxu0 %v3386
    %v3595 = vpop.f32.mrb[0].mxu0
    %v3596 = vadd.f32 %v3503, %v3595
    %v3597 = vpop.f32.mrb[0].mxu0
    %3598 = vmatprep.mubr.f32.mxu0 0.0
    %3599 = vmatmul.mubr.f32.gmra.mrb[0].mxu0 %v3389
    %v3600 = vpop.f32.mrb[0].mxu0
    %v3601 = vadd.f32 %v3503, %v3600
    %v3602 = vpop.f32.mrb[0].mxu0
    %3603 = vmatprep.mubr.f32.mxu0 0.0
    %3604 = vmatmul.mubr.f32.gmra.mrb[0].mxu0 %v3392
    %v3605 = vpop.f32.mrb[0].mxu0
    %v3606 = vadd.f32 %v3503, %v3605
    %v3607 = vpop.f32.mrb[0].mxu0
    %3608 = vdwg.mxu0
    %v3609 = vld [vmem:[%s3 + $0x16] sm:$0x1]
    %v3610 = vlaneseq
    %v3611 = vshrl.u32 %v3610, 7
    %v3612 = vsub.s32 0, %v3611
    %v3613 = vrot.slane %v3609, %v3612
    %3614 = vmatprep.subr.mxu0 0.0
    %3615 = vmatpush1.msra.mxu0 %v3357
    %3616 = vmatprep.subr.mxu0 0.0
    %3617 = vmatpush1.msra.mxu0 %v3358
    %3618 = vmatprep.subr.mxu0 0.0
    %3619 = vmatpush1.msra.mxu0 0.0
    %3620 = vmatprep.subr.mxu0 0.0
    %3621 = vmatpush1.msra.mxu0 0.0
    %3622 = vmatprep.subr.mxu0 0.0
    %3623 = vmatpush1.msra.mxu0 0.0
    %3624 = vmatprep.subr.mxu0 0.0
    %3625 = vmatpush1.msra.mxu0 0.0
    %3626 = vmatprep.subr.mxu0 0.0
    %3627 = vmatpush1.msra.mxu0 0.0
    %3628 = vmatprep.subr.mxu0 0.0
    %3629 = vmatpush1.msra.mxu0 0.0
    %3630 = vmatprep.subr.mxu0 0.0
    %3631 = vmatpush1.msra.mxu0 0.0
    %3632 = vmatprep.subr.mxu0 0.0
    %3633 = vmatpush1.msra.mxu0 0.0
    %3634 = vmatprep.subr.mxu0 0.0
    %3635 = vmatpush1.msra.mxu0 0.0
    %3636 = vmatprep.subr.mxu0 0.0
    %3637 = vmatpush1.msra.mxu0 0.0
    %3638 = vmatprep.subr.mxu0 0.0
    %3639 = vmatpush1.msra.mxu0 0.0
    %3640 = vmatprep.subr.mxu0 0.0
    %3641 = vmatpush1.msra.mxu0 0.0
    %3642 = vmatprep.subr.mxu0 0.0
    %3643 = vmatpush1.msra.mxu0 0.0
    %3644 = vmatprep.subr.mxu0 0.0
    %3645 = vmatpush1.msra.mxu0 0.0
    %3646 = vmatprep.subr.mxu0 0.0
    %3647 = vmatpush1.msra.mxu0 0.0
    %3648 = vmatprep.subr.mxu0 0.0
    %3649 = vmatpush1.msra.mxu0 0.0
    %3650 = vmatprep.subr.mxu0 0.0
    %3651 = vmatpush1.msra.mxu0 0.0
    %3652 = vmatprep.subr.mxu0 0.0
    %3653 = vmatpush1.msra.mxu0 0.0
    %3654 = vmatprep.subr.mxu0 0.0
    %3655 = vmatpush1.msra.mxu0 0.0
    %3656 = vmatprep.subr.mxu0 0.0
    %3657 = vmatpush1.msra.mxu0 0.0
    %3658 = vmatprep.subr.mxu0 0.0
    %3659 = vmatpush1.msra.mxu0 0.0
    %3660 = vmatprep.subr.mxu0 0.0
    %3661 = vmatpush1.msra.mxu0 0.0
    %3662 = vmatprep.subr.mxu0 0.0
    %3663 = vmatpush1.msra.mxu0 0.0
    %3664 = vmatprep.subr.mxu0 0.0
    %3665 = vmatpush1.msra.mxu0 0.0
    %3666 = vmatprep.subr.mxu0 0.0
    %3667 = vmatpush1.msra.mxu0 0.0
    %3668 = vmatprep.subr.mxu0 0.0
    %3669 = vmatpush1.msra.mxu0 0.0
    %3670 = vmatprep.subr.mxu0 0.0
    %3671 = vmatpush1.msra.mxu0 0.0
    %3672 = vmatprep.subr.mxu0 0.0
    %3673 = vmatpush1.msra.mxu0 0.0
    %3674 = vmatprep.subr.mxu0 0.0
    %3675 = vmatpush1.msra.mxu0 0.0
    %3676 = vmatprep.subr.mxu0 0.0
    %3677 = vmatpush1.msra.mxu0 0.0
    %3678 = vmatprep.mubr.f32.mxu0 0.0
    %3679 = vmatmul.mubr.f32.gmra.mrb[0].mxu0 %v3371
    %v3680 = vpop.f32.mrb[0].mxu0
    %v3681 = vadd.f32 %v3613, %v3680
    %v3682 = vpop.f32.mrb[0].mxu0
    %3683 = vmatprep.mubr.f32.mxu0 0.0
    %3684 = vmatmul.mubr.f32.gmra.mrb[0].mxu0 %v3374
    %v3685 = vpop.f32.mrb[0].mxu0
    %v3686 = vadd.f32 %v3613, %v3685
    %v3687 = vpop.f32.mrb[0].mxu0
    %3688 = vmatprep.mubr.f32.mxu0 0.0
    %3689 = vmatmul.mubr.f32.gmra.mrb[0].mxu0 %v3377
    %v3690 = vpop.f32.mrb[0].mxu0
    %v3691 = vadd.f32 %v3613, %v3690
    %v3692 = vpop.f32.mrb[0].mxu0
    %3693 = vmatprep.mubr.f32.mxu0 0.0
    %3694 = vmatmul.mubr.f32.gmra.mrb[0].mxu0 %v3380
    %v3695 = vpop.f32.mrb[0].mxu0
    %v3696 = vadd.f32 %v3613, %v3695
    %v3697 = vpop.f32.mrb[0].mxu0
    %3698 = vmatprep.mubr.f32.mxu0 0.0
    %3699 = vmatmul.mubr.f32.gmra.mrb[0].mxu0 %v3383
    %v3700 = vpop.f32.mrb[0].mxu0
    %v3701 = vadd.f32 %v3613, %v3700
    %v3702 = vpop.f32.mrb[0].mxu0
    %3703 = vmatprep.mubr.f32.mxu0 0.0
    %3704 = vmatmul.mubr.f32.gmra.mrb[0].mxu0 %v3386
    %v3705 = vpop.f32.mrb[0].mxu0
    %v3706 = vadd.f32 %v3613, %v3705
    %v3707 = vpop.f32.mrb[0].mxu0
    %3708 = vmatprep.mubr.f32.mxu0 0.0
    %3709 = vmatmul.mubr.f32.gmra.mrb[0].mxu0 %v3389
    %v3710 = vpop.f32.mrb[0].mxu0
    %v3711 = vadd.f32 %v3613, %v3710
    %v3712 = vpop.f32.mrb[0].mxu0
    %3713 = vmatprep.mubr.f32.mxu0 0.0
    %3714 = vmatmul.mubr.f32.gmra.mrb[0].mxu0 %v3392
    %v3715 = vpop.f32.mrb[0].mxu0
    %v3716 = vadd.f32 %v3613, %v3715
    %v3717 = vpop.f32.mrb[0].mxu0
    %3718 = vdwg.mxu0
    %v3720 = vsel %vm263, %v3461, 0
    %v3723 = vsel %vm263, %v3466, 0
    %v3726 = vsel %vm263, %v3471, 0
    %v3729 = vsel %vm263, %v3476, 0
    %v3732 = vsel %vm263, %v3571, 0
    %v3735 = vsel %vm263, %v3576, 0
    %v3738 = vsel %vm263, %v3581, 0
    %v3741 = vsel %vm263, %v3586, 0
    %3743 = vmatprep.subr.mxu0 0.0
    %3744 = vmatpush1.xpose.msra.mxu0 %v3732
    %3745 = vmatprep.subr.mxu0 0.0
    %3746 = vmatpush1.xpose.msra.mxu0 %v3735
    %3747 = vmatprep.subr.mxu0 0.0
    %3748 = vmatpush1.xpose.msra.mxu0 %v3738
    %3749 = vmatprep.subr.mxu0 0.0
    %3750 = vmatpush1.xpose.msra.mxu0 %v3741
    %3751 = vmatprep.subr.mxu0 0.0
    %3752 = vmatpush1.xpose.msra.mxu0 0.0
    %3753 = vmatprep.subr.mxu0 0.0
    %3754 = vmatpush1.xpose.msra.mxu0 0.0
    %3755 = vmatprep.subr.mxu0 0.0
    %3756 = vmatpush1.xpose.msra.mxu0 0.0
    %3757 = vmatprep.subr.mxu0 0.0
    %3758 = vmatpush1.xpose.msra.mxu0 0.0
    %3759 = vmatprep.subr.mxu0 0.0
    %3760 = vmatpush1.xpose.msra.mxu0 0.0
    %3761 = vmatprep.subr.mxu0 0.0
    %3762 = vmatpush1.xpose.msra.mxu0 0.0
    %3763 = vmatprep.subr.mxu0 0.0
    %3764 = vmatpush1.xpose.msra.mxu0 0.0
    %3765 = vmatprep.subr.mxu0 0.0
    %3766 = vmatpush1.xpose.msra.mxu0 0.0
    %3767 = vmatprep.subr.mxu0 0.0
    %3768 = vmatpush1.xpose.msra.mxu0 0.0
    %3769 = vmatprep.subr.mxu0 0.0
    %3770 = vmatpush1.xpose.msra.mxu0 0.0
    %3771 = vmatprep.subr.mxu0 0.0
    %3772 = vmatpush1.xpose.msra.mxu0 0.0
    %3773 = vmatprep.subr.mxu0 0.0
    %3774 = vmatpush1.xpose.msra.mxu0 0.0
    %3775 = vmatprep.subr.mxu0 0.0
    %3776 = vmatpush1.xpose.msra.mxu0 0.0
    %3777 = vmatprep.subr.mxu0 0.0
    %3778 = vmatpush1.xpose.msra.mxu0 0.0
    %3779 = vmatprep.subr.mxu0 0.0
    %3780 = vmatpush1.xpose.msra.mxu0 0.0
    %3781 = vmatprep.subr.mxu0 0.0
    %3782 = vmatpush1.xpose.msra.mxu0 0.0
    %3783 = vmatprep.subr.mxu0 0.0
    %3784 = vmatpush1.xpose.msra.mxu0 0.0
    %3785 = vmatprep.subr.mxu0 0.0
    %3786 = vmatpush1.xpose.msra.mxu0 0.0
    %3787 = vmatprep.subr.mxu0 0.0
    %3788 = vmatpush1.xpose.msra.mxu0 0.0
    %3789 = vmatprep.subr.mxu0 0.0
    %3790 = vmatpush1.xpose.msra.mxu0 0.0
    %3791 = vmatprep.subr.mxu0 0.0
    %3792 = vmatpush1.xpose.msra.mxu0 0.0
    %3793 = vmatprep.subr.mxu0 0.0
    %3794 = vmatpush1.xpose.msra.mxu0 0.0
    %3795 = vmatprep.subr.mxu0 0.0
    %3796 = vmatpush1.xpose.msra.mxu0 0.0
    %3797 = vmatprep.subr.mxu0 0.0
    %3798 = vmatpush1.xpose.msra.mxu0 0.0
    %3799 = vmatprep.subr.mxu0 0.0
    %3800 = vmatpush1.xpose.msra.mxu0 0.0
    %3801 = vmatprep.subr.mxu0 0.0
    %3802 = vmatpush1.xpose.msra.mxu0 0.0
    %3803 = vmatprep.subr.mxu0 0.0
    %3804 = vmatpush1.xpose.msra.mxu0 0.0
    %3805 = vmatprep.subr.mxu0 0.0
    %3806 = vmatpush1.xpose.msra.mxu0 0.0
    %3807 = vmatprep.mubr.f32.mxu0 0.0
    %3808 = vmatmul.mubr.f32.gmra.mrb[0].mxu0 %v3720
    %v3809 = vpop.f32.mrb[0].mxu0
    %v3810 = vadd.f32 0.0, %v3809
    %v3811 = vpop.f32.mrb[0].mxu0
    %3812 = vmatprep.mubr.f32.mxu0 0.0
    %3813 = vmatmul.mubr.f32.gmra.mrb[0].mxu0 %v3723
    %v3814 = vpop.f32.mrb[0].mxu0
    %v3815 = vadd.f32 0.0, %v3814
    %v3816 = vpop.f32.mrb[0].mxu0
    %3817 = vmatprep.mubr.f32.mxu0 0.0
    %3818 = vmatmul.mubr.f32.gmra.mrb[0].mxu0 %v3726
    %v3819 = vpop.f32.mrb[0].mxu0
    %v3820 = vadd.f32 0.0, %v3819
    %v3821 = vpop.f32.mrb[0].mxu0
    %3822 = vmatprep.mubr.f32.mxu0 0.0
    %3823 = vmatmul.mubr.f32.gmra.mrb[0].mxu0 %v3729
    %v3824 = vpop.f32.mrb[0].mxu0
    %v3825 = vadd.f32 0.0, %v3824
    %v3826 = vpop.f32.mrb[0].mxu0
    %3827 = vdwg.mxu0
    %v3829 = vsel %vm263, %v3481, 0
    %v3832 = vsel %vm263, %v3486, 0
    %v3835 = vsel %vm263, %v3491, 0
    %v3838 = vsel %vm263, %v3496, 0
    %v3841 = vsel %vm263, %v3591, 0
    %v3844 = vsel %vm263, %v3596, 0
    %v3847 = vsel %vm263, %v3601, 0
    %v3850 = vsel %vm263, %v3606, 0
    %3852 = vmatprep.subr.mxu0 0.0
    %3853 = vmatpush1.xpose.msra.mxu0 %v3841
    %3854 = vmatprep.subr.mxu0 0.0
    %3855 = vmatpush1.xpose.msra.mxu0 %v3844
    %3856 = vmatprep.subr.mxu0 0.0
    %3857 = vmatpush1.xpose.msra.mxu0 %v3847
    %3858 = vmatprep.subr.mxu0 0.0
    %3859 = vmatpush1.xpose.msra.mxu0 %v3850
    %3860 = vmatprep.subr.mxu0 0.0
    %3861 = vmatpush1.xpose.msra.mxu0 0.0
    %3862 = vmatprep.subr.mxu0 0.0
    %3863 = vmatpush1.xpose.msra.mxu0 0.0
    %3864 = vmatprep.subr.mxu0 0.0
    %3865 = vmatpush1.xpose.msra.mxu0 0.0
    %3866 = vmatprep.subr.mxu0 0.0
    %3867 = vmatpush1.xpose.msra.mxu0 0.0
    %3868 = vmatprep.subr.mxu0 0.0
    %3869 = vmatpush1.xpose.msra.mxu0 0.0
    %3870 = vmatprep.subr.mxu0 0.0
    %3871 = vmatpush1.xpose.msra.mxu0 0.0
    %3872 = vmatprep.subr.mxu0 0.0
    %3873 = vmatpush1.xpose.msra.mxu0 0.0
    %3874 = vmatprep.subr.mxu0 0.0
    %3875 = vmatpush1.xpose.msra.mxu0 0.0
    %3876 = vmatprep.subr.mxu0 0.0
    %3877 = vmatpush1.xpose.msra.mxu0 0.0
    %3878 = vmatprep.subr.mxu0 0.0
    %3879 = vmatpush1.xpose.msra.mxu0 0.0
    %3880 = vmatprep.subr.mxu0 0.0
    %3881 = vmatpush1.xpose.msra.mxu0 0.0
    %3882 = vmatprep.subr.mxu0 0.0
    %3883 = vmatpush1.xpose.msra.mxu0 0.0
    %3884 = vmatprep.subr.mxu0 0.0
    %3885 = vmatpush1.xpose.msra.mxu0 0.0
    %3886 = vmatprep.subr.mxu0 0.0
    %3887 = vmatpush1.xpose.msra.mxu0 0.0
    %3888 = vmatprep.subr.mxu0 0.0
    %3889 = vmatpush1.xpose.msra.mxu0 0.0
    %3890 = vmatprep.subr.mxu0 0.0
    %3891 = vmatpush1.xpose.msra.mxu0 0.0
    %3892 = vmatprep.subr.mxu0 0.0
    %3893 = vmatpush1.xpose.msra.mxu0 0.0
    %3894 = vmatprep.subr.mxu0 0.0
    %3895 = vmatpush1.xpose.msra.mxu0 0.0
    %3896 = vmatprep.subr.mxu0 0.0
    %3897 = vmatpush1.xpose.msra.mxu0 0.0
    %3898 = vmatprep.subr.mxu0 0.0
    %3899 = vmatpush1.xpose.msra.mxu0 0.0
    %3900 = vmatprep.subr.mxu0 0.0
    %3901 = vmatpush1.xpose.msra.mxu0 0.0
    %3902 = vmatprep.subr.mxu0 0.0
    %3903 = vmatpush1.xpose.msra.mxu0 0.0
    %3904 = vmatprep.subr.mxu0 0.0
    %3905 = vmatpush1.xpose.msra.mxu0 0.0
    %3906 = vmatprep.subr.mxu0 0.0
    %3907 = vmatpush1.xpose.msra.mxu0 0.0
    %3908 = vmatprep.subr.mxu0 0.0
    %3909 = vmatpush1.xpose.msra.mxu0 0.0
    %3910 = vmatprep.subr.mxu0 0.0
    %3911 = vmatpush1.xpose.msra.mxu0 0.0
    %3912 = vmatprep.subr.mxu0 0.0
    %3913 = vmatpush1.xpose.msra.mxu0 0.0
    %3914 = vmatprep.subr.mxu0 0.0
    %3915 = vmatpush1.xpose.msra.mxu0 0.0
    %3916 = vmatprep.mubr.f32.mxu0 0.0
    %3917 = vmatmul.mubr.f32.gmra.mrb[0].mxu0 %v3829
    %v3918 = vpop.f32.mrb[0].mxu0
    %v3919 = vadd.f32 0.0, %v3918
    %v3920 = vpop.f32.mrb[0].mxu0
    %3921 = vmatprep.mubr.f32.mxu0 0.0
    %3922 = vmatmul.mubr.f32.gmra.mrb[0].mxu0 %v3832
    %v3923 = vpop.f32.mrb[0].mxu0
    %v3924 = vadd.f32 0.0, %v3923
    %v3925 = vpop.f32.mrb[0].mxu0
    %3926 = vmatprep.mubr.f32.mxu0 0.0
    %3927 = vmatmul.mubr.f32.gmra.mrb[0].mxu0 %v3835
    %v3928 = vpop.f32.mrb[0].mxu0
    %v3929 = vadd.f32 0.0, %v3928
    %v3930 = vpop.f32.mrb[0].mxu0
    %3931 = vmatprep.mubr.f32.mxu0 0.0
    %3932 = vmatmul.mubr.f32.gmra.mrb[0].mxu0 %v3838
    %v3933 = vpop.f32.mrb[0].mxu0
    %v3934 = vadd.f32 0.0, %v3933
    %v3935 = vpop.f32.mrb[0].mxu0
    %3936 = vdwg.mxu0
    %v3937 = vsel %vm831, %v3810, -inf
    %3938 = vmax.xlane.f32.xlu0 %v3937
    %v3939 = vpop.xlane.xlu0 %3938
    %v3940 = vsel %vm831, %v3815, -inf
    %3941 = vmax.xlane.f32.xlu0 %v3940
    %v3942 = vpop.xlane.xlu0 %3941
    %v3943 = vsel %vm831, %v3820, -inf
    %3944 = vmax.xlane.f32.xlu0 %v3943
    %v3945 = vpop.xlane.xlu0 %3944
    %v3946 = vsel %vm831, %v3825, -inf
    %3947 = vmax.xlane.f32.xlu0 %v3946
    %v3948 = vpop.xlane.xlu0 %3947
    %v3949 = vsel %vm831, %v3919, -inf
    %3950 = vmax.xlane.f32.xlu0 %v3949
    %v3951 = vpop.xlane.xlu0 %3950
    %v3952 = vsel %vm831, %v3924, -inf
    %3953 = vmax.xlane.f32.xlu0 %v3952
    %v3954 = vpop.xlane.xlu0 %3953
    %v3955 = vsel %vm831, %v3929, -inf
    %3956 = vmax.xlane.f32.xlu0 %v3955
    %v3957 = vpop.xlane.xlu0 %3956
    %v3958 = vsel %vm831, %v3934, -inf
    %3959 = vmax.xlane.f32.xlu0 %v3958
    %v3960 = vpop.xlane.xlu0 %3959
    %v3961 = vsub.f32 %v3810, %v3939
    %v3962 = vsub.f32 %v3815, %v3942
    %v3963 = vsub.f32 %v3820, %v3945
    %v3964 = vsub.f32 %v3825, %v3948
    %v3965 = vsub.f32 %v3919, %v3951
    %v3966 = vsub.f32 %v3924, %v3954
    %v3967 = vsub.f32 %v3929, %v3957
    %v3968 = vsub.f32 %v3934, %v3960
    %v3969 = vmul.f32 %v3961, 1.442695
    %v3970 = vpow.pop %v3969
    %v3971 = vmul.f32 %v3962, 1.442695
    %v3972 = vpow.pop %v3971
    %v3973 = vmul.f32 %v3963, 1.442695
    %v3974 = vpow.pop %v3973
    %v3975 = vmul.f32 %v3964, 1.442695
    %v3976 = vpow.pop %v3975
    %v3977 = vmul.f32 %v3965, 1.442695
    %v3978 = vpow.pop %v3977
    %v3979 = vmul.f32 %v3966, 1.442695
    %v3980 = vpow.pop %v3979
    %v3981 = vmul.f32 %v3967, 1.442695
    %v3982 = vpow.pop %v3981
    %v3983 = vmul.f32 %v3968, 1.442695
    %v3984 = vpow.pop %v3983
    %v3985 = vsel %vm831, %v3970, 0.0
    %3986 = vadd.xlane.f32.xlu0 %v3985
    %v3987 = vpop.xlane.xlu0 %3986
    %v3988 = vsel %vm831, %v3972, 0.0
    %3989 = vadd.xlane.f32.xlu0 %v3988
    %v3990 = vpop.xlane.xlu0 %3989
    %v3991 = vsel %vm831, %v3974, 0.0
    %3992 = vadd.xlane.f32.xlu0 %v3991
    %v3993 = vpop.xlane.xlu0 %3992
    %v3994 = vsel %vm831, %v3976, 0.0
    %3995 = vadd.xlane.f32.xlu0 %v3994
    %v3996 = vpop.xlane.xlu0 %3995
    %v3997 = vsel %vm831, %v3978, 0.0
    %3998 = vadd.xlane.f32.xlu0 %v3997
    %v3999 = vpop.xlane.xlu0 %3998
    %v4000 = vsel %vm831, %v3980, 0.0
    %4001 = vadd.xlane.f32.xlu0 %v4000
    %v4002 = vpop.xlane.xlu0 %4001
    %v4003 = vsel %vm831, %v3982, 0.0
    %4004 = vadd.xlane.f32.xlu0 %v4003
    %v4005 = vpop.xlane.xlu0 %4004
    %v4006 = vsel %vm831, %v3984, 0.0
    %4007 = vadd.xlane.f32.xlu0 %v4006
    %v4008 = vpop.xlane.xlu0 %4007
    %v4009 = vrcp.pop %v3987
    %v4010 = vmul.f32 %v3970, %v4009
    %v4011 = vrcp.pop %v3990
    %v4012 = vmul.f32 %v3972, %v4011
    %v4013 = vrcp.pop %v3993
    %v4014 = vmul.f32 %v3974, %v4013
    %v4015 = vrcp.pop %v3996
    %v4016 = vmul.f32 %v3976, %v4015
    %v4017 = vrcp.pop %v3999
    %v4018 = vmul.f32 %v3978, %v4017
    %v4019 = vrcp.pop %v4002
    %v4020 = vmul.f32 %v3980, %v4019
    %v4021 = vrcp.pop %v4005
    %v4022 = vmul.f32 %v3982, %v4021
    %v4023 = vrcp.pop %v4008
    %v4024 = vmul.f32 %v3984, %v4023
    %v4026 = vsel %vm831, %v4010, 0
    %v4029 = vsel %vm831, %v4012, 0
    %v4032 = vsel %vm831, %v4014, 0
    %v4035 = vsel %vm831, %v4016, 0
    %4037 = vmatprep.subr.mxu0 0.0
    %4038 = vmatpush1.msra.mxu0 %v3681
    %4039 = vmatprep.subr.mxu0 0.0
    %4040 = vmatpush1.msra.mxu0 %v3686
    %4041 = vmatprep.subr.mxu0 0.0
    %4042 = vmatpush1.msra.mxu0 %v3691
    %4043 = vmatprep.subr.mxu0 0.0
    %4044 = vmatpush1.msra.mxu0 %v3696
    %4045 = vmatprep.subr.mxu0 0.0
    %4046 = vmatpush1.msra.mxu0 0.0
    %4047 = vmatprep.subr.mxu0 0.0
    %4048 = vmatpush1.msra.mxu0 0.0
    %4049 = vmatprep.subr.mxu0 0.0
    %4050 = vmatpush1.msra.mxu0 0.0
    %4051 = vmatprep.subr.mxu0 0.0
    %4052 = vmatpush1.msra.mxu0 0.0
    %4053 = vmatprep.subr.mxu0 0.0
    %4054 = vmatpush1.msra.mxu0 0.0
    %4055 = vmatprep.subr.mxu0 0.0
    %4056 = vmatpush1.msra.mxu0 0.0
    %4057 = vmatprep.subr.mxu0 0.0
    %4058 = vmatpush1.msra.mxu0 0.0
    %4059 = vmatprep.subr.mxu0 0.0
    %4060 = vmatpush1.msra.mxu0 0.0
    %4061 = vmatprep.subr.mxu0 0.0
    %4062 = vmatpush1.msra.mxu0 0.0
    %4063 = vmatprep.subr.mxu0 0.0
    %4064 = vmatpush1.msra.mxu0 0.0
    %4065 = vmatprep.subr.mxu0 0.0
    %4066 = vmatpush1.msra.mxu0 0.0
    %4067 = vmatprep.subr.mxu0 0.0
    %4068 = vmatpush1.msra.mxu0 0.0
    %4069 = vmatprep.subr.mxu0 0.0
    %4070 = vmatpush1.msra.mxu0 0.0
    %4071 = vmatprep.subr.mxu0 0.0
    %4072 = vmatpush1.msra.mxu0 0.0
    %4073 = vmatprep.subr.mxu0 0.0
    %4074 = vmatpush1.msra.mxu0 0.0
    %4075 = vmatprep.subr.mxu0 0.0
    %4076 = vmatpush1.msra.mxu0 0.0
    %4077 = vmatprep.subr.mxu0 0.0
    %4078 = vmatpush1.msra.mxu0 0.0
    %4079 = vmatprep.subr.mxu0 0.0
    %4080 = vmatpush1.msra.mxu0 0.0
    %4081 = vmatprep.subr.mxu0 0.0
    %4082 = vmatpush1.msra.mxu0 0.0
    %4083 = vmatprep.subr.mxu0 0.0
    %4084 = vmatpush1.msra.mxu0 0.0
    %4085 = vmatprep.subr.mxu0 0.0
    %4086 = vmatpush1.msra.mxu0 0.0
    %4087 = vmatprep.subr.mxu0 0.0
    %4088 = vmatpush1.msra.mxu0 0.0
    %4089 = vmatprep.subr.mxu0 0.0
    %4090 = vmatpush1.msra.mxu0 0.0
    %4091 = vmatprep.subr.mxu0 0.0
    %4092 = vmatpush1.msra.mxu0 0.0
    %4093 = vmatprep.subr.mxu0 0.0
    %4094 = vmatpush1.msra.mxu0 0.0
    %4095 = vmatprep.subr.mxu0 0.0
    %4096 = vmatpush1.msra.mxu0 0.0
    %4097 = vmatprep.subr.mxu0 0.0
    %4098 = vmatpush1.msra.mxu0 0.0
    %4099 = vmatprep.subr.mxu0 0.0
    %4100 = vmatpush1.msra.mxu0 0.0
    %4101 = vmatprep.mubr.f32.mxu0 0.0
    %4102 = vmatmul.mubr.f32.gmra.mrb[0].mxu0 %v4026
    %v4103 = vpop.f32.mrb[0].mxu0
    %v4104 = vadd.f32 0.0, %v4103
    %v4105 = vpop.f32.mrb[0].mxu0
    %4106 = vmatprep.mubr.f32.mxu0 0.0
    %4107 = vmatmul.mubr.f32.gmra.mrb[0].mxu0 %v4029
    %v4108 = vpop.f32.mrb[0].mxu0
    %v4109 = vadd.f32 0.0, %v4108
    %v4110 = vpop.f32.mrb[0].mxu0
    %4111 = vmatprep.mubr.f32.mxu0 0.0
    %4112 = vmatmul.mubr.f32.gmra.mrb[0].mxu0 %v4032
    %v4113 = vpop.f32.mrb[0].mxu0
    %v4114 = vadd.f32 0.0, %v4113
    %v4115 = vpop.f32.mrb[0].mxu0
    %4116 = vmatprep.mubr.f32.mxu0 0.0
    %4117 = vmatmul.mubr.f32.gmra.mrb[0].mxu0 %v4035
    %v4118 = vpop.f32.mrb[0].mxu0
    %v4119 = vadd.f32 0.0, %v4118
    %v4120 = vpop.f32.mrb[0].mxu0
    %4121 = vdwg.mxu0
    %v4123 = vsel %vm831, %v4018, 0
    %v4126 = vsel %vm831, %v4020, 0
    %v4129 = vsel %vm831, %v4022, 0
    %v4132 = vsel %vm831, %v4024, 0
    %4134 = vmatprep.subr.mxu0 0.0
    %4135 = vmatpush1.msra.mxu0 %v3701
    %4136 = vmatprep.subr.mxu0 0.0
    %4137 = vmatpush1.msra.mxu0 %v3706
    %4138 = vmatprep.subr.mxu0 0.0
    %4139 = vmatpush1.msra.mxu0 %v3711
    %4140 = vmatprep.subr.mxu0 0.0
    %4141 = vmatpush1.msra.mxu0 %v3716
    %4142 = vmatprep.subr.mxu0 0.0
    %4143 = vmatpush1.msra.mxu0 0.0
    %4144 = vmatprep.subr.mxu0 0.0
    %4145 = vmatpush1.msra.mxu0 0.0
    %4146 = vmatprep.subr.mxu0 0.0
    %4147 = vmatpush1.msra.mxu0 0.0
    %4148 = vmatprep.subr.mxu0 0.0
    %4149 = vmatpush1.msra.mxu0 0.0
    %4150 = vmatprep.subr.mxu0 0.0
    %4151 = vmatpush1.msra.mxu0 0.0
    %4152 = vmatprep.subr.mxu0 0.0
    %4153 = vmatpush1.msra.mxu0 0.0
    %4154 = vmatprep.subr.mxu0 0.0
    %4155 = vmatpush1.msra.mxu0 0.0
    %4156 = vmatprep.subr.mxu0 0.0
    %4157 = vmatpush1.msra.mxu0 0.0
    %4158 = vmatprep.subr.mxu0 0.0
    %4159 = vmatpush1.msra.mxu0 0.0
    %4160 = vmatprep.subr.mxu0 0.0
    %4161 = vmatpush1.msra.mxu0 0.0
    %4162 = vmatprep.subr.mxu0 0.0
    %4163 = vmatpush1.msra.mxu0 0.0
    %4164 = vmatprep.subr.mxu0 0.0
    %4165 = vmatpush1.msra.mxu0 0.0
    %4166 = vmatprep.subr.mxu0 0.0
    %4167 = vmatpush1.msra.mxu0 0.0
    %4168 = vmatprep.subr.mxu0 0.0
    %4169 = vmatpush1.msra.mxu0 0.0
    %4170 = vmatprep.subr.mxu0 0.0
    %4171 = vmatpush1.msra.mxu0 0.0
    %4172 = vmatprep.subr.mxu0 0.0
    %4173 = vmatpush1.msra.mxu0 0.0
    %4174 = vmatprep.subr.mxu0 0.0
    %4175 = vmatpush1.msra.mxu0 0.0
    %4176 = vmatprep.subr.mxu0 0.0
    %4177 = vmatpush1.msra.mxu0 0.0
    %4178 = vmatprep.subr.mxu0 0.0
    %4179 = vmatpush1.msra.mxu0 0.0
    %4180 = vmatprep.subr.mxu0 0.0
    %4181 = vmatpush1.msra.mxu0 0.0
    %4182 = vmatprep.subr.mxu0 0.0
    %4183 = vmatpush1.msra.mxu0 0.0
    %4184 = vmatprep.subr.mxu0 0.0
    %4185 = vmatpush1.msra.mxu0 0.0
    %4186 = vmatprep.subr.mxu0 0.0
    %4187 = vmatpush1.msra.mxu0 0.0
    %4188 = vmatprep.subr.mxu0 0.0
    %4189 = vmatpush1.msra.mxu0 0.0
    %4190 = vmatprep.subr.mxu0 0.0
    %4191 = vmatpush1.msra.mxu0 0.0
    %4192 = vmatprep.subr.mxu0 0.0
    %4193 = vmatpush1.msra.mxu0 0.0
    %4194 = vmatprep.subr.mxu0 0.0
    %4195 = vmatpush1.msra.mxu0 0.0
    %4196 = vmatprep.subr.mxu0 0.0
    %4197 = vmatpush1.msra.mxu0 0.0
    %4198 = vmatprep.mubr.f32.mxu0 0.0
    %4199 = vmatmul.mubr.f32.gmra.mrb[0].mxu0 %v4123
    %v4200 = vpop.f32.mrb[0].mxu0
    %v4201 = vadd.f32 0.0, %v4200
    %v4202 = vpop.f32.mrb[0].mxu0
    %4203 = vmatprep.mubr.f32.mxu0 0.0
    %4204 = vmatmul.mubr.f32.gmra.mrb[0].mxu0 %v4126
    %v4205 = vpop.f32.mrb[0].mxu0
    %v4206 = vadd.f32 0.0, %v4205
    %v4207 = vpop.f32.mrb[0].mxu0
    %4208 = vmatprep.mubr.f32.mxu0 0.0
    %4209 = vmatmul.mubr.f32.gmra.mrb[0].mxu0 %v4129
    %v4210 = vpop.f32.mrb[0].mxu0
    %v4211 = vadd.f32 0.0, %v4210
    %v4212 = vpop.f32.mrb[0].mxu0
    %4213 = vmatprep.mubr.f32.mxu0 0.0
    %4214 = vmatmul.mubr.f32.gmra.mrb[0].mxu0 %v4132
    %v4215 = vpop.f32.mrb[0].mxu0
    %v4216 = vadd.f32 0.0, %v4215
    %v4217 = vpop.f32.mrb[0].mxu0
    %4218 = vdwg.mxu0
    %v4219 = vld [vmem:[%s3 + $0x17] sm:$0x1]
    %v4220 = vlaneseq
    %v4221 = vshrl.u32 %v4220, 7
    %v4222 = vsub.s32 0, %v4221
    %v4223 = vrot.slane %v4219, %v4222
    %v4225 = vsel %vm263, %v4104, 0
    %v4228 = vsel %vm263, %v4109, 0
    %v4231 = vsel %vm263, %v4114, 0
    %v4234 = vsel %vm263, %v4119, 0
    %v4237 = vsel %vm263, %v4201, 0
    %v4240 = vsel %vm263, %v4206, 0
    %v4243 = vsel %vm263, %v4211, 0
    %v4246 = vsel %vm263, %v4216, 0
    %4248 = vmatprep.subr.mxu0 0.0
    %4249 = vmatpush1.msra.mxu0 %v3359
    %4250 = vmatprep.subr.mxu0 0.0
    %4251 = vmatpush1.msra.mxu0 %v3360
    %4252 = vmatprep.subr.mxu0 0.0
    %4253 = vmatpush1.msra.mxu0 0.0
    %4254 = vmatprep.subr.mxu0 0.0
    %4255 = vmatpush1.msra.mxu0 0.0
    %4256 = vmatprep.subr.mxu0 0.0
    %4257 = vmatpush1.msra.mxu0 0.0
    %4258 = vmatprep.subr.mxu0 0.0
    %4259 = vmatpush1.msra.mxu0 0.0
    %4260 = vmatprep.subr.mxu0 0.0
    %4261 = vmatpush1.msra.mxu0 0.0
    %4262 = vmatprep.subr.mxu0 0.0
    %4263 = vmatpush1.msra.mxu0 0.0
    %4264 = vmatprep.subr.mxu0 0.0
    %4265 = vmatpush1.msra.mxu0 0.0
    %4266 = vmatprep.subr.mxu0 0.0
    %4267 = vmatpush1.msra.mxu0 0.0
    %4268 = vmatprep.subr.mxu0 0.0
    %4269 = vmatpush1.msra.mxu0 0.0
    %4270 = vmatprep.subr.mxu0 0.0
    %4271 = vmatpush1.msra.mxu0 0.0
    %4272 = vmatprep.subr.mxu0 0.0
    %4273 = vmatpush1.msra.mxu0 0.0
    %4274 = vmatprep.subr.mxu0 0.0
    %4275 = vmatpush1.msra.mxu0 0.0
    %4276 = vmatprep.subr.mxu0 0.0
    %4277 = vmatpush1.msra.mxu0 0.0
    %4278 = vmatprep.subr.mxu0 0.0
    %4279 = vmatpush1.msra.mxu0 0.0
    %4280 = vmatprep.subr.mxu0 0.0
    %4281 = vmatpush1.msra.mxu0 0.0
    %4282 = vmatprep.subr.mxu0 0.0
    %4283 = vmatpush1.msra.mxu0 0.0
    %4284 = vmatprep.subr.mxu0 0.0
    %4285 = vmatpush1.msra.mxu0 0.0
    %4286 = vmatprep.subr.mxu0 0.0
    %4287 = vmatpush1.msra.mxu0 0.0
    %4288 = vmatprep.subr.mxu0 0.0
    %4289 = vmatpush1.msra.mxu0 0.0
    %4290 = vmatprep.subr.mxu0 0.0
    %4291 = vmatpush1.msra.mxu0 0.0
    %4292 = vmatprep.subr.mxu0 0.0
    %4293 = vmatpush1.msra.mxu0 0.0
    %4294 = vmatprep.subr.mxu0 0.0
    %4295 = vmatpush1.msra.mxu0 0.0
    %4296 = vmatprep.subr.mxu0 0.0
    %4297 = vmatpush1.msra.mxu0 0.0
    %4298 = vmatprep.subr.mxu0 0.0
    %4299 = vmatpush1.msra.mxu0 0.0
    %4300 = vmatprep.subr.mxu0 0.0
    %4301 = vmatpush1.msra.mxu0 0.0
    %4302 = vmatprep.subr.mxu0 0.0
    %4303 = vmatpush1.msra.mxu0 0.0
    %4304 = vmatprep.subr.mxu0 0.0
    %4305 = vmatpush1.msra.mxu0 0.0
    %4306 = vmatprep.subr.mxu0 0.0
    %4307 = vmatpush1.msra.mxu0 0.0
    %4308 = vmatprep.subr.mxu0 0.0
    %4309 = vmatpush1.msra.mxu0 0.0
    %4310 = vmatprep.subr.mxu0 0.0
    %4311 = vmatpush1.msra.mxu0 0.0
    %4312 = vmatprep.mubr.f32.mxu0 0.0
    %4313 = vmatmul.mubr.f32.gmra.mrb[0].mxu0 %v4225
    %v4314 = vpop.f32.mrb[0].mxu0
    %v4315 = vadd.f32 %v4223, %v4314
    %v4316 = vpop.f32.mrb[0].mxu0
    %4317 = vmatprep.mubr.f32.mxu0 0.0
    %4318 = vmatmul.mubr.f32.gmra.mrb[0].mxu0 %v4228
    %v4319 = vpop.f32.mrb[0].mxu0
    %v4320 = vadd.f32 %v4223, %v4319
    %v4321 = vpop.f32.mrb[0].mxu0
    %4322 = vmatprep.mubr.f32.mxu0 0.0
    %4323 = vmatmul.mubr.f32.gmra.mrb[0].mxu0 %v4231
    %v4324 = vpop.f32.mrb[0].mxu0
    %v4325 = vadd.f32 %v4223, %v4324
    %v4326 = vpop.f32.mrb[0].mxu0
    %4327 = vmatprep.mubr.f32.mxu0 0.0
    %4328 = vmatmul.mubr.f32.gmra.mrb[0].mxu0 %v4234
    %v4329 = vpop.f32.mrb[0].mxu0
    %v4330 = vadd.f32 %v4223, %v4329
    %v4331 = vpop.f32.mrb[0].mxu0
    %4332 = vmatprep.mubr.f32.mxu0 0.0
    %4333 = vmatmul.mubr.f32.gmra.mrb[0].mxu0 %v4237
    %v4334 = vpop.f32.mrb[0].mxu0
    %v4335 = vadd.f32 %v4223, %v4334
    %v4336 = vpop.f32.mrb[0].mxu0
    %4337 = vmatprep.mubr.f32.mxu0 0.0
    %4338 = vmatmul.mubr.f32.gmra.mrb[0].mxu0 %v4240
    %v4339 = vpop.f32.mrb[0].mxu0
    %v4340 = vadd.f32 %v4223, %v4339
    %v4341 = vpop.f32.mrb[0].mxu0
    %4342 = vmatprep.mubr.f32.mxu0 0.0
    %4343 = vmatmul.mubr.f32.gmra.mrb[0].mxu0 %v4243
    %v4344 = vpop.f32.mrb[0].mxu0
    %v4345 = vadd.f32 %v4223, %v4344
    %v4346 = vpop.f32.mrb[0].mxu0
    %4347 = vmatprep.mubr.f32.mxu0 0.0
    %4348 = vmatmul.mubr.f32.gmra.mrb[0].mxu0 %v4246
    %v4349 = vpop.f32.mrb[0].mxu0
    %v4350 = vadd.f32 %v4223, %v4349
    %v4351 = vpop.f32.mrb[0].mxu0
    %4352 = vdwg.mxu0
    %v4353 = vadd.f32 %v3345, %v4315
    %v4354 = vadd.f32 %v3346, %v4320
    %v4355 = vadd.f32 %v3347, %v4325
    %v4356 = vadd.f32 %v3348, %v4330
    %v4357 = vadd.f32 %v3349, %v4335
    %v4358 = vadd.f32 %v3350, %v4340
    %v4359 = vadd.f32 %v3351, %v4345
    %v4360 = vadd.f32 %v3352, %v4350
    %v4361 = vld [vmem:[%s3 + $0x1a] sm:$0x1]
    %v4362 = vld [vmem:[%s3 + $0x1b] sm:$0x1]
    %v4363 = vsel %vm263, %v4353, 0.0
    %4364 = vadd.xlane.f32.xlu0 %v4363
    %v4365 = vpop.xlane.xlu0 %4364
    %v4366 = vsel %vm263, %v4354, 0.0
    %4367 = vadd.xlane.f32.xlu0 %v4366
    %v4368 = vpop.xlane.xlu0 %4367
    %v4369 = vsel %vm263, %v4355, 0.0
    %4370 = vadd.xlane.f32.xlu0 %v4369
    %v4371 = vpop.xlane.xlu0 %4370
    %v4372 = vsel %vm263, %v4356, 0.0
    %4373 = vadd.xlane.f32.xlu0 %v4372
    %v4374 = vpop.xlane.xlu0 %4373
    %v4375 = vsel %vm263, %v4357, 0.0
    %4376 = vadd.xlane.f32.xlu0 %v4375
    %v4377 = vpop.xlane.xlu0 %4376
    %v4378 = vsel %vm263, %v4358, 0.0
    %4379 = vadd.xlane.f32.xlu0 %v4378
    %v4380 = vpop.xlane.xlu0 %4379
    %v4381 = vsel %vm263, %v4359, 0.0
    %4382 = vadd.xlane.f32.xlu0 %v4381
    %v4383 = vpop.xlane.xlu0 %4382
    %v4384 = vsel %vm263, %v4360, 0.0
    %4385 = vadd.xlane.f32.xlu0 %v4384
    %v4386 = vpop.xlane.xlu0 %4385
    %v4387 = vmul.f32 %v4365, %v1282
    %v4388 = vmul.f32 %v4368, %v1282
    %v4389 = vmul.f32 %v4371, %v1282
    %v4390 = vmul.f32 %v4374, %v1282
    %v4391 = vmul.f32 %v4377, %v1282
    %v4392 = vmul.f32 %v4380, %v1282
    %v4393 = vmul.f32 %v4383, %v1282
    %v4394 = vmul.f32 %v4386, %v1282
    %v4395 = vsub.f32 %v4353, %v4387
    %v4396 = vsub.f32 %v4354, %v4388
    %v4397 = vsub.f32 %v4355, %v4389
    %v4398 = vsub.f32 %v4356, %v4390
    %v4399 = vsub.f32 %v4357, %v4391
    %v4400 = vsub.f32 %v4358, %v4392
    %v4401 = vsub.f32 %v4359, %v4393
    %v4402 = vsub.f32 %v4360, %v4394
    %v4403 = vmul.f32 %v4395, %v4395
    %v4404 = vmul.f32 %v4396, %v4396
    %v4405 = vmul.f32 %v4397, %v4397
    %v4406 = vmul.f32 %v4398, %v4398
    %v4407 = vmul.f32 %v4399, %v4399
    %v4408 = vmul.f32 %v4400, %v4400
    %v4409 = vmul.f32 %v4401, %v4401
    %v4410 = vmul.f32 %v4402, %v4402
    %v4411 = vsel %vm263, %v4403, 0.0
    %4412 = vadd.xlane.f32.xlu0 %v4411
    %v4413 = vpop.xlane.xlu0 %4412
    %v4414 = vsel %vm263, %v4404, 0.0
    %4415 = vadd.xlane.f32.xlu0 %v4414
    %v4416 = vpop.xlane.xlu0 %4415
    %v4417 = vsel %vm263, %v4405, 0.0
    %4418 = vadd.xlane.f32.xlu0 %v4417
    %v4419 = vpop.xlane.xlu0 %4418
    %v4420 = vsel %vm263, %v4406, 0.0
    %4421 = vadd.xlane.f32.xlu0 %v4420
    %v4422 = vpop.xlane.xlu0 %4421
    %v4423 = vsel %vm263, %v4407, 0.0
    %4424 = vadd.xlane.f32.xlu0 %v4423
    %v4425 = vpop.xlane.xlu0 %4424
    %v4426 = vsel %vm263, %v4408, 0.0
    %4427 = vadd.xlane.f32.xlu0 %v4426
    %v4428 = vpop.xlane.xlu0 %4427
    %v4429 = vsel %vm263, %v4409, 0.0
    %4430 = vadd.xlane.f32.xlu0 %v4429
    %v4431 = vpop.xlane.xlu0 %4430
    %v4432 = vsel %vm263, %v4410, 0.0
    %4433 = vadd.xlane.f32.xlu0 %v4432
    %v4434 = vpop.xlane.xlu0 %4433
    %v4435 = vmul.f32 %v4413, %v1282
    %v4436 = vmul.f32 %v4416, %v1282
    %v4437 = vmul.f32 %v4419, %v1282
    %v4438 = vmul.f32 %v4422, %v1282
    %v4439 = vmul.f32 %v4425, %v1282
    %v4440 = vmul.f32 %v4428, %v1282
    %v4441 = vmul.f32 %v4431, %v1282
    %v4442 = vmul.f32 %v4434, %v1282
    %v4443 = vadd.f32 %v4435, 1e-05
    %v4444 = vadd.f32 %v4436, 1e-05
    %v4445 = vadd.f32 %v4437, 1e-05
    %v4446 = vadd.f32 %v4438, 1e-05
    %v4447 = vadd.f32 %v4439, 1e-05
    %v4448 = vadd.f32 %v4440, 1e-05
    %v4449 = vadd.f32 %v4441, 1e-05
    %v4450 = vadd.f32 %v4442, 1e-05
    %v4451 = vrsqrt.pop %v4443
    %v4452 = vrsqrt.pop %v4444
    %v4453 = vrsqrt.pop %v4445
    %v4454 = vrsqrt.pop %v4446
    %v4455 = vrsqrt.pop %v4447
    %v4456 = vrsqrt.pop %v4448
    %v4457 = vrsqrt.pop %v4449
    %v4458 = vrsqrt.pop %v4450
    %v4459 = vmul.f32 %v4395, %v4451
    %v4460 = vmul.f32 %v4396, %v4452
    %v4461 = vmul.f32 %v4397, %v4453
    %v4462 = vmul.f32 %v4398, %v4454
    %v4463 = vmul.f32 %v4399, %v4455
    %v4464 = vmul.f32 %v4400, %v4456
    %v4465 = vmul.f32 %v4401, %v4457
    %v4466 = vmul.f32 %v4402, %v4458
    %v4467 = vlaneseq
    %v4468 = vshrl.u32 %v4467, 7
    %v4469 = vsub.s32 0, %v4468
    %v4470 = vrot.slane %v4361, %v4469
    %v4471 = vmul.f32 %v4459, %v4470
    %v4472 = vmul.f32 %v4460, %v4470
    %v4473 = vmul.f32 %v4461, %v4470
    %v4474 = vmul.f32 %v4462, %v4470
    %v4475 = vmul.f32 %v4463, %v4470
    %v4476 = vmul.f32 %v4464, %v4470
    %v4477 = vmul.f32 %v4465, %v4470
    %v4478 = vmul.f32 %v4466, %v4470
    %v4479 = vlaneseq
    %v4480 = vshrl.u32 %v4479, 7
    %v4481 = vsub.s32 0, %v4480
    %v4482 = vrot.slane %v4362, %v4481
    %v4483 = vadd.f32 %v4471, %v4482
    %v4484 = vadd.f32 %v4472, %v4482
    %v4485 = vadd.f32 %v4473, %v4482
    %v4486 = vadd.f32 %v4474, %v4482
    %v4487 = vadd.f32 %v4475, %v4482
    %v4488 = vadd.f32 %v4476, %v4482
    %v4489 = vadd.f32 %v4477, %v4482
    %v4490 = vadd.f32 %v4478, %v4482
    %v4491 = vld [vmem:[%s3 + $0x18] sm:$0x1]
    %v4492 = vlaneseq
    %v4493 = vshrl.u32 %v4492, 7
    %v4494 = vsub.s32 0, %v4493
    %v4495 = vrot.slane %v4491, %v4494
    %v4497 = vsel %vm263, %v4483, 0
    %v4500 = vsel %vm263, %v4484, 0
    %v4503 = vsel %vm263, %v4485, 0
    %v4506 = vsel %vm263, %v4486, 0
    %v4509 = vsel %vm263, %v4487, 0
    %v4512 = vsel %vm263, %v4488, 0
    %v4515 = vsel %vm263, %v4489, 0
    %v4518 = vsel %vm263, %v4490, 0
    %4520 = vmatprep.subr.mxu0 0.0
    %4521 = vmatpush1.msra.mxu0 %v3361
    %4522 = vmatprep.subr.mxu0 0.0
    %4523 = vmatpush1.msra.mxu0 %v3362
    %4524 = vmatprep.subr.mxu0 0.0
    %4525 = vmatpush1.msra.mxu0 0.0
    %4526 = vmatprep.subr.mxu0 0.0
    %4527 = vmatpush1.msra.mxu0 0.0
    %4528 = vmatprep.subr.mxu0 0.0
    %4529 = vmatpush1.msra.mxu0 0.0
    %4530 = vmatprep.subr.mxu0 0.0
    %4531 = vmatpush1.msra.mxu0 0.0
    %4532 = vmatprep.subr.mxu0 0.0
    %4533 = vmatpush1.msra.mxu0 0.0
    %4534 = vmatprep.subr.mxu0 0.0
    %4535 = vmatpush1.msra.mxu0 0.0
    %4536 = vmatprep.subr.mxu0 0.0
    %4537 = vmatpush1.msra.mxu0 0.0
    %4538 = vmatprep.subr.mxu0 0.0
    %4539 = vmatpush1.msra.mxu0 0.0
    %4540 = vmatprep.subr.mxu0 0.0
    %4541 = vmatpush1.msra.mxu0 0.0
    %4542 = vmatprep.subr.mxu0 0.0
    %4543 = vmatpush1.msra.mxu0 0.0
    %4544 = vmatprep.subr.mxu0 0.0
    %4545 = vmatpush1.msra.mxu0 0.0
    %4546 = vmatprep.subr.mxu0 0.0
    %4547 = vmatpush1.msra.mxu0 0.0
    %4548 = vmatprep.subr.mxu0 0.0
    %4549 = vmatpush1.msra.mxu0 0.0
    %4550 = vmatprep.subr.mxu0 0.0
    %4551 = vmatpush1.msra.mxu0 0.0
    %4552 = vmatprep.subr.mxu0 0.0
    %4553 = vmatpush1.msra.mxu0 0.0
    %4554 = vmatprep.subr.mxu0 0.0
    %4555 = vmatpush1.msra.mxu0 0.0
    %4556 = vmatprep.subr.mxu0 0.0
    %4557 = vmatpush1.msra.mxu0 0.0
    %4558 = vmatprep.subr.mxu0 0.0
    %4559 = vmatpush1.msra.mxu0 0.0
    %4560 = vmatprep.subr.mxu0 0.0
    %4561 = vmatpush1.msra.mxu0 0.0
    %4562 = vmatprep.subr.mxu0 0.0
    %4563 = vmatpush1.msra.mxu0 0.0
    %4564 = vmatprep.subr.mxu0 0.0
    %4565 = vmatpush1.msra.mxu0 0.0
    %4566 = vmatprep.subr.mxu0 0.0
    %4567 = vmatpush1.msra.mxu0 0.0
    %4568 = vmatprep.subr.mxu0 0.0
    %4569 = vmatpush1.msra.mxu0 0.0
    %4570 = vmatprep.subr.mxu0 0.0
    %4571 = vmatpush1.msra.mxu0 0.0
    %4572 = vmatprep.subr.mxu0 0.0
    %4573 = vmatpush1.msra.mxu0 0.0
    %4574 = vmatprep.subr.mxu0 0.0
    %4575 = vmatpush1.msra.mxu0 0.0
    %4576 = vmatprep.subr.mxu0 0.0
    %4577 = vmatpush1.msra.mxu0 0.0
    %4578 = vmatprep.subr.mxu0 0.0
    %4579 = vmatpush1.msra.mxu0 0.0
    %4580 = vmatprep.subr.mxu0 0.0
    %4581 = vmatpush1.msra.mxu0 0.0
    %4582 = vmatprep.subr.mxu0 0.0
    %4583 = vmatpush1.msra.mxu0 0.0
    %4584 = vmatprep.mubr.f32.mxu0 0.0
    %4585 = vmatmul.mubr.f32.gmra.mrb[0].mxu0 %v4497
    %v4586 = vpop.f32.mrb[0].mxu0
    %v4587 = vadd.f32 %v4495, %v4586
    %v4588 = vpop.f32.mrb[0].mxu0
    %4589 = vmatprep.mubr.f32.mxu0 0.0
    %4590 = vmatmul.mubr.f32.gmra.mrb[0].mxu0 %v4500
    %v4591 = vpop.f32.mrb[0].mxu0
    %v4592 = vadd.f32 %v4495, %v4591
    %v4593 = vpop.f32.mrb[0].mxu0
    %4594 = vmatprep.mubr.f32.mxu0 0.0
    %4595 = vmatmul.mubr.f32.gmra.mrb[0].mxu0 %v4503
    %v4596 = vpop.f32.mrb[0].mxu0
    %v4597 = vadd.f32 %v4495, %v4596
    %v4598 = vpop.f32.mrb[0].mxu0
    %4599 = vmatprep.mubr.f32.mxu0 0.0
    %4600 = vmatmul.mubr.f32.gmra.mrb[0].mxu0 %v4506
    %v4601 = vpop.f32.mrb[0].mxu0
    %v4602 = vadd.f32 %v4495, %v4601
    %v4603 = vpop.f32.mrb[0].mxu0
    %4604 = vmatprep.mubr.f32.mxu0 0.0
    %4605 = vmatmul.mubr.f32.gmra.mrb[0].mxu0 %v4509
    %v4606 = vpop.f32.mrb[0].mxu0
    %v4607 = vadd.f32 %v4495, %v4606
    %v4608 = vpop.f32.mrb[0].mxu0
    %4609 = vmatprep.mubr.f32.mxu0 0.0
    %4610 = vmatmul.mubr.f32.gmra.mrb[0].mxu0 %v4512
    %v4611 = vpop.f32.mrb[0].mxu0
    %v4612 = vadd.f32 %v4495, %v4611
    %v4613 = vpop.f32.mrb[0].mxu0
    %4614 = vmatprep.mubr.f32.mxu0 0.0
    %4615 = vmatmul.mubr.f32.gmra.mrb[0].mxu0 %v4515
    %v4616 = vpop.f32.mrb[0].mxu0
    %v4617 = vadd.f32 %v4495, %v4616
    %v4618 = vpop.f32.mrb[0].mxu0
    %4619 = vmatprep.mubr.f32.mxu0 0.0
    %4620 = vmatmul.mubr.f32.gmra.mrb[0].mxu0 %v4518
    %v4621 = vpop.f32.mrb[0].mxu0
    %v4622 = vadd.f32 %v4495, %v4621
    %v4623 = vpop.f32.mrb[0].mxu0
    %4624 = vdwg.mxu0
    %v4625 = vmax.f32 %v4587, 0.0
    %v4626 = vmax.f32 %v4592, 0.0
    %v4627 = vmax.f32 %v4597, 0.0
    %v4628 = vmax.f32 %v4602, 0.0
    %v4629 = vmax.f32 %v4607, 0.0
    %v4630 = vmax.f32 %v4612, 0.0
    %v4631 = vmax.f32 %v4617, 0.0
    %v4632 = vmax.f32 %v4622, 0.0
    %v4633 = vld [vmem:[%s3 + $0x19] sm:$0x1]
    %v4634 = vlaneseq
    %v4635 = vshrl.u32 %v4634, 7
    %v4636 = vsub.s32 0, %v4635
    %v4637 = vrot.slane %v4633, %v4636
    %v4639 = vsel %vm263, %v4625, 0
    %v4642 = vsel %vm263, %v4626, 0
    %v4645 = vsel %vm263, %v4627, 0
    %v4648 = vsel %vm263, %v4628, 0
    %v4651 = vsel %vm263, %v4629, 0
    %v4654 = vsel %vm263, %v4630, 0
    %v4657 = vsel %vm263, %v4631, 0
    %v4660 = vsel %vm263, %v4632, 0
    %4662 = vmatprep.subr.mxu0 0.0
    %4663 = vmatpush1.msra.mxu0 %v3363
    %4664 = vmatprep.subr.mxu0 0.0
    %4665 = vmatpush1.msra.mxu0 %v3364
    %4666 = vmatprep.subr.mxu0 0.0
    %4667 = vmatpush1.msra.mxu0 0.0
    %4668 = vmatprep.subr.mxu0 0.0
    %4669 = vmatpush1.msra.mxu0 0.0
    %4670 = vmatprep.subr.mxu0 0.0
    %4671 = vmatpush1.msra.mxu0 0.0
    %4672 = vmatprep.subr.mxu0 0.0
    %4673 = vmatpush1.msra.mxu0 0.0
    %4674 = vmatprep.subr.mxu0 0.0
    %4675 = vmatpush1.msra.mxu0 0.0
    %4676 = vmatprep.subr.mxu0 0.0
    %4677 = vmatpush1.msra.mxu0 0.0
    %4678 = vmatprep.subr.mxu0 0.0
    %4679 = vmatpush1.msra.mxu0 0.0
    %4680 = vmatprep.subr.mxu0 0.0
    %4681 = vmatpush1.msra.mxu0 0.0
    %4682 = vmatprep.subr.mxu0 0.0
    %4683 = vmatpush1.msra.mxu0 0.0
    %4684 = vmatprep.subr.mxu0 0.0
    %4685 = vmatpush1.msra.mxu0 0.0
    %4686 = vmatprep.subr.mxu0 0.0
    %4687 = vmatpush1.msra.mxu0 0.0
    %4688 = vmatprep.subr.mxu0 0.0
    %4689 = vmatpush1.msra.mxu0 0.0
    %4690 = vmatprep.subr.mxu0 0.0
    %4691 = vmatpush1.msra.mxu0 0.0
    %4692 = vmatprep.subr.mxu0 0.0
    %4693 = vmatpush1.msra.mxu0 0.0
    %4694 = vmatprep.subr.mxu0 0.0
    %4695 = vmatpush1.msra.mxu0 0.0
    %4696 = vmatprep.subr.mxu0 0.0
    %4697 = vmatpush1.msra.mxu0 0.0
    %4698 = vmatprep.subr.mxu0 0.0
    %4699 = vmatpush1.msra.mxu0 0.0
    %4700 = vmatprep.subr.mxu0 0.0
    %4701 = vmatpush1.msra.mxu0 0.0
    %4702 = vmatprep.subr.mxu0 0.0
    %4703 = vmatpush1.msra.mxu0 0.0
    %4704 = vmatprep.subr.mxu0 0.0
    %4705 = vmatpush1.msra.mxu0 0.0
    %4706 = vmatprep.subr.mxu0 0.0
    %4707 = vmatpush1.msra.mxu0 0.0
    %4708 = vmatprep.subr.mxu0 0.0
    %4709 = vmatpush1.msra.mxu0 0.0
    %4710 = vmatprep.subr.mxu0 0.0
    %4711 = vmatpush1.msra.mxu0 0.0
    %4712 = vmatprep.subr.mxu0 0.0
    %4713 = vmatpush1.msra.mxu0 0.0
    %4714 = vmatprep.subr.mxu0 0.0
    %4715 = vmatpush1.msra.mxu0 0.0
    %4716 = vmatprep.subr.mxu0 0.0
    %4717 = vmatpush1.msra.mxu0 0.0
    %4718 = vmatprep.subr.mxu0 0.0
    %4719 = vmatpush1.msra.mxu0 0.0
    %4720 = vmatprep.subr.mxu0 0.0
    %4721 = vmatpush1.msra.mxu0 0.0
    %4722 = vmatprep.subr.mxu0 0.0
    %4723 = vmatpush1.msra.mxu0 0.0
    %4724 = vmatprep.subr.mxu0 0.0
    %4725 = vmatpush1.msra.mxu0 0.0
    %4726 = vmatprep.mubr.f32.mxu0 0.0
    %4727 = vmatmul.mubr.f32.gmra.mrb[0].mxu0 %v4639
    %v4728 = vpop.f32.mrb[0].mxu0
    %v4729 = vadd.f32 %v4637, %v4728
    %v4730 = vpop.f32.mrb[0].mxu0
    %4731 = vmatprep.mubr.f32.mxu0 0.0
    %4732 = vmatmul.mubr.f32.gmra.mrb[0].mxu0 %v4642
    %v4733 = vpop.f32.mrb[0].mxu0
    %v4734 = vadd.f32 %v4637, %v4733
    %v4735 = vpop.f32.mrb[0].mxu0
    %4736 = vmatprep.mubr.f32.mxu0 0.0
    %4737 = vmatmul.mubr.f32.gmra.mrb[0].mxu0 %v4645
    %v4738 = vpop.f32.mrb[0].mxu0
    %v4739 = vadd.f32 %v4637, %v4738
    %v4740 = vpop.f32.mrb[0].mxu0
    %4741 = vmatprep.mubr.f32.mxu0 0.0
    %4742 = vmatmul.mubr.f32.gmra.mrb[0].mxu0 %v4648
    %v4743 = vpop.f32.mrb[0].mxu0
    %v4744 = vadd.f32 %v4637, %v4743
    %v4745 = vpop.f32.mrb[0].mxu0
    %4746 = vmatprep.mubr.f32.mxu0 0.0
    %4747 = vmatmul.mubr.f32.gmra.mrb[0].mxu0 %v4651
    %v4748 = vpop.f32.mrb[0].mxu0
    %v4749 = vadd.f32 %v4637, %v4748
    %v4750 = vpop.f32.mrb[0].mxu0
    %4751 = vmatprep.mubr.f32.mxu0 0.0
    %4752 = vmatmul.mubr.f32.gmra.mrb[0].mxu0 %v4654
    %v4753 = vpop.f32.mrb[0].mxu0
    %v4754 = vadd.f32 %v4637, %v4753
    %v4755 = vpop.f32.mrb[0].mxu0
    %4756 = vmatprep.mubr.f32.mxu0 0.0
    %4757 = vmatmul.mubr.f32.gmra.mrb[0].mxu0 %v4657
    %v4758 = vpop.f32.mrb[0].mxu0
    %v4759 = vadd.f32 %v4637, %v4758
    %v4760 = vpop.f32.mrb[0].mxu0
    %4761 = vmatprep.mubr.f32.mxu0 0.0
    %4762 = vmatmul.mubr.f32.gmra.mrb[0].mxu0 %v4660
    %v4763 = vpop.f32.mrb[0].mxu0
    %v4764 = vadd.f32 %v4637, %v4763
    %v4765 = vpop.f32.mrb[0].mxu0
    %4766 = vdwg.mxu0
    %v4767 = vadd.f32 %v4483, %v4729
    %v4768 = vadd.f32 %v4484, %v4734
    %v4769 = vadd.f32 %v4485, %v4739
    %v4770 = vadd.f32 %v4486, %v4744
    %v4771 = vadd.f32 %v4487, %v4749
    %v4772 = vadd.f32 %v4488, %v4754
    %v4773 = vadd.f32 %v4489, %v4759
    %v4774 = vadd.f32 %v4490, %v4764
    %v4775 = vld [vmem:[%s3 + $0x1c] sm:$0x1]
    %v4776 = vld [vmem:[%s3 + $0x1d] sm:$0x1]
    %v4777 = vsel %vm263, %v4767, 0.0
    %4778 = vadd.xlane.f32.xlu0 %v4777
    %v4779 = vpop.xlane.xlu0 %4778
    %v4780 = vsel %vm263, %v4768, 0.0
    %4781 = vadd.xlane.f32.xlu0 %v4780
    %v4782 = vpop.xlane.xlu0 %4781
    %v4783 = vsel %vm263, %v4769, 0.0
    %4784 = vadd.xlane.f32.xlu0 %v4783
    %v4785 = vpop.xlane.xlu0 %4784
    %v4786 = vsel %vm263, %v4770, 0.0
    %4787 = vadd.xlane.f32.xlu0 %v4786
    %v4788 = vpop.xlane.xlu0 %4787
    %v4789 = vsel %vm263, %v4771, 0.0
    %4790 = vadd.xlane.f32.xlu0 %v4789
    %v4791 = vpop.xlane.xlu0 %4790
    %v4792 = vsel %vm263, %v4772, 0.0
    %4793 = vadd.xlane.f32.xlu0 %v4792
    %v4794 = vpop.xlane.xlu0 %4793
    %v4795 = vsel %vm263, %v4773, 0.0
    %4796 = vadd.xlane.f32.xlu0 %v4795
    %v4797 = vpop.xlane.xlu0 %4796
    %v4798 = vsel %vm263, %v4774, 0.0
    %4799 = vadd.xlane.f32.xlu0 %v4798
    %v4800 = vpop.xlane.xlu0 %4799
    %v4801 = vmul.f32 %v4779, %v1282
    %v4802 = vmul.f32 %v4782, %v1282
    %v4803 = vmul.f32 %v4785, %v1282
    %v4804 = vmul.f32 %v4788, %v1282
    %v4805 = vmul.f32 %v4791, %v1282
    %v4806 = vmul.f32 %v4794, %v1282
    %v4807 = vmul.f32 %v4797, %v1282
    %v4808 = vmul.f32 %v4800, %v1282
    %v4809 = vsub.f32 %v4767, %v4801
    %v4810 = vsub.f32 %v4768, %v4802
    %v4811 = vsub.f32 %v4769, %v4803
    %v4812 = vsub.f32 %v4770, %v4804
    %v4813 = vsub.f32 %v4771, %v4805
    %v4814 = vsub.f32 %v4772, %v4806
    %v4815 = vsub.f32 %v4773, %v4807
    %v4816 = vsub.f32 %v4774, %v4808
    %v4817 = vmul.f32 %v4809, %v4809
    %v4818 = vmul.f32 %v4810, %v4810
    %v4819 = vmul.f32 %v4811, %v4811
    %v4820 = vmul.f32 %v4812, %v4812
    %v4821 = vmul.f32 %v4813, %v4813
    %v4822 = vmul.f32 %v4814, %v4814
    %v4823 = vmul.f32 %v4815, %v4815
    %v4824 = vmul.f32 %v4816, %v4816
    %v4825 = vsel %vm263, %v4817, 0.0
    %4826 = vadd.xlane.f32.xlu0 %v4825
    %v4827 = vpop.xlane.xlu0 %4826
    %v4828 = vsel %vm263, %v4818, 0.0
    %4829 = vadd.xlane.f32.xlu0 %v4828
    %v4830 = vpop.xlane.xlu0 %4829
    %v4831 = vsel %vm263, %v4819, 0.0
    %4832 = vadd.xlane.f32.xlu0 %v4831
    %v4833 = vpop.xlane.xlu0 %4832
    %v4834 = vsel %vm263, %v4820, 0.0
    %4835 = vadd.xlane.f32.xlu0 %v4834
    %v4836 = vpop.xlane.xlu0 %4835
    %v4837 = vsel %vm263, %v4821, 0.0
    %4838 = vadd.xlane.f32.xlu0 %v4837
    %v4839 = vpop.xlane.xlu0 %4838
    %v4840 = vsel %vm263, %v4822, 0.0
    %4841 = vadd.xlane.f32.xlu0 %v4840
    %v4842 = vpop.xlane.xlu0 %4841
    %v4843 = vsel %vm263, %v4823, 0.0
    %4844 = vadd.xlane.f32.xlu0 %v4843
    %v4845 = vpop.xlane.xlu0 %4844
    %v4846 = vsel %vm263, %v4824, 0.0
    %4847 = vadd.xlane.f32.xlu0 %v4846
    %v4848 = vpop.xlane.xlu0 %4847
    %v4849 = vmul.f32 %v4827, %v1282
    %v4850 = vmul.f32 %v4830, %v1282
    %v4851 = vmul.f32 %v4833, %v1282
    %v4852 = vmul.f32 %v4836, %v1282
    %v4853 = vmul.f32 %v4839, %v1282
    %v4854 = vmul.f32 %v4842, %v1282
    %v4855 = vmul.f32 %v4845, %v1282
    %v4856 = vmul.f32 %v4848, %v1282
    %v4857 = vadd.f32 %v4849, 1e-05
    %v4858 = vadd.f32 %v4850, 1e-05
    %v4859 = vadd.f32 %v4851, 1e-05
    %v4860 = vadd.f32 %v4852, 1e-05
    %v4861 = vadd.f32 %v4853, 1e-05
    %v4862 = vadd.f32 %v4854, 1e-05
    %v4863 = vadd.f32 %v4855, 1e-05
    %v4864 = vadd.f32 %v4856, 1e-05
    %v4865 = vrsqrt.pop %v4857
    %v4866 = vrsqrt.pop %v4858
    %v4867 = vrsqrt.pop %v4859
    %v4868 = vrsqrt.pop %v4860
    %v4869 = vrsqrt.pop %v4861
    %v4870 = vrsqrt.pop %v4862
    %v4871 = vrsqrt.pop %v4863
    %v4872 = vrsqrt.pop %v4864
    %v4873 = vmul.f32 %v4809, %v4865
    %v4874 = vmul.f32 %v4810, %v4866
    %v4875 = vmul.f32 %v4811, %v4867
    %v4876 = vmul.f32 %v4812, %v4868
    %v4877 = vmul.f32 %v4813, %v4869
    %v4878 = vmul.f32 %v4814, %v4870
    %v4879 = vmul.f32 %v4815, %v4871
    %v4880 = vmul.f32 %v4816, %v4872
    %v4881 = vlaneseq
    %v4882 = vshrl.u32 %v4881, 7
    %v4883 = vsub.s32 0, %v4882
    %v4884 = vrot.slane %v4775, %v4883
    %v4885 = vmul.f32 %v4873, %v4884
    %v4886 = vmul.f32 %v4874, %v4884
    %v4887 = vmul.f32 %v4875, %v4884
    %v4888 = vmul.f32 %v4876, %v4884
    %v4889 = vmul.f32 %v4877, %v4884
    %v4890 = vmul.f32 %v4878, %v4884
    %v4891 = vmul.f32 %v4879, %v4884
    %v4892 = vmul.f32 %v4880, %v4884
    %v4893 = vlaneseq
    %v4894 = vshrl.u32 %v4893, 7
    %v4895 = vsub.s32 0, %v4894
    %v4896 = vrot.slane %v4776, %v4895
    %v4897 = vadd.f32 %v4885, %v4896
    %v4898 = vadd.f32 %v4886, %v4896
    %v4899 = vadd.f32 %v4887, %v4896
    %v4900 = vadd.f32 %v4888, %v4896
    %v4901 = vadd.f32 %v4889, %v4896
    %v4902 = vadd.f32 %v4890, %v4896
    %v4903 = vadd.f32 %v4891, %v4896
    %v4904 = vadd.f32 %v4892, %v4896
    %v4905 = vld [vmem:[%s4 + $0x20] sm:$0xff]
    %v4906 = vld [vmem:[%s4 + $0x28] sm:$0xff]
    %v4907 = vld [vmem:[%s4 + $0x30] sm:$0xff]
    %v4908 = vld [vmem:[%s4 + $0x38] sm:$0xff]
    %v4909 = vmul.f32 %v4897, %v4905
    %v4910 = vmul.f32 %v4898, %v4906
    %v4911 = vmul.f32 %v4899, %v4907
    %v4912 = vmul.f32 %v4900, %v4908
    %v4913 = vmul.f32 %v4901, %v4905
    %v4914 = vmul.f32 %v4902, %v4906
    %v4915 = vmul.f32 %v4903, %v4907
    %v4916 = vmul.f32 %v4904, %v4908
    %v4917 = vsel %vm263, %v4909, 0.0
    %4918 = vadd.xlane.f32.xlu0 %v4917
    %v4919 = vpop.xlane.xlu0 %4918
    %v4920 = vsel %vm263, %v4910, 0.0
    %4921 = vadd.xlane.f32.xlu0 %v4920
    %v4922 = vpop.xlane.xlu0 %4921
    %v4923 = vsel %vm263, %v4911, 0.0
    %4924 = vadd.xlane.f32.xlu0 %v4923
    %v4925 = vpop.xlane.xlu0 %4924
    %v4926 = vsel %vm263, %v4912, 0.0
    %4927 = vadd.xlane.f32.xlu0 %v4926
    %v4928 = vpop.xlane.xlu0 %4927
    %v4929 = vsel %vm263, %v4913, 0.0
    %4930 = vadd.xlane.f32.xlu0 %v4929
    %v4931 = vpop.xlane.xlu0 %4930
    %v4932 = vsel %vm263, %v4914, 0.0
    %4933 = vadd.xlane.f32.xlu0 %v4932
    %v4934 = vpop.xlane.xlu0 %4933
    %v4935 = vsel %vm263, %v4915, 0.0
    %4936 = vadd.xlane.f32.xlu0 %v4935
    %v4937 = vpop.xlane.xlu0 %4936
    %v4938 = vsel %vm263, %v4916, 0.0
    %4939 = vadd.xlane.f32.xlu0 %v4938
    %v4940 = vpop.xlane.xlu0 %4939
    %v4949 = vlaneseq
    %v4950 = vand.u32 %v4949, 127
    %v4951 = vlaneseq
    %v4952 = vshrl.u32 %v4951, 7
    %v4953 = vsub.s32 %v4950, %v4952
    %v4954 = vrot.slane %v4919, %v4953
    %v4955 = vadd.s32 %v4950, 4294967288
    %v4956 = vlaneseq
    %v4957 = vshrl.u32 %v4956, 7
    %v4958 = vsub.s32 %v4955, %v4957
    %v4959 = vrot.slane %v4922, %v4958
    %vm4960 = vcmask 130112
    %v4961 = vsel %vm4960, %v4959, %v4954
    %v4962 = vadd.s32 %v4950, 4294967280
    %v4963 = vlaneseq
    %v4964 = vshrl.u32 %v4963, 7
    %v4965 = vsub.s32 %v4962, %v4964
    %v4966 = vrot.slane %v4925, %v4965
    %vm4967 = vcmask 195712
    %v4968 = vsel %vm4967, %v4966, %v4961
    %v4969 = vadd.s32 %v4950, 4294967272
    %v4970 = vlaneseq
    %v4971 = vshrl.u32 %v4970, 7
    %v4972 = vsub.s32 %v4969, %v4971
    %v4973 = vrot.slane %v4928, %v4972
    %vm4974 = vcmask 261312
    %v4975 = vsel %vm4974, %v4973, %v4968
    %v4976 = vlaneseq
    %v4977 = vshrl.u32 %v4976, 7
    %v4978 = vsub.s32 %v4950, %v4977
    %v4979 = vrot.slane %v4931, %v4978
    %v4980 = vlaneseq
    %v4981 = vshrl.u32 %v4980, 7
    %v4982 = vsub.s32 %v4955, %v4981
    %v4983 = vrot.slane %v4934, %v4982
    %v4984 = vsel %vm4960, %v4983, %v4979
    %v4985 = vlaneseq
    %v4986 = vshrl.u32 %v4985, 7
    %v4987 = vsub.s32 %v4962, %v4986
    %v4988 = vrot.slane %v4937, %v4987
    %v4989 = vsel %vm4967, %v4988, %v4984
    %v4990 = vlaneseq
    %v4991 = vshrl.u32 %v4990, 7
    %v4992 = vsub.s32 %v4969, %v4991
    %v4993 = vrot.slane %v4940, %v4992
    %v4994 = vsel %vm4974, %v4993, %v4989
    %vm4995 = vcmask 1041409
    %v4996 = vsel %vm4995, %v4994, %v4975
    %vm4998 = vcmask 254976
    %v4999 = vsel %vm4998, %v4996, 0.0
    %5000 = vadd.xlane.f32.xlu0 %v4999
    %v5001 = vpop.xlane.xlu0 %5000
    %v5002 = vld [vmem:[%s3 + $0x20] sm:$0x1]
    %5004 = vset.pattern.permute.xlu0 0
    %5005 = vperm.xlu0 %5004, %v5002
    %v5006 = vpop.permute.xlu0 %5005
    %v5007 = vlaneseq
    %v5008 = vshrl.u32 %v5007, 7
    %v5009 = vsub.s32 0, %v5008
    %v5010 = vrot.slane %v5006, %v5009
    %v5012 = vadd.f32 %v5001, %v5010
    %5014 = vset.pattern.permute.xlu0 0
    %5015 = vperm.xlu0 %5014, %v5012
    %v5016 = vpop.permute.xlu0 %5015
    %v5017 = vlaneseq
    %v5018 = vshrl.u32 %v5017, 7
    %v5019 = vsub.s32 %v4950, %v5018
    %v5020 = vrot.slane %v5016, %v5019
    %vm5022 = vcmask 8192
    %5023 = vst.msk [vmem:[#allocation2] sm:$0x1] %vm5022, %v5020
    // Predicated region
    $region22: #{transformer_forward.1} parent=1 // pred_check
      _
    $region23: #{transformer_forward.1} parent=1 // pred_check_branch
      %5025 = sbr.rel (0) target = $region25
    $region24: #{transformer_forward.1} parent=1 // pred_region
      %s5027 = ssub.s32 16, 16
      %5028 = vsyncadd [#allocation3], %s5027
      %s5030 = sshll.u32 [#allocation2], 4
      %s5031 = int_to_ptr.vmem [resolvable:$true] %s5030
      %5033 = dma.vmem_to_hbm [thread:$0]  %s5031, 16, %s5, [#allocation3]
    $region25: #{transformer_forward.1} parent=1 // pred_fallthru
      _
    // Predicated region
    $region26: #{transformer_forward.1} parent=1 // pred_check
      _
    $region27: #{transformer_forward.1} parent=1 // pred_check_branch
      %5035 = sbr.rel (0) target = $region29
    $region28: #{transformer_forward.1} parent=1 // pred_region
      %5036 = dma.done [#allocation3], 16
    $region29: #{transformer_forward.1} parent=1 // pred_fallthru
      _
    %5037 = vsyncpa [#allocation3], 1

</llo_original>
